<compile_context>
chip_gen: v7x
topology: tpu7x:2x2x1
jax: 0.10.0
libtpu: 0.0.40
codegen_flags: <defaults>
</compile_context>

<pallas_src>
import functools

import numpy as np
import jax
import jax.numpy as jnp
from jax import lax
from jax.experimental import pallas as pl
from jax.experimental.pallas import tpu as pltpu

EPS = 1e-5
LANE = 128
VMEM_LIMIT = 32 * 1024 * 1024   # fits v5e/v6e (128 MiB) and v7x (64 MiB) physical VMEM


def _round_up(x, m):
    return (x + m - 1) // m * m


# ----------------------------- Pallas kernels -----------------------------

def _pw_kernel(*refs, relu, has_res):
    """Pointwise conv as [TP, Cin] x [Cin, Cout] matmul + folded BN (+res)(+ReLU).

    bf16 operands, f32 MXU accumulation, f32 affine, bf16/f32 store."""
    if has_res:
        x_ref, w_ref, sc_ref, sh_ref, r_ref, o_ref = refs
    else:
        x_ref, w_ref, sc_ref, sh_ref, o_ref = refs
    y = jnp.dot(x_ref[...], w_ref[...], preferred_element_type=jnp.float32)
    y = y * sc_ref[...] + sh_ref[...]
    if has_res:
        y = y + r_ref[...].astype(jnp.float32)   # fused residual / pooled shortcut
    if relu:
        y = jnp.maximum(y, 0.0)
    o_ref[...] = y.astype(o_ref.dtype)


def pointwise_conv_bn(x2d, w_big, scale, shift, *, relu=True, res=None,
                      out_dtype=jnp.bfloat16, max_rows=1024):
    """1x1x1 conv (+BN +optional fused residual +ReLU) on layout [P, Cpad]."""
    p, cin = x2d.shape
    cout = w_big.shape[1]

    # Row tile: multiple of 16 (bf16 sublane packing).  P is padded up to a
    # multiple of the tile so `tp` never collapses to an awkward divisor of an
    # odd P; the tile is halved when that would leave a single grid step so
    # both v7x TensorCores get work.  max_rows=1024 keeps the double-buffered
    # working set well under 32 MiB even at 1024-lane channel widths.
    tp = min(max_rows, _round_up(p, 16))
    if tp % 32 == 0 and _round_up(p, tp) == tp:
        tp //= 2
    p_pad = _round_up(p, tp)
    if p_pad != p:
        x2d = jnp.pad(x2d, ((0, p_pad - p), (0, 0)))
        if res is not None:
            res = jnp.pad(res, ((0, p_pad - p), (0, 0)))

    in_specs = [
        pl.BlockSpec((tp, cin), lambda i: (i, 0)),
        pl.BlockSpec((cin, cout), lambda i: (0, 0)),
        pl.BlockSpec((1, cout), lambda i: (0, 0)),
        pl.BlockSpec((1, cout), lambda i: (0, 0)),
    ]
    args = [x2d, w_big, scale, shift]
    if res is not None:
        in_specs.append(pl.BlockSpec((tp, cout), lambda i: (i, 0)))
        args.append(res)

    kernel = functools.partial(_pw_kernel, relu=relu, has_res=res is not None)
    out = pl.pallas_call(
        kernel,
        out_shape=jax.ShapeDtypeStruct((p_pad, cout), out_dtype),
        grid=(p_pad // tp,),
        in_specs=in_specs,
        out_specs=pl.BlockSpec((tp, cout), lambda i: (i, 0)),
        compiler_params=pltpu.CompilerParams(
            dimension_semantics=("parallel",),
            vmem_limit_bytes=VMEM_LIMIT),
    )(*args)
    return out[:p] if p_pad != p else out


def _dw_kernel(x_ref, w_ref, sc_ref, sh_ref, o_ref, pad_ref, *,
               stride, pad_d, pad_h, pad_w):
    """One (n, d_out) output row of a depthwise KDxKHxKW conv + per-channel affine.

    The whole per-sample input block stays resident in VMEM (revisited across
    the D_out grid axis), halos are realised here (no HBM pad pass), and all
    taps accumulate into an in-register f32 value."""
    j = pl.program_id(1)
    kd, kh_sz, kw_sz, c = w_ref.shape
    _, _, ho, wo, _ = o_ref.shape
    _, d_tot, h_in, w_in, _ = x_ref.shape
    h_span = (ho - 1) * stride + 1
    w_span = (wo - 1) * stride + 1

    # Zero-padded row scratch: border zeroed once per step, interior is
    # overwritten for every kd below.
    pad_ref[...] = jnp.zeros_like(pad_ref)

    acc = jnp.zeros((ho, wo, c), jnp.float32)
    for k in range(kd):
        d_in = stride * j + k - pad_d
        if pad_d > 0:
            d_idx = jnp.clip(d_in, 0, d_tot - 1)
            d_mask = jnp.logical_and(d_in >= 0, d_in < d_tot).astype(jnp.float32)
        else:
            d_idx = d_in                       # always in range (no depth halo)
            d_mask = None
        row = x_ref[0, d_idx].astype(jnp.float32)    # upcast: v5e has no bf16 VALU
        if d_mask is not None:
            row = row * d_mask                       # zero the out-of-range depth halo
        pad_ref[pad_h:pad_h + h_in, pad_w:pad_w + w_in, :] = row
        xv = pad_ref[...]
        for kh in range(kh_sz):
            for kw in range(kw_sz):
                # Static strided slice on the loaded VALUE (not the ref) -- the
                # strided `pl.ds` ref load is not supported by the interpreter.
                # TODO(synk): if Mosaic rejects the stride-2 value slice on some
                # backend, switch to pl.ds(..., stride=) ref loads there.
                tap = xv[kh:kh + h_span:stride, kw:kw + w_span:stride, :]
                acc = acc + tap * w_ref[k, kh, kw, :]
    y = acc * sc_ref[...] + sh_ref[...]
    o_ref[...] = y.reshape(o_ref.shape).astype(o_ref.dtype)


def depthwise_conv_bn(x5d, w, scale, shift, *, stride, pad, out_dtype=jnp.bfloat16):
    """Depthwise KDxKHxKW conv on [N, D, H, W, Cpad] + per-channel affine.

    Grid (N, D_out); the per-sample input block is only DMA'd when N changes
    (Pallas skips copies for unchanged block indices), so every input element
    is read from HBM once per call.  D/H/W halos are handled in-kernel."""
    n, d_in, h_in, w_in, cp = x5d.shape
    kd, kh, kw, _ = w.shape
    pd, ph, pw = pad
    do = (d_in + 2 * pd - kd) // stride + 1
    ho = (h_in + 2 * ph - kh) // stride + 1
    wo = (w_in + 2 * pw - kw) // stride + 1

    kernel = functools.partial(_dw_kernel, stride=stride,
                               pad_d=pd, pad_h=ph, pad_w=pw)
    return pl.pallas_call(
        kernel,
        out_shape=jax.ShapeDtypeStruct((n, do, ho, wo, cp), out_dtype),
        grid=(n, do),
        in_specs=[
            pl.BlockSpec((1, d_in, h_in, w_in, cp), lambda i, j: (i, 0, 0, 0, 0)),
            pl.BlockSpec((kd, kh, kw, cp), lambda i, j: (0, 0, 0, 0)),
            pl.BlockSpec((1, cp), lambda i, j: (0, 0)),
            pl.BlockSpec((1, cp), lambda i, j: (0, 0)),
        ],
        out_specs=pl.BlockSpec((1, 1, ho, wo, cp), lambda i, j: (i, j, 0, 0, 0)),
        scratch_shapes=[pltpu.VMEM((h_in + 2 * ph, w_in + 2 * pw, cp), jnp.float32)],
        compiler_params=pltpu.CompilerParams(
            dimension_semantics=("parallel", "parallel"),
            vmem_limit_bytes=VMEM_LIMIT),
    )(x5d, w, scale, shift)


# ----------------------------- glue helpers -------------------------------

def densify_grouped(w, groups):
    """[C_out, C_in//groups] grouped conv weight -> block-diagonal dense [C_out, C_in]."""
    c_out, cin_g = w.shape
    cout_g = c_out // groups
    wd = jnp.zeros((c_out, cin_g * groups), w.dtype)
    for g in range(groups):
        wd = wd.at[g * cout_g:(g + 1) * cout_g,
                   g * cin_g:(g + 1) * cin_g].set(w[g * cout_g:(g + 1) * cout_g])
    return wd


def fold_bn(gamma, beta, mean, var):
    scale = gamma / jnp.sqrt(var + EPS)
    shift = beta - mean * scale
    return scale, shift


def shuffle_perm(channels, groups):
    return np.arange(channels).reshape(groups, channels // groups).T.reshape(-1)


def _pad_lane(vec, cp):
    """Place a per-channel vector at lanes [0, len(vec)) of a (1, cp) f32 row."""
    return jnp.zeros((1, cp), jnp.float32).at[0, :vec.shape[0]].set(vec)


# --------------------------- Bottleneck forward ----------------------------

def bottleneck_pallas(x, params, *, in_planes, out_planes, stride, groups):
    n, c_in, d, h, w = x.shape
    mid = out_planes // 4
    out_conv = out_planes - in_planes if stride == 2 else out_planes
    g1 = 1 if in_planes == 24 else groups
    if stride == 2:
        assert d % 2 == 0, "stride-2 path needs even D (conv2/pool depth match)"
    else:
        assert in_planes == out_planes, "stride-1 residual add needs in==out planes"

    cp_in = _round_up(c_in, LANE)
    cp_mid = _round_up(mid, LANE)
    cp_out = _round_up(out_planes, LANE)

    # ---- single channels-last bf16 layout for the whole block ----
    x_cl = jnp.transpose(x, (0, 2, 3, 4, 1))                       # [N,D,H,W,C]
    x_cl = jnp.pad(x_cl, ((0, 0),) * 4 + ((0, cp_in - c_in),)).astype(jnp.bfloat16)
    x2d = x_cl.reshape(n * d * h * w, cp_in)

    # ---- conv1 (1x1x1, groups=g1) + bn1 + relu, channel shuffle folded ----
    w1d = densify_grouped(params['w1'][..., 0, 0, 0], g1)          # [mid, c_in]
    sc1, sh1 = fold_bn(params['bn1_g'], params['bn1_b'],
                       params['bn1_m'], params['bn1_v'])
    perm = shuffle_perm(mid, groups)
    w1d, sc1, sh1 = w1d[perm], sc1[perm], sh1[perm]
    w1_big = (jnp.zeros((cp_in, cp_mid), jnp.float32)
              .at[:c_in, :mid].set(w1d.T).astype(jnp.bfloat16))
    y1_2d = pointwise_conv_bn(x2d, w1_big, _pad_lane(sc1, cp_mid),
                              _pad_lane(sh1, cp_mid), relu=True,
                              out_dtype=jnp.bfloat16)              # [P, cp_mid]

    # ---- conv2 (depthwise 3x3x3, stride + halos handled in-kernel) + bn2 ----
    y1_5d = y1_2d.reshape(n, d, h, w, cp_mid)
    w2_cl = jnp.transpose(params['w2'][:, 0], (1, 2, 3, 0))        # [3,3,3,mid]
    w2p = jnp.zeros((3, 3, 3, cp_mid), jnp.float32).at[..., :mid].set(w2_cl)
    sc2, sh2 = fold_bn(params['bn2_g'], params['bn2_b'],
                       params['bn2_m'], params['bn2_v'])
    y2 = depthwise_conv_bn(y1_5d, w2p, _pad_lane(sc2, cp_mid),
                           _pad_lane(sh2, cp_mid), stride=stride,
                           pad=(1, 1, 1), out_dtype=jnp.bfloat16)
    _, do_, ho_, wo_, _ = y2.shape
    y2_2d = y2.reshape(n * do_ * ho_ * wo_, cp_mid)

    # ---- conv3 (1x1x1, groups) + bn3 with fused shortcut epilogue ----
    # conv3's channels stay at lane offset 0 so the torch concat order falls out
    # of a plain [..., :out_planes] slice (no full-tensor lane gather).
    w3d = densify_grouped(params['w3'][..., 0, 0, 0], groups)      # [out_conv, mid]
    sc3, sh3 = fold_bn(params['bn3_g'], params['bn3_b'],
                       params['bn3_m'], params['bn3_v'])
    w3_big = (jnp.zeros((cp_mid, cp_out), jnp.float32)
              .at[:mid, :out_conv].set(w3d.T).astype(jnp.bfloat16))

    if stride == 1:
        res2d = x2d                           # identity shortcut, lanes [0, c_in)
        if cp_in < cp_out:
            res2d = jnp.pad(res2d, ((0, 0), (0, cp_out - cp_in)))
    else:
        # AvgPool3d(kernel=(2,3,3), stride=2, pad=(0,1,1), count_include_pad=True)
        # == depthwise conv with constant 1/18 taps.
        w_pool = jnp.zeros((2, 3, 3, cp_in), jnp.float32).at[..., :c_in].set(1.0 / 18.0)
        pooled = depthwise_conv_bn(x_cl, w_pool,
                                   jnp.ones((1, cp_in), jnp.float32),
                                   jnp.zeros((1, cp_in), jnp.float32),
                                   stride=2, pad=(0, 1, 1),
                                   out_dtype=jnp.bfloat16)          # [N,Do,Ho,Wo,cp_in]
        # Shift the (8x smaller) pooled shortcut to lanes [out_conv, out_conv+c_in)
        # so the fused epilogue directly produces torch's concat order.
        pooled2d = pooled.reshape(n * do_ * ho_ * wo_, cp_in)[:, :c_in]
        res2d = jnp.pad(pooled2d, ((0, 0), (out_conv, cp_out - out_conv - c_in)))

    out2d = pointwise_conv_bn(y2_2d, w3_big, _pad_lane(sc3, cp_out),
                              _pad_lane(sh3, cp_out), relu=True, res=res2d,
                              out_dtype=jnp.float32)               # [P2, cp_out]

    out5d = out2d.reshape(n, do_, ho_, wo_, cp_out)
    out_c = out5d[..., :out_planes]                                # plain lane slice
    return jnp.transpose(out_c, (0, 4, 1, 2, 3))                   # NCDHW


# ----------------------------- pure-JAX reference --------------------------

def channel_shuffle_ref(x, groups):
    n, c, d, h, w = x.shape
    x = x.reshape(n, groups, c // groups, d, h, w)
    x = jnp.transpose(x, (0, 2, 1, 3, 4, 5))
    return x.reshape(n, c, d, h, w)


def bottleneck_ref(x, params, *, in_planes, out_planes, stride, groups):
    mid = out_planes // 4
    g1 = 1 if in_planes == 24 else groups
    dn = ('NCDHW', 'OIDHW', 'NCDHW')

    def bn(y, g, b, m, v):
        sh = (1, -1, 1, 1, 1)
        return (y - m.reshape(sh)) / jnp.sqrt(v.reshape(sh) + EPS) * g.reshape(sh) + b.reshape(sh)

    out = lax.conv_general_dilated(x, params['w1'], (1, 1, 1), 'VALID',
                                   dimension_numbers=dn, feature_group_count=g1,
                                   precision=lax.Precision.HIGHEST)
    out = jax.nn.relu(bn(out, params['bn1_g'], params['bn1_b'], params['bn1_m'], params['bn1_v']))
    out = channel_shuffle_ref(out, groups)
    out = lax.conv_general_dilated(out, params['w2'], (stride,) * 3, [(1, 1)] * 3,
                                   dimension_numbers=dn, feature_group_count=mid,
                                   precision=lax.Precision.HIGHEST)
    out = bn(out, params['bn2_g'], params['bn2_b'], params['bn2_m'], params['bn2_v'])
    out = lax.conv_general_dilated(out, params['w3'], (1, 1, 1), 'VALID',
                                   dimension_numbers=dn, feature_group_count=groups,
                                   precision=lax.Precision.HIGHEST)
    out = bn(out, params['bn3_g'], params['bn3_b'], params['bn3_m'], params['bn3_v'])
    if stride == 2:
        pooled = lax.reduce_window(x, 0.0, lax.add, (1, 1, 2, 3, 3), (1, 1, 2, 2, 2),
                                   ((0, 0), (0, 0), (0, 0), (1, 1), (1, 1))) / 18.0
        out = jax.nn.relu(jnp.concatenate([out, pooled], axis=1))
    else:
        out = jax.nn.relu(out + x)
    return out


# ----------------------------- parameter init ------------------------------

def init_params(key, *, in_planes, out_planes, stride, groups):
    mid = out_planes // 4
    out_conv = out_planes - in_planes if stride == 2 else out_planes
    g1 = 1 if in_planes == 24 else groups
    ks = jax.random.split(key, 15)

    def bn_p(k_g, k_b, k_m, k_v, c):
        return (1.0 + 0.1 * jax.random.normal(k_g, (c,), jnp.float32),
                0.1 * jax.random.normal(k_b, (c,), jnp.float32),
                0.1 * jax.random.normal(k_m, (c,), jnp.float32),
                0.5 + 0.5 * jax.random.uniform(k_v, (c,), jnp.float32))

    g1_, b1_, m1_, v1_ = bn_p(ks[3], ks[4], ks[5], ks[6], mid)
    g2_, b2_, m2_, v2_ = bn_p(ks[7], ks[8], ks[9], ks[10], mid)
    g3_, b3_, m3_, v3_ = bn_p(ks[11], ks[12], ks[13], ks[14], out_conv)
    return {
        'w1': 0.2 * jax.random.normal(ks[0], (mid, in_planes // g1, 1, 1, 1), jnp.float32),
        'w2': 0.2 * jax.random.normal(ks[1], (mid, 1, 3, 3, 3), jnp.float32),
        'w3': 0.2 * jax.random.normal(ks[2], (out_conv, mid // groups, 1, 1, 1), jnp.float32),
        'bn1_g': g1_, 'bn1_b': b1_, 'bn1_m': m1_, 'bn1_v': v1_,
        'bn2_g': g2_, 'bn2_b': b2_, 'bn2_m': m2_, 'bn2_v': v2_,
        'bn3_g': g3_, 'bn3_b': b3_, 'bn3_m': m3_, 'bn3_v': v3_,
    }


# --------------------------------- main ------------------------------------

if __name__ == "__main__":
    key = jax.random.PRNGKey(0)
    N, D, H, W = 2, 4, 8, 8
    configs = [
        dict(in_planes=16, out_planes=16, stride=1, groups=2),   # residual add path
        dict(in_planes=16, out_planes=32, stride=2, groups=2),   # avgpool + concat path
    ]
    for cfg in configs:
        key, kx, kp = jax.random.split(key, 3)
        x = jax.random.normal(kx, (N, cfg['in_planes'], D, H, W), jnp.float32)
        params = init_params(kp, **cfg)

        fwd = jax.jit(functools.partial(bottleneck_pallas, **cfg))
        out = jax.block_until_ready(fwd(x, params))

        # bf16 activation/weight storage vs the f32 HIGHEST-precision reference:
        # loosened tolerance accordingly.
        ref = bottleneck_ref(x, params, **cfg)
        np.testing.assert_allclose(np.asarray(out), np.asarray(ref),
                                   rtol=5e-2, atol=5e-2)

    print("KERNEL_OK")
</pallas_src>

<mosaic_0001>
module attributes {stable_mosaic.version = 11 : i64} {
  func.func @_pw_kernel(%arg0: i32, %arg1: memref<256x128xbf16, #tpu.memory_space<vmem>>, %arg2: memref<128x128xbf16, #tpu.memory_space<vmem>>, %arg3: memref<1x128xf32, #tpu.memory_space<vmem>>, %arg4: memref<1x128xf32, #tpu.memory_space<vmem>>, %arg5: memref<256x128xbf16, #tpu.memory_space<vmem>>) attributes {dimension_semantics = [#tpu.dimension_semantics<parallel>], iteration_bounds = array<i64: 2>, scalar_prefetch = 0 : i64, scratch_operands = 0 : i64, tpu.core_type = #tpu.core_type<tc>, window_params = [{transform_indices = @transform_0, window_bounds = array<i64: 256, 128>}, {pipeline_mode = #tpu.pipeline_mode<synchronous>, transform_indices = @transform_1, window_bounds = array<i64: 128, 128>}, {pipeline_mode = #tpu.pipeline_mode<synchronous>, transform_indices = @transform_2, window_bounds = array<i64: 1, 128>}, {pipeline_mode = #tpu.pipeline_mode<synchronous>, transform_indices = @transform_3, window_bounds = array<i64: 1, 128>}, {transform_indices = @transform_4, window_bounds = array<i64: 256, 128>}]} {
    %c0 = arith.constant 0 : index
    %c0_0 = arith.constant 0 : index
    %0 = vector.load %arg1[%c0, %c0_0] : memref<256x128xbf16, #tpu.memory_space<vmem>>, vector<256x128xbf16>
    %c0_1 = arith.constant 0 : index
    %c0_2 = arith.constant 0 : index
    %1 = vector.load %arg2[%c0_1, %c0_2] : memref<128x128xbf16, #tpu.memory_space<vmem>>, vector<128x128xbf16>
    %cst = arith.constant dense<0.000000e+00> : vector<256x128xf32>
    %2 = tpu.matmul %0, %1, %cst {dimension_numbers = #tpu.dot_dimension_numbers<[1], [0], [0], [1], [0, 0, 1, 1], [], []>} : vector<256x128xbf16>, vector<128x128xbf16>, vector<256x128xf32> -> vector<256x128xf32>
    %c0_3 = arith.constant 0 : index
    %c0_4 = arith.constant 0 : index
    %3 = vector.load %arg3[%c0_3, %c0_4] : memref<1x128xf32, #tpu.memory_space<vmem>>, vector<1x128xf32>
    %4 = vector.broadcast %3 : vector<1x128xf32> to vector<256x128xf32>
    %5 = arith.mulf %2, %4 : vector<256x128xf32>
    %c0_5 = arith.constant 0 : index
    %c0_6 = arith.constant 0 : index
    %6 = vector.load %arg4[%c0_5, %c0_6] : memref<1x128xf32, #tpu.memory_space<vmem>>, vector<1x128xf32>
    %7 = vector.broadcast %6 : vector<1x128xf32> to vector<256x128xf32>
    %8 = arith.addf %5, %7 : vector<256x128xf32>
    %cst_7 = arith.constant 0.000000e+00 : f32
    %9 = vector.broadcast %cst_7 : f32 to vector<256x128xf32>
    %10 = arith.maximumf %8, %9 : vector<256x128xf32>
    %11 = arith.truncf %10 : vector<256x128xf32> to vector<256x128xbf16>
    %c0_8 = arith.constant 0 : index
    %c0_9 = arith.constant 0 : index
    %12 = vector.load %arg5[%c0_8, %c0_9] : memref<256x128xbf16, #tpu.memory_space<vmem>>, vector<256x128xbf16>
    tpu.vector_store %arg5[%c0_8, %c0_9], %11 {strides = array<i32>} : memref<256x128xbf16, #tpu.memory_space<vmem>>, vector<256x128xbf16>,
    return
  }
  func.func @transform_0(%arg0: i32) -> (i32, i32) {
    %c0_i32 = arith.constant 0 : i32
    %c0_i32_0 = arith.constant 0 : i32
    return %arg0, %c0_i32 : i32, i32
  }
  func.func @transform_1(%arg0: i32) -> (i32, i32) {
    %c0_i32 = arith.constant 0 : i32
    %c0_i32_0 = arith.constant 0 : i32
    %c0_i32_1 = arith.constant 0 : i32
    return %c0_i32, %c0_i32_0 : i32, i32
  }
  func.func @transform_2(%arg0: i32) -> (i32, i32) {
    %c0_i32 = arith.constant 0 : i32
    %c0_i32_0 = arith.constant 0 : i32
    %c0_i32_1 = arith.constant 0 : i32
    return %c0_i32, %c0_i32_0 : i32, i32
  }
  func.func @transform_3(%arg0: i32) -> (i32, i32) {
    %c0_i32 = arith.constant 0 : i32
    %c0_i32_0 = arith.constant 0 : i32
    %c0_i32_1 = arith.constant 0 : i32
    return %c0_i32, %c0_i32_0 : i32, i32
  }
  func.func @transform_4(%arg0: i32) -> (i32, i32) {
    %c0_i32 = arith.constant 0 : i32
    %c0_i32_0 = arith.constant 0 : i32
    return %arg0, %c0_i32 : i32, i32
  }
}

module attributes {stable_mosaic.version = 11 : i64} {
  func.func @_dw_kernel(%arg0: i32, %arg1: i32, %arg2: memref<1x4x8x8x128xbf16, #tpu.memory_space<vmem>>, %arg3: memref<3x3x3x128xf32, #tpu.memory_space<vmem>>, %arg4: memref<1x128xf32, #tpu.memory_space<vmem>>, %arg5: memref<1x128xf32, #tpu.memory_space<vmem>>, %arg6: memref<1x1x8x8x128xbf16, #tpu.memory_space<vmem>>, %arg7: memref<10x10x128xf32, #tpu.memory_space<vmem>>) attributes {dimension_semantics = [#tpu.dimension_semantics<parallel>, #tpu.dimension_semantics<parallel>], iteration_bounds = array<i64: 2, 4>, scalar_prefetch = 0 : i64, scratch_operands = 1 : i64, tpu.core_type = #tpu.core_type<tc>, window_params = [{transform_indices = @transform_0, window_bounds = array<i64: 1, 4, 8, 8, 128>}, {pipeline_mode = #tpu.pipeline_mode<synchronous>, transform_indices = @transform_1, window_bounds = array<i64: 3, 3, 3, 128>}, {pipeline_mode = #tpu.pipeline_mode<synchronous>, transform_indices = @transform_2, window_bounds = array<i64: 1, 128>}, {pipeline_mode = #tpu.pipeline_mode<synchronous>, transform_indices = @transform_3, window_bounds = array<i64: 1, 128>}, {transform_indices = @transform_4, window_bounds = array<i64: 1, 1, 8, 8, 128>}]} {
    %cst = arith.constant 0.000000e+00 : f32
    %0 = vector.broadcast %cst : f32 to vector<10x10x128xf32>
    %c0 = arith.constant 0 : index
    %c0_0 = arith.constant 0 : index
    %c0_1 = arith.constant 0 : index
    %1 = vector.load %arg7[%c0, %c0_0, %c0_1] : memref<10x10x128xf32, #tpu.memory_space<vmem>>, vector<10x10x128xf32>
    tpu.vector_store %arg7[%c0, %c0_0, %c0_1], %0 {strides = array<i32>} : memref<10x10x128xf32, #tpu.memory_space<vmem>>, vector<10x10x128xf32>,
    %cst_2 = arith.constant 0.000000e+00 : f32
    %2 = vector.broadcast %cst_2 : f32 to vector<8x8x128xf32>
    %c1_i32 = arith.constant 1 : i32
    %3 = arith.muli %c1_i32, %arg1 : i32
    %c0_i32 = arith.constant 0 : i32
    %4 = arith.addi %3, %c0_i32 : i32
    %c1_i32_3 = arith.constant 1 : i32
    %5 = arith.subi %4, %c1_i32_3 : i32
    %c0_i32_4 = arith.constant 0 : i32
    %c3_i32 = arith.constant 3 : i32
    %6 = arith.maxsi %c0_i32_4, %5 : i32
    %7 = arith.minsi %c3_i32, %6 : i32
    %c0_i32_5 = arith.constant 0 : i32
    %8 = arith.cmpi sge, %5, %c0_i32_5 : i32
    %c4_i32 = arith.constant 4 : i32
    %9 = arith.cmpi slt, %5, %c4_i32 : i32
    %10 = arith.andi %8, %9 : i1
    %11 = arith.extui %10 : i1 to i32
    %12 = arith.sitofp %11 : i32 to f32
    %c0_6 = arith.constant 0 : index
    %13 = arith.index_cast %7 : i32 to index
    %c0_7 = arith.constant 0 : index
    %c0_8 = arith.constant 0 : index
    %c0_9 = arith.constant 0 : index
    %14 = vector.load %arg2[%c0_6, %13, %c0_7, %c0_8, %c0_9] : memref<1x4x8x8x128xbf16, #tpu.memory_space<vmem>>, vector<1x1x8x8x128xbf16>
    %15 = vector.shape_cast %14 : vector<1x1x8x8x128xbf16> to vector<8x8x128xbf16>
    %16 = arith.extf %15 : vector<8x8x128xbf16> to vector<8x8x128xf32>
    %17 = vector.broadcast %12 : f32 to vector<8x8x128xf32>
    %18 = arith.mulf %16, %17 : vector<8x8x128xf32>
    %c1 = arith.constant 1 : index
    %c1_10 = arith.constant 1 : index
    %c0_11 = arith.constant 0 : index
    %19 = vector.load %arg7[%c1, %c1_10, %c0_11] : memref<10x10x128xf32, #tpu.memory_space<vmem>>, vector<8x8x128xf32>
    tpu.vector_store %arg7[%c1, %c1_10, %c0_11], %18 {strides = array<i32>} : memref<10x10x128xf32, #tpu.memory_space<vmem>>, vector<8x8x128xf32>,
    %c0_12 = arith.constant 0 : index
    %c0_13 = arith.constant 0 : index
    %c0_14 = arith.constant 0 : index
    %20 = vector.load %arg7[%c0_12, %c0_13, %c0_14] : memref<10x10x128xf32, #tpu.memory_space<vmem>>, vector<10x10x128xf32>
    %21 = vector.extract_strided_slice %20 {offsets = [0, 0, 0], sizes = [8, 8, 128], strides = [1, 1, 1]} : vector<10x10x128xf32> to vector<8x8x128xf32>
    %c0_15 = arith.constant 0 : index
    %c0_16 = arith.constant 0 : index
    %c0_17 = arith.constant 0 : index
    %c0_18 = arith.constant 0 : index
    %22 = vector.load %arg3[%c0_15, %c0_16, %c0_17, %c0_18] : memref<3x3x3x128xf32, #tpu.memory_space<vmem>>, vector<1x1x1x128xf32>
    %23 = vector.shape_cast %22 : vector<1x1x1x128xf32> to vector<128xf32>
    %24 = vector.shape_cast %23 : vector<128xf32> to vector<1x1x128xf32>
    %25 = vector.broadcast %24 : vector<1x1x128xf32> to vector<8x8x128xf32>
    %26 = arith.mulf %21, %25 : vector<8x8x128xf32>
    %27 = arith.addf %2, %26 : vector<8x8x128xf32>
    %28 = vector.extract_strided_slice %20 {offsets = [0, 1, 0], sizes = [8, 8, 128], strides = [1, 1, 1]} : vector<10x10x128xf32> to vector<8x8x128xf32>
    %c0_19 = arith.constant 0 : index
    %c0_20 = arith.constant 0 : index
    %c1_21 = arith.constant 1 : index
    %c0_22 = arith.constant 0 : index
    %29 = vector.load %arg3[%c0_19, %c0_20, %c1_21, %c0_22] : memref<3x3x3x128xf32, #tpu.memory_space<vmem>>, vector<1x1x1x128xf32>
    %30 = vector.shape_cast %29 : vector<1x1x1x128xf32> to vector<128xf32>
    %31 = vector.shape_cast %30 : vector<128xf32> to vector<1x1x128xf32>
    %32 = vector.broadcast %31 : vector<1x1x128xf32> to vector<8x8x128xf32>
    %33 = arith.mulf %28, %32 : vector<8x8x128xf32>
    %34 = arith.addf %27, %33 : vector<8x8x128xf32>
    %35 = vector.extract_strided_slice %20 {offsets = [0, 2, 0], sizes = [8, 8, 128], strides = [1, 1, 1]} : vector<10x10x128xf32> to vector<8x8x128xf32>
    %c0_23 = arith.constant 0 : index
    %c0_24 = arith.constant 0 : index
    %c2 = arith.constant 2 : index
    %c0_25 = arith.constant 0 : index
    %36 = vector.load %arg3[%c0_23, %c0_24, %c2, %c0_25] : memref<3x3x3x128xf32, #tpu.memory_space<vmem>>, vector<1x1x1x128xf32>
    %37 = vector.shape_cast %36 : vector<1x1x1x128xf32> to vector<128xf32>
    %38 = vector.shape_cast %37 : vector<128xf32> to vector<1x1x128xf32>
    %39 = vector.broadcast %38 : vector<1x1x128xf32> to vector<8x8x128xf32>
    %40 = arith.mulf %35, %39 : vector<8x8x128xf32>
    %41 = arith.addf %34, %40 : vector<8x8x128xf32>
    %42 = vector.extract_strided_slice %20 {offsets = [1, 0, 0], sizes = [8, 8, 128], strides = [1, 1, 1]} : vector<10x10x128xf32> to vector<8x8x128xf32>
    %c0_26 = arith.constant 0 : index
    %c1_27 = arith.constant 1 : index
    %c0_28 = arith.constant 0 : index
    %c0_29 = arith.constant 0 : index
    %43 = vector.load %arg3[%c0_26, %c1_27, %c0_28, %c0_29] : memref<3x3x3x128xf32, #tpu.memory_space<vmem>>, vector<1x1x1x128xf32>
    %44 = vector.shape_cast %43 : vector<1x1x1x128xf32> to vector<128xf32>
    %45 = vector.shape_cast %44 : vector<128xf32> to vector<1x1x128xf32>
    %46 = vector.broadcast %45 : vector<1x1x128xf32> to vector<8x8x128xf32>
    %47 = arith.mulf %42, %46 : vector<8x8x128xf32>
    %48 = arith.addf %41, %47 : vector<8x8x128xf32>
    %49 = vector.extract_strided_slice %20 {offsets = [1, 1, 0], sizes = [8, 8, 128], strides = [1, 1, 1]} : vector<10x10x128xf32> to vector<8x8x128xf32>
    %c0_30 = arith.constant 0 : index
    %c1_31 = arith.constant 1 : index
    %c1_32 = arith.constant 1 : index
    %c0_33 = arith.constant 0 : index
    %50 = vector.load %arg3[%c0_30, %c1_31, %c1_32, %c0_33] : memref<3x3x3x128xf32, #tpu.memory_space<vmem>>, vector<1x1x1x128xf32>
    %51 = vector.shape_cast %50 : vector<1x1x1x128xf32> to vector<128xf32>
    %52 = vector.shape_cast %51 : vector<128xf32> to vector<1x1x128xf32>
    %53 = vector.broadcast %52 : vector<1x1x128xf32> to vector<8x8x128xf32>
    %54 = arith.mulf %49, %53 : vector<8x8x128xf32>
    %55 = arith.addf %48, %54 : vector<8x8x128xf32>
    %56 = vector.extract_strided_slice %20 {offsets = [1, 2, 0], sizes = [8, 8, 128], strides = [1, 1, 1]} : vector<10x10x128xf32> to vector<8x8x128xf32>
    %c0_34 = arith.constant 0 : index
    %c1_35 = arith.constant 1 : index
    %c2_36 = arith.constant 2 : index
    %c0_37 = arith.constant 0 : index
    %57 = vector.load %arg3[%c0_34, %c1_35, %c2_36, %c0_37] : memref<3x3x3x128xf32, #tpu.memory_space<vmem>>, vector<1x1x1x128xf32>
    %58 = vector.shape_cast %57 : vector<1x1x1x128xf32> to vector<128xf32>
    %59 = vector.shape_cast %58 : vector<128xf32> to vector<1x1x128xf32>
    %60 = vector.broadcast %59 : vector<1x1x128xf32> to vector<8x8x128xf32>
    %61 = arith.mulf %56, %60 : vector<8x8x128xf32>
    %62 = arith.addf %55, %61 : vector<8x8x128xf32>
    %63 = vector.extract_strided_slice %20 {offsets = [2, 0, 0], sizes = [8, 8, 128], strides = [1, 1, 1]} : vector<10x10x128xf32> to vector<8x8x128xf32>
    %c0_38 = arith.constant 0 : index
    %c2_39 = arith.constant 2 : index
    %c0_40 = arith.constant 0 : index
    %c0_41 = arith.constant 0 : index
    %64 = vector.load %arg3[%c0_38, %c2_39, %c0_40, %c0_41] : memref<3x3x3x128xf32, #tpu.memory_space<vmem>>, vector<1x1x1x128xf32>
    %65 = vector.shape_cast %64 : vector<1x1x1x128xf32> to vector<128xf32>
    %66 = vector.shape_cast %65 : vector<128xf32> to vector<1x1x128xf32>
    %67 = vector.broadcast %66 : vector<1x1x128xf32> to vector<8x8x128xf32>
    %68 = arith.mulf %63, %67 : vector<8x8x128xf32>
    %69 = arith.addf %62, %68 : vector<8x8x128xf32>
    %70 = vector.extract_strided_slice %20 {offsets = [2, 1, 0], sizes = [8, 8, 128], strides = [1, 1, 1]} : vector<10x10x128xf32> to vector<8x8x128xf32>
    %c0_42 = arith.constant 0 : index
    %c2_43 = arith.constant 2 : index
    %c1_44 = arith.constant 1 : index
    %c0_45 = arith.constant 0 : index
    %71 = vector.load %arg3[%c0_42, %c2_43, %c1_44, %c0_45] : memref<3x3x3x128xf32, #tpu.memory_space<vmem>>, vector<1x1x1x128xf32>
    %72 = vector.shape_cast %71 : vector<1x1x1x128xf32> to vector<128xf32>
    %73 = vector.shape_cast %72 : vector<128xf32> to vector<1x1x128xf32>
    %74 = vector.broadcast %73 : vector<1x1x128xf32> to vector<8x8x128xf32>
    %75 = arith.mulf %70, %74 : vector<8x8x128xf32>
    %76 = arith.addf %69, %75 : vector<8x8x128xf32>
    %77 = vector.extract_strided_slice %20 {offsets = [2, 2, 0], sizes = [8, 8, 128], strides = [1, 1, 1]} : vector<10x10x128xf32> to vector<8x8x128xf32>
    %c0_46 = arith.constant 0 : index
    %c2_47 = arith.constant 2 : index
    %c2_48 = arith.constant 2 : index
    %c0_49 = arith.constant 0 : index
    %78 = vector.load %arg3[%c0_46, %c2_47, %c2_48, %c0_49] : memref<3x3x3x128xf32, #tpu.memory_space<vmem>>, vector<1x1x1x128xf32>
    %79 = vector.shape_cast %78 : vector<1x1x1x128xf32> to vector<128xf32>
    %80 = vector.shape_cast %79 : vector<128xf32> to vector<1x1x128xf32>
    %81 = vector.broadcast %80 : vector<1x1x128xf32> to vector<8x8x128xf32>
    %82 = arith.mulf %77, %81 : vector<8x8x128xf32>
    %83 = arith.addf %76, %82 : vector<8x8x128xf32>
    %c1_i32_50 = arith.constant 1 : i32
    %84 = arith.muli %c1_i32_50, %arg1 : i32
    %c1_i32_51 = arith.constant 1 : i32
    %85 = arith.addi %84, %c1_i32_51 : i32
    %c1_i32_52 = arith.constant 1 : i32
    %86 = arith.subi %85, %c1_i32_52 : i32
    %c0_i32_53 = arith.constant 0 : i32
    %c3_i32_54 = arith.constant 3 : i32
    %87 = arith.maxsi %c0_i32_53, %86 : i32
    %88 = arith.minsi %c3_i32_54, %87 : i32
    %c0_i32_55 = arith.constant 0 : i32
    %89 = arith.cmpi sge, %86, %c0_i32_55 : i32
    %c4_i32_56 = arith.constant 4 : i32
    %90 = arith.cmpi slt, %86, %c4_i32_56 : i32
    %91 = arith.andi %89, %90 : i1
    %92 = arith.extui %91 : i1 to i32
    %93 = arith.sitofp %92 : i32 to f32
    %c0_57 = arith.constant 0 : index
    %94 = arith.index_cast %88 : i32 to index
    %c0_58 = arith.constant 0 : index
    %c0_59 = arith.constant 0 : index
    %c0_60 = arith.constant 0 : index
    %95 = vector.load %arg2[%c0_57, %94, %c0_58, %c0_59, %c0_60] : memref<1x4x8x8x128xbf16, #tpu.memory_space<vmem>>, vector<1x1x8x8x128xbf16>
    %96 = vector.shape_cast %95 : vector<1x1x8x8x128xbf16> to vector<8x8x128xbf16>
    %97 = arith.extf %96 : vector<8x8x128xbf16> to vector<8x8x128xf32>
    %98 = vector.broadcast %93 : f32 to vector<8x8x128xf32>
    %99 = arith.mulf %97, %98 : vector<8x8x128xf32>
    %c1_61 = arith.constant 1 : index
    %c1_62 = arith.constant 1 : index
    %c0_63 = arith.constant 0 : index
    %100 = vector.load %arg7[%c1_61, %c1_62, %c0_63] : memref<10x10x128xf32, #tpu.memory_space<vmem>>, vector<8x8x128xf32>
    tpu.vector_store %arg7[%c1_61, %c1_62, %c0_63], %99 {strides = array<i32>} : memref<10x10x128xf32, #tpu.memory_space<vmem>>, vector<8x8x128xf32>,
    %c0_64 = arith.constant 0 : index
    %c0_65 = arith.constant 0 : index
    %c0_66 = arith.constant 0 : index
    %101 = vector.load %arg7[%c0_64, %c0_65, %c0_66] : memref<10x10x128xf32, #tpu.memory_space<vmem>>, vector<10x10x128xf32>
    %102 = vector.extract_strided_slice %101 {offsets = [0, 0, 0], sizes = [8, 8, 128], strides = [1, 1, 1]} : vector<10x10x128xf32> to vector<8x8x128xf32>
    %c1_67 = arith.constant 1 : index
    %c0_68 = arith.constant 0 : index
    %c0_69 = arith.constant 0 : index
    %c0_70 = arith.constant 0 : index
    %103 = vector.load %arg3[%c1_67, %c0_68, %c0_69, %c0_70] : memref<3x3x3x128xf32, #tpu.memory_space<vmem>>, vector<1x1x1x128xf32>
    %104 = vector.shape_cast %103 : vector<1x1x1x128xf32> to vector<128xf32>
    %105 = vector.shape_cast %104 : vector<128xf32> to vector<1x1x128xf32>
    %106 = vector.broadcast %105 : vector<1x1x128xf32> to vector<8x8x128xf32>
    %107 = arith.mulf %102, %106 : vector<8x8x128xf32>
    %108 = arith.addf %83, %107 : vector<8x8x128xf32>
    %109 = vector.extract_strided_slice %101 {offsets = [0, 1, 0], sizes = [8, 8, 128], strides = [1, 1, 1]} : vector<10x10x128xf32> to vector<8x8x128xf32>
    %c1_71 = arith.constant 1 : index
    %c0_72 = arith.constant 0 : index
    %c1_73 = arith.constant 1 : index
    %c0_74 = arith.constant 0 : index
    %110 = vector.load %arg3[%c1_71, %c0_72, %c1_73, %c0_74] : memref<3x3x3x128xf32, #tpu.memory_space<vmem>>, vector<1x1x1x128xf32>
    %111 = vector.shape_cast %110 : vector<1x1x1x128xf32> to vector<128xf32>
    %112 = vector.shape_cast %111 : vector<128xf32> to vector<1x1x128xf32>
    %113 = vector.broadcast %112 : vector<1x1x128xf32> to vector<8x8x128xf32>
    %114 = arith.mulf %109, %113 : vector<8x8x128xf32>
    %115 = arith.addf %108, %114 : vector<8x8x128xf32>
    %116 = vector.extract_strided_slice %101 {offsets = [0, 2, 0], sizes = [8, 8, 128], strides = [1, 1, 1]} : vector<10x10x128xf32> to vector<8x8x128xf32>
    %c1_75 = arith.constant 1 : index
    %c0_76 = arith.constant 0 : index
    %c2_77 = arith.constant 2 : index
    %c0_78 = arith.constant 0 : index
    %117 = vector.load %arg3[%c1_75, %c0_76, %c2_77, %c0_78] : memref<3x3x3x128xf32, #tpu.memory_space<vmem>>, vector<1x1x1x128xf32>
    %118 = vector.shape_cast %117 : vector<1x1x1x128xf32> to vector<128xf32>
    %119 = vector.shape_cast %118 : vector<128xf32> to vector<1x1x128xf32>
    %120 = vector.broadcast %119 : vector<1x1x128xf32> to vector<8x8x128xf32>
    %121 = arith.mulf %116, %120 : vector<8x8x128xf32>
    %122 = arith.addf %115, %121 : vector<8x8x128xf32>
    %123 = vector.extract_strided_slice %101 {offsets = [1, 0, 0], sizes = [8, 8, 128], strides = [1, 1, 1]} : vector<10x10x128xf32> to vector<8x8x128xf32>
    %c1_79 = arith.constant 1 : index
    %c1_80 = arith.constant 1 : index
    %c0_81 = arith.constant 0 : index
    %c0_82 = arith.constant 0 : index
    %124 = vector.load %arg3[%c1_79, %c1_80, %c0_81, %c0_82] : memref<3x3x3x128xf32, #tpu.memory_space<vmem>>, vector<1x1x1x128xf32>
    %125 = vector.shape_cast %124 : vector<1x1x1x128xf32> to vector<128xf32>
    %126 = vector.shape_cast %125 : vector<128xf32> to vector<1x1x128xf32>
    %127 = vector.broadcast %126 : vector<1x1x128xf32> to vector<8x8x128xf32>
    %128 = arith.mulf %123, %127 : vector<8x8x128xf32>
    %129 = arith.addf %122, %128 : vector<8x8x128xf32>
    %130 = vector.extract_strided_slice %101 {offsets = [1, 1, 0], sizes = [8, 8, 128], strides = [1, 1, 1]} : vector<10x10x128xf32> to vector<8x8x128xf32>
    %c1_83 = arith.constant 1 : index
    %c1_84 = arith.constant 1 : index
    %c1_85 = arith.constant 1 : index
    %c0_86 = arith.constant 0 : index
    %131 = vector.load %arg3[%c1_83, %c1_84, %c1_85, %c0_86] : memref<3x3x3x128xf32, #tpu.memory_space<vmem>>, vector<1x1x1x128xf32>
    %132 = vector.shape_cast %131 : vector<1x1x1x128xf32> to vector<128xf32>
    %133 = vector.shape_cast %132 : vector<128xf32> to vector<1x1x128xf32>
    %134 = vector.broadcast %133 : vector<1x1x128xf32> to vector<8x8x128xf32>
    %135 = arith.mulf %130, %134 : vector<8x8x128xf32>
    %136 = arith.addf %129, %135 : vector<8x8x128xf32>
    %137 = vector.extract_strided_slice %101 {offsets = [1, 2, 0], sizes = [8, 8, 128], strides = [1, 1, 1]} : vector<10x10x128xf32> to vector<8x8x128xf32>
    %c1_87 = arith.constant 1 : index
    %c1_88 = arith.constant 1 : index
    %c2_89 = arith.constant 2 : index
    %c0_90 = arith.constant 0 : index
    %138 = vector.load %arg3[%c1_87, %c1_88, %c2_89, %c0_90] : memref<3x3x3x128xf32, #tpu.memory_space<vmem>>, vector<1x1x1x128xf32>
    %139 = vector.shape_cast %138 : vector<1x1x1x128xf32> to vector<128xf32>
    %140 = vector.shape_cast %139 : vector<128xf32> to vector<1x1x128xf32>
    %141 = vector.broadcast %140 : vector<1x1x128xf32> to vector<8x8x128xf32>
    %142 = arith.mulf %137, %141 : vector<8x8x128xf32>
    %143 = arith.addf %136, %142 : vector<8x8x128xf32>
    %144 = vector.extract_strided_slice %101 {offsets = [2, 0, 0], sizes = [8, 8, 128], strides = [1, 1, 1]} : vector<10x10x128xf32> to vector<8x8x128xf32>
    %c1_91 = arith.constant 1 : index
    %c2_92 = arith.constant 2 : index
    %c0_93 = arith.constant 0 : index
    %c0_94 = arith.constant 0 : index
    %145 = vector.load %arg3[%c1_91, %c2_92, %c0_93, %c0_94] : memref<3x3x3x128xf32, #tpu.memory_space<vmem>>, vector<1x1x1x128xf32>
    %146 = vector.shape_cast %145 : vector<1x1x1x128xf32> to vector<128xf32>
    %147 = vector.shape_cast %146 : vector<128xf32> to vector<1x1x128xf32>
    %148 = vector.broadcast %147 : vector<1x1x128xf32> to vector<8x8x128xf32>
    %149 = arith.mulf %144, %148 : vector<8x8x128xf32>
    %150 = arith.addf %143, %149 : vector<8x8x128xf32>
    %151 = vector.extract_strided_slice %101 {offsets = [2, 1, 0], sizes = [8, 8, 128], strides = [1, 1, 1]} : vector<10x10x128xf32> to vector<8x8x128xf32>
    %c1_95 = arith.constant 1 : index
    %c2_96 = arith.constant 2 : index
    %c1_97 = arith.constant 1 : index
    %c0_98 = arith.constant 0 : index
    %152 = vector.load %arg3[%c1_95, %c2_96, %c1_97, %c0_98] : memref<3x3x3x128xf32, #tpu.memory_space<vmem>>, vector<1x1x1x128xf32>
    %153 = vector.shape_cast %152 : vector<1x1x1x128xf32> to vector<128xf32>
    %154 = vector.shape_cast %153 : vector<128xf32> to vector<1x1x128xf32>
    %155 = vector.broadcast %154 : vector<1x1x128xf32> to vector<8x8x128xf32>
    %156 = arith.mulf %151, %155 : vector<8x8x128xf32>
    %157 = arith.addf %150, %156 : vector<8x8x128xf32>
    %158 = vector.extract_strided_slice %101 {offsets = [2, 2, 0], sizes = [8, 8, 128], strides = [1, 1, 1]} : vector<10x10x128xf32> to vector<8x8x128xf32>
    %c1_99 = arith.constant 1 : index
    %c2_100 = arith.constant 2 : index
    %c2_101 = arith.constant 2 : index
    %c0_102 = arith.constant 0 : index
    %159 = vector.load %arg3[%c1_99, %c2_100, %c2_101, %c0_102] : memref<3x3x3x128xf32, #tpu.memory_space<vmem>>, vector<1x1x1x128xf32>
    %160 = vector.shape_cast %159 : vector<1x1x1x128xf32> to vector<128xf32>
    %161 = vector.shape_cast %160 : vector<128xf32> to vector<1x1x128xf32>
    %162 = vector.broadcast %161 : vector<1x1x128xf32> to vector<8x8x128xf32>
    %163 = arith.mulf %158, %162 : vector<8x8x128xf32>
    %164 = arith.addf %157, %163 : vector<8x8x128xf32>
    %c1_i32_103 = arith.constant 1 : i32
    %165 = arith.muli %c1_i32_103, %arg1 : i32
    %c2_i32 = arith.constant 2 : i32
    %166 = arith.addi %165, %c2_i32 : i32
    %c1_i32_104 = arith.constant 1 : i32
    %167 = arith.subi %166, %c1_i32_104 : i32
    %c0_i32_105 = arith.constant 0 : i32
    %c3_i32_106 = arith.constant 3 : i32
    %168 = arith.maxsi %c0_i32_105, %167 : i32
    %169 = arith.minsi %c3_i32_106, %168 : i32
    %c0_i32_107 = arith.constant 0 : i32
    %170 = arith.cmpi sge, %167, %c0_i32_107 : i32
    %c4_i32_108 = arith.constant 4 : i32
    %171 = arith.cmpi slt, %167, %c4_i32_108 : i32
    %172 = arith.andi %170, %171 : i1
    %173 = arith.extui %172 : i1 to i32
    %174 = arith.sitofp %173 : i32 to f32
    %c0_109 = arith.constant 0 : index
    %175 = arith.index_cast %169 : i32 to index
    %c0_110 = arith.constant 0 : index
    %c0_111 = arith.constant 0 : index
    %c0_112 = arith.constant 0 : index
    %176 = vector.load %arg2[%c0_109, %175, %c0_110, %c0_111, %c0_112] : memref<1x4x8x8x128xbf16, #tpu.memory_space<vmem>>, vector<1x1x8x8x128xbf16>
    %177 = vector.shape_cast %176 : vector<1x1x8x8x128xbf16> to vector<8x8x128xbf16>
    %178 = arith.extf %177 : vector<8x8x128xbf16> to vector<8x8x128xf32>
    %179 = vector.broadcast %174 : f32 to vector<8x8x128xf32>
    %180 = arith.mulf %178, %179 : vector<8x8x128xf32>
    %c1_113 = arith.constant 1 : index
    %c1_114 = arith.constant 1 : index
    %c0_115 = arith.constant 0 : index
    %181 = vector.load %arg7[%c1_113, %c1_114, %c0_115] : memref<10x10x128xf32, #tpu.memory_space<vmem>>, vector<8x8x128xf32>
    tpu.vector_store %arg7[%c1_113, %c1_114, %c0_115], %180 {strides = array<i32>} : memref<10x10x128xf32, #tpu.memory_space<vmem>>, vector<8x8x128xf32>,
    %c0_116 = arith.constant 0 : index
    %c0_117 = arith.constant 0 : index
    %c0_118 = arith.constant 0 : index
    %182 = vector.load %arg7[%c0_116, %c0_117, %c0_118] : memref<10x10x128xf32, #tpu.memory_space<vmem>>, vector<10x10x128xf32>
    %183 = vector.extract_strided_slice %182 {offsets = [0, 0, 0], sizes = [8, 8, 128], strides = [1, 1, 1]} : vector<10x10x128xf32> to vector<8x8x128xf32>
    %c2_119 = arith.constant 2 : index
    %c0_120 = arith.constant 0 : index
    %c0_121 = arith.constant 0 : index
    %c0_122 = arith.constant 0 : index
    %184 = vector.load %arg3[%c2_119, %c0_120, %c0_121, %c0_122] : memref<3x3x3x128xf32, #tpu.memory_space<vmem>>, vector<1x1x1x128xf32>
    %185 = vector.shape_cast %184 : vector<1x1x1x128xf32> to vector<128xf32>
    %186 = vector.shape_cast %185 : vector<128xf32> to vector<1x1x128xf32>
    %187 = vector.broadcast %186 : vector<1x1x128xf32> to vector<8x8x128xf32>
    %188 = arith.mulf %183, %187 : vector<8x8x128xf32>
    %189 = arith.addf %164, %188 : vector<8x8x128xf32>
    %190 = vector.extract_strided_slice %182 {offsets = [0, 1, 0], sizes = [8, 8, 128], strides = [1, 1, 1]} : vector<10x10x128xf32> to vector<8x8x128xf32>
    %c2_123 = arith.constant 2 : index
    %c0_124 = arith.constant 0 : index
    %c1_125 = arith.constant 1 : index
    %c0_126 = arith.constant 0 : index
    %191 = vector.load %arg3[%c2_123, %c0_124, %c1_125, %c0_126] : memref<3x3x3x128xf32, #tpu.memory_space<vmem>>, vector<1x1x1x128xf32>
    %192 = vector.shape_cast %191 : vector<1x1x1x128xf32> to vector<128xf32>
    %193 = vector.shape_cast %192 : vector<128xf32> to vector<1x1x128xf32>
    %194 = vector.broadcast %193 : vector<1x1x128xf32> to vector<8x8x128xf32>
    %195 = arith.mulf %190, %194 : vector<8x8x128xf32>
    %196 = arith.addf %189, %195 : vector<8x8x128xf32>
    %197 = vector.extract_strided_slice %182 {offsets = [0, 2, 0], sizes = [8, 8, 128], strides = [1, 1, 1]} : vector<10x10x128xf32> to vector<8x8x128xf32>
    %c2_127 = arith.constant 2 : index
    %c0_128 = arith.constant 0 : index
    %c2_129 = arith.constant 2 : index
    %c0_130 = arith.constant 0 : index
    %198 = vector.load %arg3[%c2_127, %c0_128, %c2_129, %c0_130] : memref<3x3x3x128xf32, #tpu.memory_space<vmem>>, vector<1x1x1x128xf32>
    %199 = vector.shape_cast %198 : vector<1x1x1x128xf32> to vector<128xf32>
    %200 = vector.shape_cast %199 : vector<128xf32> to vector<1x1x128xf32>
    %201 = vector.broadcast %200 : vector<1x1x128xf32> to vector<8x8x128xf32>
    %202 = arith.mulf %197, %201 : vector<8x8x128xf32>
    %203 = arith.addf %196, %202 : vector<8x8x128xf32>
    %204 = vector.extract_strided_slice %182 {offsets = [1, 0, 0], sizes = [8, 8, 128], strides = [1, 1, 1]} : vector<10x10x128xf32> to vector<8x8x128xf32>
    %c2_131 = arith.constant 2 : index
    %c1_132 = arith.constant 1 : index
    %c0_133 = arith.constant 0 : index
    %c0_134 = arith.constant 0 : index
    %205 = vector.load %arg3[%c2_131, %c1_132, %c0_133, %c0_134] : memref<3x3x3x128xf32, #tpu.memory_space<vmem>>, vector<1x1x1x128xf32>
    %206 = vector.shape_cast %205 : vector<1x1x1x128xf32> to vector<128xf32>
    %207 = vector.shape_cast %206 : vector<128xf32> to vector<1x1x128xf32>
    %208 = vector.broadcast %207 : vector<1x1x128xf32> to vector<8x8x128xf32>
    %209 = arith.mulf %204, %208 : vector<8x8x128xf32>
    %210 = arith.addf %203, %209 : vector<8x8x128xf32>
    %211 = vector.extract_strided_slice %182 {offsets = [1, 1, 0], sizes = [8, 8, 128], strides = [1, 1, 1]} : vector<10x10x128xf32> to vector<8x8x128xf32>
    %c2_135 = arith.constant 2 : index
    %c1_136 = arith.constant 1 : index
    %c1_137 = arith.constant 1 : index
    %c0_138 = arith.constant 0 : index
    %212 = vector.load %arg3[%c2_135, %c1_136, %c1_137, %c0_138] : memref<3x3x3x128xf32, #tpu.memory_space<vmem>>, vector<1x1x1x128xf32>
    %213 = vector.shape_cast %212 : vector<1x1x1x128xf32> to vector<128xf32>
    %214 = vector.shape_cast %213 : vector<128xf32> to vector<1x1x128xf32>
    %215 = vector.broadcast %214 : vector<1x1x128xf32> to vector<8x8x128xf32>
    %216 = arith.mulf %211, %215 : vector<8x8x128xf32>
    %217 = arith.addf %210, %216 : vector<8x8x128xf32>
    %218 = vector.extract_strided_slice %182 {offsets = [1, 2, 0], sizes = [8, 8, 128], strides = [1, 1, 1]} : vector<10x10x128xf32> to vector<8x8x128xf32>
    %c2_139 = arith.constant 2 : index
    %c1_140 = arith.constant 1 : index
    %c2_141 = arith.constant 2 : index
    %c0_142 = arith.constant 0 : index
    %219 = vector.load %arg3[%c2_139, %c1_140, %c2_141, %c0_142] : memref<3x3x3x128xf32, #tpu.memory_space<vmem>>, vector<1x1x1x128xf32>
    %220 = vector.shape_cast %219 : vector<1x1x1x128xf32> to vector<128xf32>
    %221 = vector.shape_cast %220 : vector<128xf32> to vector<1x1x128xf32>
    %222 = vector.broadcast %221 : vector<1x1x128xf32> to vector<8x8x128xf32>
    %223 = arith.mulf %218, %222 : vector<8x8x128xf32>
    %224 = arith.addf %217, %223 : vector<8x8x128xf32>
    %225 = vector.extract_strided_slice %182 {offsets = [2, 0, 0], sizes = [8, 8, 128], strides = [1, 1, 1]} : vector<10x10x128xf32> to vector<8x8x128xf32>
    %c2_143 = arith.constant 2 : index
    %c2_144 = arith.constant 2 : index
    %c0_145 = arith.constant 0 : index
    %c0_146 = arith.constant 0 : index
    %226 = vector.load %arg3[%c2_143, %c2_144, %c0_145, %c0_146] : memref<3x3x3x128xf32, #tpu.memory_space<vmem>>, vector<1x1x1x128xf32>
    %227 = vector.shape_cast %226 : vector<1x1x1x128xf32> to vector<128xf32>
    %228 = vector.shape_cast %227 : vector<128xf32> to vector<1x1x128xf32>
    %229 = vector.broadcast %228 : vector<1x1x128xf32> to vector<8x8x128xf32>
    %230 = arith.mulf %225, %229 : vector<8x8x128xf32>
    %231 = arith.addf %224, %230 : vector<8x8x128xf32>
    %232 = vector.extract_strided_slice %182 {offsets = [2, 1, 0], sizes = [8, 8, 128], strides = [1, 1, 1]} : vector<10x10x128xf32> to vector<8x8x128xf32>
    %c2_147 = arith.constant 2 : index
    %c2_148 = arith.constant 2 : index
    %c1_149 = arith.constant 1 : index
    %c0_150 = arith.constant 0 : index
    %233 = vector.load %arg3[%c2_147, %c2_148, %c1_149, %c0_150] : memref<3x3x3x128xf32, #tpu.memory_space<vmem>>, vector<1x1x1x128xf32>
    %234 = vector.shape_cast %233 : vector<1x1x1x128xf32> to vector<128xf32>
    %235 = vector.shape_cast %234 : vector<128xf32> to vector<1x1x128xf32>
    %236 = vector.broadcast %235 : vector<1x1x128xf32> to vector<8x8x128xf32>
    %237 = arith.mulf %232, %236 : vector<8x8x128xf32>
    %238 = arith.addf %231, %237 : vector<8x8x128xf32>
    %239 = vector.extract_strided_slice %182 {offsets = [2, 2, 0], sizes = [8, 8, 128], strides = [1, 1, 1]} : vector<10x10x128xf32> to vector<8x8x128xf32>
    %c2_151 = arith.constant 2 : index
    %c2_152 = arith.constant 2 : index
    %c2_153 = arith.constant 2 : index
    %c0_154 = arith.constant 0 : index
    %240 = vector.load %arg3[%c2_151, %c2_152, %c2_153, %c0_154] : memref<3x3x3x128xf32, #tpu.memory_space<vmem>>, vector<1x1x1x128xf32>
    %241 = vector.shape_cast %240 : vector<1x1x1x128xf32> to vector<128xf32>
    %242 = vector.shape_cast %241 : vector<128xf32> to vector<1x1x128xf32>
    %243 = vector.broadcast %242 : vector<1x1x128xf32> to vector<8x8x128xf32>
    %244 = arith.mulf %239, %243 : vector<8x8x128xf32>
    %245 = arith.addf %238, %244 : vector<8x8x128xf32>
    %c0_155 = arith.constant 0 : index
    %c0_156 = arith.constant 0 : index
    %246 = vector.load %arg4[%c0_155, %c0_156] : memref<1x128xf32, #tpu.memory_space<vmem>>, vector<1x128xf32>
    %247 = vector.shape_cast %246 : vector<1x128xf32> to vector<1x1x128xf32>
    %248 = vector.broadcast %247 : vector<1x1x128xf32> to vector<8x8x128xf32>
    %249 = arith.mulf %245, %248 : vector<8x8x128xf32>
    %c0_157 = arith.constant 0 : index
    %c0_158 = arith.constant 0 : index
    %250 = vector.load %arg5[%c0_157, %c0_158] : memref<1x128xf32, #tpu.memory_space<vmem>>, vector<1x128xf32>
    %251 = vector.shape_cast %250 : vector<1x128xf32> to vector<1x1x128xf32>
    %252 = vector.broadcast %251 : vector<1x1x128xf32> to vector<8x8x128xf32>
    %253 = arith.addf %249, %252 : vector<8x8x128xf32>
    %254 = vector.shape_cast %253 : vector<8x8x128xf32> to vector<1x1x8x8x128xf32>
    %255 = arith.truncf %254 : vector<1x1x8x8x128xf32> to vector<1x1x8x8x128xbf16>
    %c0_159 = arith.constant 0 : index
    %c0_160 = arith.constant 0 : index
    %c0_161 = arith.constant 0 : index
    %c0_162 = arith.constant 0 : index
    %c0_163 = arith.constant 0 : index
    %256 = vector.load %arg6[%c0_159, %c0_160, %c0_161, %c0_162, %c0_163] : memref<1x1x8x8x128xbf16, #tpu.memory_space<vmem>>, vector<1x1x8x8x128xbf16>
    tpu.vector_store %arg6[%c0_159, %c0_160, %c0_161, %c0_162, %c0_163], %255 {strides = array<i32>} : memref<1x1x8x8x128xbf16, #tpu.memory_space<vmem>>, vector<1x1x8x8x128xbf16>,
    return
  }
  func.func @transform_0(%arg0: i32, %arg1: i32) -> (i32, i32, i32, i32, i32) {
    %c0_i32 = arith.constant 0 : i32
    %c0_i32_0 = arith.constant 0 : i32
    %c0_i32_1 = arith.constant 0 : i32
    %c0_i32_2 = arith.constant 0 : i32
    %c0_i32_3 = arith.constant 0 : i32
    return %arg0, %c0_i32, %c0_i32_0, %c0_i32_1, %c0_i32_2 : i32, i32, i32, i32, i32
  }
  func.func @transform_1(%arg0: i32, %arg1: i32) -> (i32, i32, i32, i32) {
    %c0_i32 = arith.constant 0 : i32
    %c0_i32_0 = arith.constant 0 : i32
    %c0_i32_1 = arith.constant 0 : i32
    %c0_i32_2 = arith.constant 0 : i32
    %c0_i32_3 = arith.constant 0 : i32
    return %c0_i32, %c0_i32_0, %c0_i32_1, %c0_i32_2 : i32, i32, i32, i32
  }
  func.func @transform_2(%arg0: i32, %arg1: i32) -> (i32, i32) {
    %c0_i32 = arith.constant 0 : i32
    %c0_i32_0 = arith.constant 0 : i32
    %c0_i32_1 = arith.constant 0 : i32
    return %c0_i32, %c0_i32_0 : i32, i32
  }
  func.func @transform_3(%arg0: i32, %arg1: i32) -> (i32, i32) {
    %c0_i32 = arith.constant 0 : i32
    %c0_i32_0 = arith.constant 0 : i32
    %c0_i32_1 = arith.constant 0 : i32
    return %c0_i32, %c0_i32_0 : i32, i32
  }
  func.func @transform_4(%arg0: i32, %arg1: i32) -> (i32, i32, i32, i32, i32) {
    %c0_i32 = arith.constant 0 : i32
    %c0_i32_0 = arith.constant 0 : i32
    %c0_i32_1 = arith.constant 0 : i32
    %c0_i32_2 = arith.constant 0 : i32
    return %arg0, %arg1, %c0_i32, %c0_i32_0, %c0_i32_1 : i32, i32, i32, i32, i32
  }
}

module attributes {stable_mosaic.version = 11 : i64} {
  func.func @_pw_kernel(%arg0: i32, %arg1: memref<256x128xbf16, #tpu.memory_space<vmem>>, %arg2: memref<128x128xbf16, #tpu.memory_space<vmem>>, %arg3: memref<1x128xf32, #tpu.memory_space<vmem>>, %arg4: memref<1x128xf32, #tpu.memory_space<vmem>>, %arg5: memref<256x128xbf16, #tpu.memory_space<vmem>>, %arg6: memref<256x128xf32, #tpu.memory_space<vmem>>) attributes {dimension_semantics = [#tpu.dimension_semantics<parallel>], iteration_bounds = array<i64: 2>, scalar_prefetch = 0 : i64, scratch_operands = 0 : i64, tpu.core_type = #tpu.core_type<tc>, window_params = [{transform_indices = @transform_0, window_bounds = array<i64: 256, 128>}, {pipeline_mode = #tpu.pipeline_mode<synchronous>, transform_indices = @transform_1, window_bounds = array<i64: 128, 128>}, {pipeline_mode = #tpu.pipeline_mode<synchronous>, transform_indices = @transform_2, window_bounds = array<i64: 1, 128>}, {pipeline_mode = #tpu.pipeline_mode<synchronous>, transform_indices = @transform_3, window_bounds = array<i64: 1, 128>}, {transform_indices = @transform_4, window_bounds = array<i64: 256, 128>}, {transform_indices = @transform_5, window_bounds = array<i64: 256, 128>}]} {
    %c0 = arith.constant 0 : index
    %c0_0 = arith.constant 0 : index
    %0 = vector.load %arg1[%c0, %c0_0] : memref<256x128xbf16, #tpu.memory_space<vmem>>, vector<256x128xbf16>
    %c0_1 = arith.constant 0 : index
    %c0_2 = arith.constant 0 : index
    %1 = vector.load %arg2[%c0_1, %c0_2] : memref<128x128xbf16, #tpu.memory_space<vmem>>, vector<128x128xbf16>
    %cst = arith.constant dense<0.000000e+00> : vector<256x128xf32>
    %2 = tpu.matmul %0, %1, %cst {dimension_numbers = #tpu.dot_dimension_numbers<[1], [0], [0], [1], [0, 0, 1, 1], [], []>} : vector<256x128xbf16>, vector<128x128xbf16>, vector<256x128xf32> -> vector<256x128xf32>
    %c0_3 = arith.constant 0 : index
    %c0_4 = arith.constant 0 : index
    %3 = vector.load %arg3[%c0_3, %c0_4] : memref<1x128xf32, #tpu.memory_space<vmem>>, vector<1x128xf32>
    %4 = vector.broadcast %3 : vector<1x128xf32> to vector<256x128xf32>
    %5 = arith.mulf %2, %4 : vector<256x128xf32>
    %c0_5 = arith.constant 0 : index
    %c0_6 = arith.constant 0 : index
    %6 = vector.load %arg4[%c0_5, %c0_6] : memref<1x128xf32, #tpu.memory_space<vmem>>, vector<1x128xf32>
    %7 = vector.broadcast %6 : vector<1x128xf32> to vector<256x128xf32>
    %8 = arith.addf %5, %7 : vector<256x128xf32>
    %c0_7 = arith.constant 0 : index
    %c0_8 = arith.constant 0 : index
    %9 = vector.load %arg5[%c0_7, %c0_8] : memref<256x128xbf16, #tpu.memory_space<vmem>>, vector<256x128xbf16>
    %10 = arith.extf %9 : vector<256x128xbf16> to vector<256x128xf32>
    %11 = arith.addf %8, %10 : vector<256x128xf32>
    %cst_9 = arith.constant 0.000000e+00 : f32
    %12 = vector.broadcast %cst_9 : f32 to vector<256x128xf32>
    %13 = arith.maximumf %11, %12 : vector<256x128xf32>
    %c0_10 = arith.constant 0 : index
    %c0_11 = arith.constant 0 : index
    %14 = vector.load %arg6[%c0_10, %c0_11] : memref<256x128xf32, #tpu.memory_space<vmem>>, vector<256x128xf32>
    tpu.vector_store %arg6[%c0_10, %c0_11], %13 {strides = array<i32>} : memref<256x128xf32, #tpu.memory_space<vmem>>, vector<256x128xf32>,
    return
  }
  func.func @transform_0(%arg0: i32) -> (i32, i32) {
    %c0_i32 = arith.constant 0 : i32
    %c0_i32_0 = arith.constant 0 : i32
    return %arg0, %c0_i32 : i32, i32
  }
  func.func @transform_1(%arg0: i32) -> (i32, i32) {
    %c0_i32 = arith.constant 0 : i32
    %c0_i32_0 = arith.constant 0 : i32
    %c0_i32_1 = arith.constant 0 : i32
    return %c0_i32, %c0_i32_0 : i32, i32
  }
  func.func @transform_2(%arg0: i32) -> (i32, i32) {
    %c0_i32 = arith.constant 0 : i32
    %c0_i32_0 = arith.constant 0 : i32
    %c0_i32_1 = arith.constant 0 : i32
    return %c0_i32, %c0_i32_0 : i32, i32
  }
  func.func @transform_3(%arg0: i32) -> (i32, i32) {
    %c0_i32 = arith.constant 0 : i32
    %c0_i32_0 = arith.constant 0 : i32
    %c0_i32_1 = arith.constant 0 : i32
    return %c0_i32, %c0_i32_0 : i32, i32
  }
  func.func @transform_4(%arg0: i32) -> (i32, i32) {
    %c0_i32 = arith.constant 0 : i32
    %c0_i32_0 = arith.constant 0 : i32
    return %arg0, %c0_i32 : i32, i32
  }
  func.func @transform_5(%arg0: i32) -> (i32, i32) {
    %c0_i32 = arith.constant 0 : i32
    %c0_i32_0 = arith.constant 0 : i32
    return %arg0, %c0_i32 : i32, i32
  }
}

</mosaic_0001>

<llo_original>
// kernel: bottleneck_pallas.5
$region0: #{bottleneck_pallas.5}
  #allocation0 [shape = 'u32[]', space=smem, size = 0x4, offset = 0x4, fixed_abs, tag = 'smem constant byte address 0x4 - core index']
  #allocation1 [shape = 'u32[144,128]{1,0:T(1,128)}', space=vmem, size = 0x12000, scoped, tag = 'internal scratch']
  %s0 = inlined_call_operand.vmem [shape: bf16[512,128], index: 0, kind: input, shape index: {}]
  %s1 = inlined_call_operand.vmem [shape: bf16[128,128], index: 1, kind: input, shape index: {}]
  %s2 = inlined_call_operand.vmem [shape: f32[1,128], index: 2, kind: input, shape index: {}]
  %s3 = inlined_call_operand.vmem [shape: f32[1,128], index: 3, kind: input, shape index: {}]
  %s4 = inlined_call_operand.vmem [shape: bf16[512,128], index: 4, kind: input, shape index: {}]
  %s5 = inlined_call_operand.vmem [shape: f32[512,128], index: 5, kind: output, shape index: {}]
  %s6 = sld [smem:[#allocation0]]
  $region53: #{bottleneck_pallas.5} parent=0
    _
  %s8 = ssub.s32 1, %s6
  %s9 = scalar_select 0, %s8, %s6
  loop: start=0, step=1, limit=4
  $region2: #{bottleneck_pallas.5} parent=0 // loop_pre_header
    _
  $region3: #{bottleneck_pallas.5} parent=0 // loop_header
    %s11 = sphi 0, %s15
    %p12 = scmp.ge.s32.totalorder %s11, 4
    %s21 = sphi 0, %s23
    %s24 = sphi 0, %s21
    %s25 = sphi 0, %s24
    %s41 = sphi 0, %s25
    %s45 = sphi 0, %s45
    %s47 = sphi 0, %s45
    %s48 = sphi 0, %s47
    %s62 = sphi 0, %s48
    %s66 = sphi 0, %s66
    %s68 = sphi 0, %s66
    %s69 = sphi 0, %s68
    %s83 = sphi 0, %s69
    %s87 = sphi 0, %s87
    %s89 = sphi 0, %s87
    %s90 = sphi 0, %s89
    %s104 = sphi 0, %s90
    %s110 = sphi 0, %s112
    %s113 = sphi 0, %s110
    %s114 = sphi 0, %s113
    %s130 = sphi 0, %s114
    %s136 = sphi 0, %s138
    %s139 = sphi 0, %s136
    %s140 = sphi 0, %s139
    %s156 = sphi 0, %s140
  $region4: #{bottleneck_pallas.5} parent=0 // loop_header_branch
    %14 = sbr.rel (%p12) target = $region8
  $region5: #{bottleneck_pallas.5} parent=0 // loop_body
    %s16 = ssub.s32 %s11, 1
    %s17 = ssub.s32 %s11, 2
    %s18 = sadd.s32 %s11, 1
    %s19 = ssub.s32 %s11, %s18
    %p20 = scmp.eq.s32.totalorder %s19, 0
    %s22 = sadd.s32 %s21, 1
    %s23 = scalar_select %p20, %s21, %s22
    %p26 = pneg %p20
    %p27 = scmp.eq.s32.totalorder %s11, 1
    %p28 = por %p26, %p27
    %p29 = scmp.ne.s32.totalorder %s21, %s24
    %p30 = scmp.eq.s32.totalorder %s11, 0
    %p31 = por %p29, %p30
    %p32 = scmp.ne.s32.totalorder %s21, %s24
    %p33 = scmp.eq.s32.totalorder %s16, 1
    %p34 = por %p32, %p33
    %p35 = scmp.ne.s32.totalorder %s24, %s25
    %p36 = scmp.eq.s32.totalorder %s16, 0
    %p37 = por %p35, %p36
    %p38 = scmp.ne.s32.totalorder %s24, %s25
    %p39 = scmp.eq.s32.totalorder %s17, 1
    %p40 = por %p38, %p39
    %p42 = scmp.ne.s32.totalorder %s25, %s41
    %p43 = scmp.eq.s32.totalorder %s17, 0
    %p44 = por %p42, %p43
    %s46 = sadd.s32 %s45, 1
    %p49 = scmp.eq.s32.totalorder %s11, 1
    %p50 = scmp.ne.s32.totalorder %s45, %s47
    %p51 = scmp.eq.s32.totalorder %s11, 0
    %p52 = por %p50, %p51
    %p53 = scmp.ne.s32.totalorder %s45, %s47
    %p54 = scmp.eq.s32.totalorder %s16, 1
    %p55 = por %p53, %p54
    %p56 = scmp.ne.s32.totalorder %s47, %s48
    %p57 = scmp.eq.s32.totalorder %s16, 0
    %p58 = por %p56, %p57
    %p59 = scmp.ne.s32.totalorder %s47, %s48
    %p60 = scmp.eq.s32.totalorder %s17, 1
    %p61 = por %p59, %p60
    %p63 = scmp.ne.s32.totalorder %s48, %s62
    %p64 = scmp.eq.s32.totalorder %s17, 0
    %p65 = por %p63, %p64
    %s67 = sadd.s32 %s66, 1
    %p70 = scmp.eq.s32.totalorder %s11, 1
    %p71 = scmp.ne.s32.totalorder %s66, %s68
    %p72 = scmp.eq.s32.totalorder %s11, 0
    %p73 = por %p71, %p72
    %p74 = scmp.ne.s32.totalorder %s66, %s68
    %p75 = scmp.eq.s32.totalorder %s16, 1
    %p76 = por %p74, %p75
    %p77 = scmp.ne.s32.totalorder %s68, %s69
    %p78 = scmp.eq.s32.totalorder %s16, 0
    %p79 = por %p77, %p78
    %p80 = scmp.ne.s32.totalorder %s68, %s69
    %p81 = scmp.eq.s32.totalorder %s17, 1
    %p82 = por %p80, %p81
    %p84 = scmp.ne.s32.totalorder %s69, %s83
    %p85 = scmp.eq.s32.totalorder %s17, 0
    %p86 = por %p84, %p85
    %s88 = sadd.s32 %s87, 1
    %p91 = scmp.eq.s32.totalorder %s11, 1
    %p92 = scmp.ne.s32.totalorder %s87, %s89
    %p93 = scmp.eq.s32.totalorder %s11, 0
    %p94 = por %p92, %p93
    %p95 = scmp.ne.s32.totalorder %s87, %s89
    %p96 = scmp.eq.s32.totalorder %s16, 1
    %p97 = por %p95, %p96
    %p98 = scmp.ne.s32.totalorder %s89, %s90
    %p99 = scmp.eq.s32.totalorder %s16, 0
    %p100 = por %p98, %p99
    %p101 = scmp.ne.s32.totalorder %s89, %s90
    %p102 = scmp.eq.s32.totalorder %s17, 1
    %p103 = por %p101, %p102
    %p105 = scmp.ne.s32.totalorder %s90, %s104
    %p106 = scmp.eq.s32.totalorder %s17, 0
    %p107 = por %p105, %p106
    %s108 = ssub.s32 %s11, %s18
    %p109 = scmp.eq.s32.totalorder %s108, 0
    %s111 = sadd.s32 %s110, 1
    %s112 = scalar_select %p109, %s110, %s111
    %p115 = pneg %p109
    %p116 = scmp.eq.s32.totalorder %s11, 1
    %p117 = por %p115, %p116
    %p118 = scmp.ne.s32.totalorder %s110, %s113
    %p119 = scmp.eq.s32.totalorder %s11, 0
    %p120 = por %p118, %p119
    %p121 = scmp.ne.s32.totalorder %s110, %s113
    %p122 = scmp.eq.s32.totalorder %s16, 1
    %p123 = por %p121, %p122
    %p124 = scmp.ne.s32.totalorder %s113, %s114
    %p125 = scmp.eq.s32.totalorder %s16, 0
    %p126 = por %p124, %p125
    %p127 = scmp.ne.s32.totalorder %s113, %s114
    %p128 = scmp.eq.s32.totalorder %s17, 1
    %p129 = por %p127, %p128
    %p131 = scmp.ne.s32.totalorder %s114, %s130
    %p132 = scmp.eq.s32.totalorder %s17, 0
    %p133 = por %p131, %p132
    %s134 = ssub.s32 %s11, %s18
    %p135 = scmp.eq.s32.totalorder %s134, 0
    %s137 = sadd.s32 %s136, 1
    %s138 = scalar_select %p135, %s136, %s137
    %p141 = pneg %p135
    %p142 = scmp.eq.s32.totalorder %s11, 1
    %p143 = por %p141, %p142
    %p144 = scmp.ne.s32.totalorder %s136, %s139
    %p145 = scmp.eq.s32.totalorder %s11, 0
    %p146 = por %p144, %p145
    %p147 = scmp.ne.s32.totalorder %s136, %s139
    %p148 = scmp.eq.s32.totalorder %s16, 1
    %p149 = por %p147, %p148
    %p150 = scmp.ne.s32.totalorder %s139, %s140
    %p151 = scmp.eq.s32.totalorder %s16, 0
    %p152 = por %p150, %p151
    %p153 = scmp.ne.s32.totalorder %s139, %s140
    %p154 = scmp.eq.s32.totalorder %s17, 1
    %p155 = por %p153, %p154
    %p157 = scmp.ne.s32.totalorder %s140, %s156
    %p158 = scmp.eq.s32.totalorder %s17, 0
    %p159 = por %p157, %p158
    %p160 = scmp.le.s32.totalorder 1, %s11
    %p161 = scmp.lt.s32.totalorder %s11, 3
    %p162 = pnand %p160, %p161
    %p163 = pneg %p162
    // Predicated region
    $region9: #{bottleneck_pallas.5} parent=5 // pred_check
      _
    $region10: #{bottleneck_pallas.5} parent=5 // pred_check_branch
      %165 = sbr.rel (%p162) target = $region12
    $region11: #{bottleneck_pallas.5} parent=5 // pred_region
      %s166 = ssub.s32 %s11, 1
      // Predicated region
      $region13: #{bottleneck_pallas.5} parent=11 // pred_check
        %p167 = pneg %p58
      $region14: #{bottleneck_pallas.5} parent=11 // pred_check_branch
        %169 = sbr.rel (%p167) target = $region16
      $region15: #{bottleneck_pallas.5} parent=11 // pred_region
        _
      $region16: #{bottleneck_pallas.5} parent=11 // pred_fallthru
        _
      // Predicated region
      $region17: #{bottleneck_pallas.5} parent=11 // pred_check
        %p170 = pneg %p79
      $region18: #{bottleneck_pallas.5} parent=11 // pred_check_branch
        %172 = sbr.rel (%p170) target = $region20
      $region19: #{bottleneck_pallas.5} parent=11 // pred_region
        _
      $region20: #{bottleneck_pallas.5} parent=11 // pred_fallthru
        _
      // Predicated region
      $region21: #{bottleneck_pallas.5} parent=11 // pred_check
        %p173 = pneg %p100
      $region22: #{bottleneck_pallas.5} parent=11 // pred_check_branch
        %175 = sbr.rel (%p173) target = $region24
      $region23: #{bottleneck_pallas.5} parent=11 // pred_region
        _
      $region24: #{bottleneck_pallas.5} parent=11 // pred_fallthru
        _
    $region12: #{bottleneck_pallas.5} parent=5 // pred_fallthru
      _
    %p176 = scmp.lt.s32.totalorder %s11, 2
    // Predicated region
    $region25: #{bottleneck_pallas.5} parent=5 // pred_check
      %p177 = pneg %p176
    $region26: #{bottleneck_pallas.5} parent=5 // pred_check_branch
      %179 = sbr.rel (%p177) target = $region28
    $region27: #{bottleneck_pallas.5} parent=5 // pred_region
      // Predicated region
      $region29: #{bottleneck_pallas.5} parent=27 // pred_check
        %p180 = pneg %p31
      $region30: #{bottleneck_pallas.5} parent=27 // pred_check_branch
        %182 = sbr.rel (%p180) target = $region32
      $region31: #{bottleneck_pallas.5} parent=27 // pred_region
        %s183 = smul.u32 32, %s11
        %p184 = scmp.lt.s32.totalorder %s183, 63
        %s185 = scalar_select %p184, %s183, 63
        %s186 = smul.addr %s185, 4
        %s187 = scalar_lea.vmem %s0, %s186
        %s188 = smul.u32 32, %s11
      $region32: #{bottleneck_pallas.5} parent=27 // pred_fallthru
        _
      // Predicated region
      $region33: #{bottleneck_pallas.5} parent=27 // pred_check
        %p189 = pneg %p120
      $region34: #{bottleneck_pallas.5} parent=27 // pred_check_branch
        %191 = sbr.rel (%p189) target = $region36
      $region35: #{bottleneck_pallas.5} parent=27 // pred_region
        %s192 = smul.u32 32, %s11
        %p193 = scmp.lt.s32.totalorder %s192, 63
        %s194 = scalar_select %p193, %s192, 63
        %s195 = smul.addr %s194, 4
        %s196 = scalar_lea.vmem %s4, %s195
        %s197 = smul.u32 32, %s11
      $region36: #{bottleneck_pallas.5} parent=27 // pred_fallthru
        _
    $region28: #{bottleneck_pallas.5} parent=5 // pred_fallthru
      _
    %p198 = scmp.le.s32.totalorder 1, %s11
    %p199 = scmp.lt.s32.totalorder %s11, 3
    %p200 = pnand %p198, %p199
    %p201 = pneg %p200
    // Predicated region
    $region37: #{bottleneck_pallas.5} parent=5 // pred_check
      _
    $region38: #{bottleneck_pallas.5} parent=5 // pred_check_branch
      %203 = sbr.rel (%p200) target = $region40
    $region39: #{bottleneck_pallas.5} parent=5 // pred_region
      %s204 = ssub.s32 %s11, 1
      %s205 = smul.u32 32, %s16
      %p206 = scmp.lt.s32.totalorder %s205, 63
      %s207 = scalar_select %p206, %s205, 63
      %s208 = smul.addr %s207, 4
      %s209 = scalar_lea.vmem %s0, %s208
      %p210 = pneg %p37
      %p211 = pneg %p34
      %p212 = pneg %p58
      %p213 = pneg %p55
      %p214 = pneg %p79
      %p215 = pneg %p76
      %p216 = pneg %p100
      %p217 = pneg %p97
      %s218 = smul.u32 32, %s16
      %p219 = scmp.lt.s32.totalorder %s218, 63
      %s220 = scalar_select %p219, %s218, 63
      %s221 = smul.addr %s220, 4
      %s222 = scalar_lea.vmem %s4, %s221
      %p223 = pneg %p126
      %p224 = pneg %p123
      %p225 = pneg %p152
      %p226 = pneg %p149
      %s227 = smul.u32 32, %s16
      %p228 = scmp.lt.s32.totalorder %s227, 63
      %s229 = scalar_select %p228, %s227, 63
      %s230 = smul.addr %s229, 8
      %s231 = scalar_lea.vmem %s5, %s230
      %s232 = smul.u32 32, %s16
      %p233 = scmp.lt.s32.totalorder %s232, 63
      %s234 = scalar_select %p233, %s232, 63
      %s235 = smul.addr %s234, 4
      %s236 = scalar_lea.vmem %s0, %s235
      %s237 = smul.u32 32, %s16
      %s238 = smul.u32 32, %s16
      %p239 = scmp.lt.s32.totalorder %s238, 63
      %s240 = scalar_select %p239, %s238, 63
      %s241 = smul.addr %s240, 4
      %s242 = scalar_lea.vmem %s4, %s241
      %s243 = smul.u32 32, %s16
      %s244 = smul.u32 32, %s16
      %p245 = scmp.lt.s32.totalorder %s244, 63
      %s246 = scalar_select %p245, %s244, 63
      %s247 = smul.addr %s246, 8
      %s248 = scalar_lea.vmem %s5, %s247
      %s249 = smul.u32 32, %s16
      %v251 = vld [vmem:[%s236] sm:$0xf]
      %v252 = vld [vmem:[%s236 + $0x4] sm:$0xf]
      %v253 = vld [vmem:[%s236 + $0x8] sm:$0xf]
      %v254 = vld [vmem:[%s236 + $0xc] sm:$0xf]
      %v255 = vld [vmem:[%s236 + $0x10] sm:$0xf]
      %v256 = vld [vmem:[%s236 + $0x14] sm:$0xf]
      %v257 = vld [vmem:[%s236 + $0x18] sm:$0xf]
      %v258 = vld [vmem:[%s236 + $0x1c] sm:$0xf]
      %v259 = vld [vmem:[%s236 + $0x20] sm:$0xf]
      %v260 = vld [vmem:[%s236 + $0x24] sm:$0xf]
      %v261 = vld [vmem:[%s236 + $0x28] sm:$0xf]
      %v262 = vld [vmem:[%s236 + $0x2c] sm:$0xf]
      %v263 = vld [vmem:[%s236 + $0x30] sm:$0xf]
      %v264 = vld [vmem:[%s236 + $0x34] sm:$0xf]
      %v265 = vld [vmem:[%s236 + $0x38] sm:$0xf]
      %v266 = vld [vmem:[%s236 + $0x3c] sm:$0xf]
      %v267 = vld [vmem:[%s236 + $0x40] sm:$0xf]
      %v268 = vld [vmem:[%s236 + $0x44] sm:$0xf]
      %v269 = vld [vmem:[%s236 + $0x48] sm:$0xf]
      %v270 = vld [vmem:[%s236 + $0x4c] sm:$0xf]
      %v271 = vld [vmem:[%s236 + $0x50] sm:$0xf]
      %v272 = vld [vmem:[%s236 + $0x54] sm:$0xf]
      %v273 = vld [vmem:[%s236 + $0x58] sm:$0xf]
      %v274 = vld [vmem:[%s236 + $0x5c] sm:$0xf]
      %v275 = vld [vmem:[%s236 + $0x60] sm:$0xf]
      %v276 = vld [vmem:[%s236 + $0x64] sm:$0xf]
      %v277 = vld [vmem:[%s236 + $0x68] sm:$0xf]
      %v278 = vld [vmem:[%s236 + $0x6c] sm:$0xf]
      %v279 = vld [vmem:[%s236 + $0x70] sm:$0xf]
      %v280 = vld [vmem:[%s236 + $0x74] sm:$0xf]
      %v281 = vld [vmem:[%s236 + $0x78] sm:$0xf]
      %v282 = vld [vmem:[%s236 + $0x7c] sm:$0xf]
      %v283 = vld [vmem:[%s1] sm:$0xf]
      %v284 = vld [vmem:[%s1 + $0x4] sm:$0xf]
      %v285 = vld [vmem:[%s1 + $0x8] sm:$0xf]
      %v286 = vld [vmem:[%s1 + $0xc] sm:$0xf]
      %v287 = vld [vmem:[%s1 + $0x10] sm:$0xf]
      %v288 = vld [vmem:[%s1 + $0x14] sm:$0xf]
      %v289 = vld [vmem:[%s1 + $0x18] sm:$0xf]
      %v290 = vld [vmem:[%s1 + $0x1c] sm:$0xf]
      %v291 = vld [vmem:[%s1 + $0x20] sm:$0xf]
      %v292 = vld [vmem:[%s1 + $0x24] sm:$0xf]
      %v293 = vld [vmem:[%s1 + $0x28] sm:$0xf]
      %v294 = vld [vmem:[%s1 + $0x2c] sm:$0xf]
      %v295 = vld [vmem:[%s1 + $0x30] sm:$0xf]
      %v296 = vld [vmem:[%s1 + $0x34] sm:$0xf]
      %v297 = vld [vmem:[%s1 + $0x38] sm:$0xf]
      %v298 = vld [vmem:[%s1 + $0x3c] sm:$0xf]
      %v331 = vunpack.c.l.b16 %v251
      %v332 = vunpack.c.l.b16 %v252
      %v333 = vunpack.c.l.b16 %v253
      %v334 = vunpack.c.l.b16 %v254
      %v335 = vunpack.c.l.b16 %v255
      %v336 = vunpack.c.l.b16 %v256
      %v337 = vunpack.c.l.b16 %v257
      %v338 = vunpack.c.l.b16 %v258
      %v339 = vunpack.c.l.b16 %v259
      %v340 = vunpack.c.l.b16 %v260
      %v341 = vunpack.c.l.b16 %v261
      %v342 = vunpack.c.l.b16 %v262
      %v343 = vunpack.c.l.b16 %v263
      %v344 = vunpack.c.l.b16 %v264
      %v345 = vunpack.c.l.b16 %v265
      %v346 = vunpack.c.l.b16 %v266
      %v347 = vunpack.c.l.b16 %v267
      %v348 = vunpack.c.l.b16 %v268
      %v349 = vunpack.c.l.b16 %v269
      %v350 = vunpack.c.l.b16 %v270
      %v351 = vunpack.c.l.b16 %v271
      %v352 = vunpack.c.l.b16 %v272
      %v353 = vunpack.c.l.b16 %v273
      %v354 = vunpack.c.l.b16 %v274
      %v355 = vunpack.c.l.b16 %v275
      %v356 = vunpack.c.l.b16 %v276
      %v357 = vunpack.c.l.b16 %v277
      %v358 = vunpack.c.l.b16 %v278
      %v359 = vunpack.c.l.b16 %v279
      %v360 = vunpack.c.l.b16 %v280
      %v361 = vunpack.c.l.b16 %v281
      %v362 = vunpack.c.l.b16 %v282
      %v363 = vpack.c.b16 %v332, %v331
      %v364 = vpack.c.b16 %v334, %v333
      %v365 = vpack.c.b16 %v336, %v335
      %v366 = vpack.c.b16 %v338, %v337
      %v367 = vpack.c.b16 %v340, %v339
      %v368 = vpack.c.b16 %v342, %v341
      %v369 = vpack.c.b16 %v344, %v343
      %v370 = vpack.c.b16 %v346, %v345
      %v371 = vpack.c.b16 %v348, %v347
      %v372 = vpack.c.b16 %v350, %v349
      %v373 = vpack.c.b16 %v352, %v351
      %v374 = vpack.c.b16 %v354, %v353
      %v375 = vpack.c.b16 %v356, %v355
      %v376 = vpack.c.b16 %v358, %v357
      %v377 = vpack.c.b16 %v360, %v359
      %v378 = vpack.c.b16 %v362, %v361
      %v411 = vunpack.c.l.b16 %v283
      %v412 = vunpack.c.l.b16 %v284
      %v413 = vunpack.c.l.b16 %v285
      %v414 = vunpack.c.l.b16 %v286
      %v415 = vunpack.c.l.b16 %v287
      %v416 = vunpack.c.l.b16 %v288
      %v417 = vunpack.c.l.b16 %v289
      %v418 = vunpack.c.l.b16 %v290
      %v419 = vunpack.c.l.b16 %v291
      %v420 = vunpack.c.l.b16 %v292
      %v421 = vunpack.c.l.b16 %v293
      %v422 = vunpack.c.l.b16 %v294
      %v423 = vunpack.c.l.b16 %v295
      %v424 = vunpack.c.l.b16 %v296
      %v425 = vunpack.c.l.b16 %v297
      %v426 = vunpack.c.l.b16 %v298
      %v427 = vpack.c.b16 %v412, %v411
      %v428 = vpack.c.b16 %v414, %v413
      %v429 = vpack.c.b16 %v416, %v415
      %v430 = vpack.c.b16 %v418, %v417
      %v431 = vpack.c.b16 %v420, %v419
      %v432 = vpack.c.b16 %v422, %v421
      %v433 = vpack.c.b16 %v424, %v423
      %v434 = vpack.c.b16 %v426, %v425
      %443 = vmatprep.subr.bf16.mxu0 0
      %444 = vmatpush1.bf16.msra.mxu0 %v427
      %445 = vmatprep.subr.bf16.mxu0 0
      %446 = vmatpush1.bf16.msra.mxu0 %v428
      %447 = vmatprep.subr.bf16.mxu0 0
      %448 = vmatpush1.bf16.msra.mxu0 %v429
      %449 = vmatprep.subr.bf16.mxu0 0
      %450 = vmatpush1.bf16.msra.mxu0 %v430
      %451 = vmatprep.subr.bf16.mxu0 0
      %452 = vmatpush1.bf16.msra.mxu0 %v431
      %453 = vmatprep.subr.bf16.mxu0 0
      %454 = vmatpush1.bf16.msra.mxu0 %v432
      %455 = vmatprep.subr.bf16.mxu0 0
      %456 = vmatpush1.bf16.msra.mxu0 %v433
      %457 = vmatprep.subr.bf16.mxu0 0
      %458 = vmatpush1.bf16.msra.mxu0 %v434
      %459 = vmatprep.subr.bf16.mxu0 0
      %460 = vmatpush1.bf16.msra.mxu0 0
      %461 = vmatprep.subr.bf16.mxu0 0
      %462 = vmatpush1.bf16.msra.mxu0 0
      %463 = vmatprep.subr.bf16.mxu0 0
      %464 = vmatpush1.bf16.msra.mxu0 0
      %465 = vmatprep.subr.bf16.mxu0 0
      %466 = vmatpush1.bf16.msra.mxu0 0
      %467 = vmatprep.subr.bf16.mxu0 0
      %468 = vmatpush1.bf16.msra.mxu0 0
      %469 = vmatprep.subr.bf16.mxu0 0
      %470 = vmatpush1.bf16.msra.mxu0 0
      %471 = vmatprep.subr.bf16.mxu0 0
      %472 = vmatpush1.bf16.msra.mxu0 0
      %473 = vmatprep.subr.bf16.mxu0 0
      %474 = vmatpush1.bf16.msra.mxu0 0
      %475 = vmatprep.mubr.bf16.mxu0 0
      %476 = vmatmul.mubr.bf16.gmra.mrb[0].mxu0 %v363
      %v477 = vpop.f32.mrb[0].mxu0
      %v478 = vadd.f32 0.0, %v477
      %v479 = vpop.f32.mrb[0].mxu0
      %v480 = vpop.f32.mrb[0].mxu0
      %v481 = vadd.f32 0.0, %v480
      %v482 = vpop.f32.mrb[0].mxu0
      %483 = vmatprep.mubr.bf16.mxu0 0
      %484 = vmatmul.mubr.bf16.gmra.mrb[0].mxu0 %v364
      %v485 = vpop.f32.mrb[0].mxu0
      %v486 = vadd.f32 0.0, %v485
      %v487 = vpop.f32.mrb[0].mxu0
      %v488 = vpop.f32.mrb[0].mxu0
      %v489 = vadd.f32 0.0, %v488
      %v490 = vpop.f32.mrb[0].mxu0
      %491 = vmatprep.mubr.bf16.mxu0 0
      %492 = vmatmul.mubr.bf16.gmra.mrb[0].mxu0 %v365
      %v493 = vpop.f32.mrb[0].mxu0
      %v494 = vadd.f32 0.0, %v493
      %v495 = vpop.f32.mrb[0].mxu0
      %v496 = vpop.f32.mrb[0].mxu0
      %v497 = vadd.f32 0.0, %v496
      %v498 = vpop.f32.mrb[0].mxu0
      %499 = vmatprep.mubr.bf16.mxu0 0
      %500 = vmatmul.mubr.bf16.gmra.mrb[0].mxu0 %v366
      %v501 = vpop.f32.mrb[0].mxu0
      %v502 = vadd.f32 0.0, %v501
      %v503 = vpop.f32.mrb[0].mxu0
      %v504 = vpop.f32.mrb[0].mxu0
      %v505 = vadd.f32 0.0, %v504
      %v506 = vpop.f32.mrb[0].mxu0
      %507 = vmatprep.mubr.bf16.mxu0 0
      %508 = vmatmul.mubr.bf16.gmra.mrb[0].mxu0 %v367
      %v509 = vpop.f32.mrb[0].mxu0
      %v510 = vadd.f32 0.0, %v509
      %v511 = vpop.f32.mrb[0].mxu0
      %v512 = vpop.f32.mrb[0].mxu0
      %v513 = vadd.f32 0.0, %v512
      %v514 = vpop.f32.mrb[0].mxu0
      %515 = vmatprep.mubr.bf16.mxu0 0
      %516 = vmatmul.mubr.bf16.gmra.mrb[0].mxu0 %v368
      %v517 = vpop.f32.mrb[0].mxu0
      %v518 = vadd.f32 0.0, %v517
      %v519 = vpop.f32.mrb[0].mxu0
      %v520 = vpop.f32.mrb[0].mxu0
      %v521 = vadd.f32 0.0, %v520
      %v522 = vpop.f32.mrb[0].mxu0
      %523 = vmatprep.mubr.bf16.mxu0 0
      %524 = vmatmul.mubr.bf16.gmra.mrb[0].mxu0 %v369
      %v525 = vpop.f32.mrb[0].mxu0
      %v526 = vadd.f32 0.0, %v525
      %v527 = vpop.f32.mrb[0].mxu0
      %v528 = vpop.f32.mrb[0].mxu0
      %v529 = vadd.f32 0.0, %v528
      %v530 = vpop.f32.mrb[0].mxu0
      %531 = vmatprep.mubr.bf16.mxu0 0
      %532 = vmatmul.mubr.bf16.gmra.mrb[0].mxu0 %v370
      %v533 = vpop.f32.mrb[0].mxu0
      %v534 = vadd.f32 0.0, %v533
      %v535 = vpop.f32.mrb[0].mxu0
      %v536 = vpop.f32.mrb[0].mxu0
      %v537 = vadd.f32 0.0, %v536
      %v538 = vpop.f32.mrb[0].mxu0
      %539 = vmatprep.mubr.bf16.mxu0 0
      %540 = vmatmul.mubr.bf16.gmra.mrb[0].mxu0 %v371
      %v541 = vpop.f32.mrb[0].mxu0
      %v542 = vadd.f32 0.0, %v541
      %v543 = vpop.f32.mrb[0].mxu0
      %v544 = vpop.f32.mrb[0].mxu0
      %v545 = vadd.f32 0.0, %v544
      %v546 = vpop.f32.mrb[0].mxu0
      %547 = vmatprep.mubr.bf16.mxu0 0
      %548 = vmatmul.mubr.bf16.gmra.mrb[0].mxu0 %v372
      %v549 = vpop.f32.mrb[0].mxu0
      %v550 = vadd.f32 0.0, %v549
      %v551 = vpop.f32.mrb[0].mxu0
      %v552 = vpop.f32.mrb[0].mxu0
      %v553 = vadd.f32 0.0, %v552
      %v554 = vpop.f32.mrb[0].mxu0
      %555 = vmatprep.mubr.bf16.mxu0 0
      %556 = vmatmul.mubr.bf16.gmra.mrb[0].mxu0 %v373
      %v557 = vpop.f32.mrb[0].mxu0
      %v558 = vadd.f32 0.0, %v557
      %v559 = vpop.f32.mrb[0].mxu0
      %v560 = vpop.f32.mrb[0].mxu0
      %v561 = vadd.f32 0.0, %v560
      %v562 = vpop.f32.mrb[0].mxu0
      %563 = vmatprep.mubr.bf16.mxu0 0
      %564 = vmatmul.mubr.bf16.gmra.mrb[0].mxu0 %v374
      %v565 = vpop.f32.mrb[0].mxu0
      %v566 = vadd.f32 0.0, %v565
      %v567 = vpop.f32.mrb[0].mxu0
      %v568 = vpop.f32.mrb[0].mxu0
      %v569 = vadd.f32 0.0, %v568
      %v570 = vpop.f32.mrb[0].mxu0
      %571 = vmatprep.mubr.bf16.mxu0 0
      %572 = vmatmul.mubr.bf16.gmra.mrb[0].mxu0 %v375
      %v573 = vpop.f32.mrb[0].mxu0
      %v574 = vadd.f32 0.0, %v573
      %v575 = vpop.f32.mrb[0].mxu0
      %v576 = vpop.f32.mrb[0].mxu0
      %v577 = vadd.f32 0.0, %v576
      %v578 = vpop.f32.mrb[0].mxu0
      %579 = vmatprep.mubr.bf16.mxu0 0
      %580 = vmatmul.mubr.bf16.gmra.mrb[0].mxu0 %v376
      %v581 = vpop.f32.mrb[0].mxu0
      %v582 = vadd.f32 0.0, %v581
      %v583 = vpop.f32.mrb[0].mxu0
      %v584 = vpop.f32.mrb[0].mxu0
      %v585 = vadd.f32 0.0, %v584
      %v586 = vpop.f32.mrb[0].mxu0
      %587 = vmatprep.mubr.bf16.mxu0 0
      %588 = vmatmul.mubr.bf16.gmra.mrb[0].mxu0 %v377
      %v589 = vpop.f32.mrb[0].mxu0
      %v590 = vadd.f32 0.0, %v589
      %v591 = vpop.f32.mrb[0].mxu0
      %v592 = vpop.f32.mrb[0].mxu0
      %v593 = vadd.f32 0.0, %v592
      %v594 = vpop.f32.mrb[0].mxu0
      %595 = vmatprep.mubr.bf16.mxu0 0
      %596 = vmatmul.mubr.bf16.gmra.mrb[0].mxu0 %v378
      %v597 = vpop.f32.mrb[0].mxu0
      %v598 = vadd.f32 0.0, %v597
      %v599 = vpop.f32.mrb[0].mxu0
      %v600 = vpop.f32.mrb[0].mxu0
      %v601 = vadd.f32 0.0, %v600
      %v602 = vpop.f32.mrb[0].mxu0
      %603 = vdwg.mxu0
      %v604 = vld [vmem:[%s2] sm:$0x1]
      %v606 = vlaneseq
      %v607 = vshrl.u32 %v606, 7
      %v608 = vsub.s32 0, %v607
      %v609 = vrot.slane %v604, %v608
      %v611 = vmul.f32 %v478, %v609
      %v612 = vmul.f32 %v481, %v609
      %v613 = vmul.f32 %v486, %v609
      %v614 = vmul.f32 %v489, %v609
      %v615 = vmul.f32 %v494, %v609
      %v616 = vmul.f32 %v497, %v609
      %v617 = vmul.f32 %v502, %v609
      %v618 = vmul.f32 %v505, %v609
      %v619 = vmul.f32 %v510, %v609
      %v620 = vmul.f32 %v513, %v609
      %v621 = vmul.f32 %v518, %v609
      %v622 = vmul.f32 %v521, %v609
      %v623 = vmul.f32 %v526, %v609
      %v624 = vmul.f32 %v529, %v609
      %v625 = vmul.f32 %v534, %v609
      %v626 = vmul.f32 %v537, %v609
      %v627 = vmul.f32 %v542, %v609
      %v628 = vmul.f32 %v545, %v609
      %v629 = vmul.f32 %v550, %v609
      %v630 = vmul.f32 %v553, %v609
      %v631 = vmul.f32 %v558, %v609
      %v632 = vmul.f32 %v561, %v609
      %v633 = vmul.f32 %v566, %v609
      %v634 = vmul.f32 %v569, %v609
      %v635 = vmul.f32 %v574, %v609
      %v636 = vmul.f32 %v577, %v609
      %v637 = vmul.f32 %v582, %v609
      %v638 = vmul.f32 %v585, %v609
      %v639 = vmul.f32 %v590, %v609
      %v640 = vmul.f32 %v593, %v609
      %v641 = vmul.f32 %v598, %v609
      %v642 = vmul.f32 %v601, %v609
      %v643 = vld [vmem:[%s3] sm:$0x1]
      %v645 = vlaneseq
      %v646 = vshrl.u32 %v645, 7
      %v647 = vsub.s32 0, %v646
      %v648 = vrot.slane %v643, %v647
      %v650 = vadd.f32 %v611, %v648
      %v651 = vadd.f32 %v612, %v648
      %v652 = vadd.f32 %v613, %v648
      %v653 = vadd.f32 %v614, %v648
      %v654 = vadd.f32 %v615, %v648
      %v655 = vadd.f32 %v616, %v648
      %v656 = vadd.f32 %v617, %v648
      %v657 = vadd.f32 %v618, %v648
      %v658 = vadd.f32 %v619, %v648
      %v659 = vadd.f32 %v620, %v648
      %v660 = vadd.f32 %v621, %v648
      %v661 = vadd.f32 %v622, %v648
      %v662 = vadd.f32 %v623, %v648
      %v663 = vadd.f32 %v624, %v648
      %v664 = vadd.f32 %v625, %v648
      %v665 = vadd.f32 %v626, %v648
      %v666 = vadd.f32 %v627, %v648
      %v667 = vadd.f32 %v628, %v648
      %v668 = vadd.f32 %v629, %v648
      %v669 = vadd.f32 %v630, %v648
      %v670 = vadd.f32 %v631, %v648
      %v671 = vadd.f32 %v632, %v648
      %v672 = vadd.f32 %v633, %v648
      %v673 = vadd.f32 %v634, %v648
      %v674 = vadd.f32 %v635, %v648
      %v675 = vadd.f32 %v636, %v648
      %v676 = vadd.f32 %v637, %v648
      %v677 = vadd.f32 %v638, %v648
      %v678 = vadd.f32 %v639, %v648
      %v679 = vadd.f32 %v640, %v648
      %v680 = vadd.f32 %v641, %v648
      %v681 = vadd.f32 %v642, %v648
      %v682 = vld [vmem:[%s242] sm:$0xf]
      %v683 = vld [vmem:[%s242 + $0x4] sm:$0xf]
      %v684 = vld [vmem:[%s242 + $0x8] sm:$0xf]
      %v685 = vld [vmem:[%s242 + $0xc] sm:$0xf]
      %v686 = vld [vmem:[%s242 + $0x10] sm:$0xf]
      %v687 = vld [vmem:[%s242 + $0x14] sm:$0xf]
      %v688 = vld [vmem:[%s242 + $0x18] sm:$0xf]
      %v689 = vld [vmem:[%s242 + $0x1c] sm:$0xf]
      %v690 = vld [vmem:[%s242 + $0x20] sm:$0xf]
      %v691 = vld [vmem:[%s242 + $0x24] sm:$0xf]
      %v692 = vld [vmem:[%s242 + $0x28] sm:$0xf]
      %v693 = vld [vmem:[%s242 + $0x2c] sm:$0xf]
      %v694 = vld [vmem:[%s242 + $0x30] sm:$0xf]
      %v695 = vld [vmem:[%s242 + $0x34] sm:$0xf]
      %v696 = vld [vmem:[%s242 + $0x38] sm:$0xf]
      %v697 = vld [vmem:[%s242 + $0x3c] sm:$0xf]
      %v698 = vld [vmem:[%s242 + $0x40] sm:$0xf]
      %v699 = vld [vmem:[%s242 + $0x44] sm:$0xf]
      %v700 = vld [vmem:[%s242 + $0x48] sm:$0xf]
      %v701 = vld [vmem:[%s242 + $0x4c] sm:$0xf]
      %v702 = vld [vmem:[%s242 + $0x50] sm:$0xf]
      %v703 = vld [vmem:[%s242 + $0x54] sm:$0xf]
      %v704 = vld [vmem:[%s242 + $0x58] sm:$0xf]
      %v705 = vld [vmem:[%s242 + $0x5c] sm:$0xf]
      %v706 = vld [vmem:[%s242 + $0x60] sm:$0xf]
      %v707 = vld [vmem:[%s242 + $0x64] sm:$0xf]
      %v708 = vld [vmem:[%s242 + $0x68] sm:$0xf]
      %v709 = vld [vmem:[%s242 + $0x6c] sm:$0xf]
      %v710 = vld [vmem:[%s242 + $0x70] sm:$0xf]
      %v711 = vld [vmem:[%s242 + $0x74] sm:$0xf]
      %v712 = vld [vmem:[%s242 + $0x78] sm:$0xf]
      %v713 = vld [vmem:[%s242 + $0x7c] sm:$0xf]
      %v714 = vunpack.c.l.bf16 %v682
      %v715 = vunpack.c.l.bf16 %v683
      %v716 = vunpack.c.l.bf16 %v684
      %v717 = vunpack.c.l.bf16 %v685
      %v718 = vunpack.c.l.bf16 %v686
      %v719 = vunpack.c.l.bf16 %v687
      %v720 = vunpack.c.l.bf16 %v688
      %v721 = vunpack.c.l.bf16 %v689
      %v722 = vunpack.c.l.bf16 %v690
      %v723 = vunpack.c.l.bf16 %v691
      %v724 = vunpack.c.l.bf16 %v692
      %v725 = vunpack.c.l.bf16 %v693
      %v726 = vunpack.c.l.bf16 %v694
      %v727 = vunpack.c.l.bf16 %v695
      %v728 = vunpack.c.l.bf16 %v696
      %v729 = vunpack.c.l.bf16 %v697
      %v730 = vunpack.c.l.bf16 %v698
      %v731 = vunpack.c.l.bf16 %v699
      %v732 = vunpack.c.l.bf16 %v700
      %v733 = vunpack.c.l.bf16 %v701
      %v734 = vunpack.c.l.bf16 %v702
      %v735 = vunpack.c.l.bf16 %v703
      %v736 = vunpack.c.l.bf16 %v704
      %v737 = vunpack.c.l.bf16 %v705
      %v738 = vunpack.c.l.bf16 %v706
      %v739 = vunpack.c.l.bf16 %v707
      %v740 = vunpack.c.l.bf16 %v708
      %v741 = vunpack.c.l.bf16 %v709
      %v742 = vunpack.c.l.bf16 %v710
      %v743 = vunpack.c.l.bf16 %v711
      %v744 = vunpack.c.l.bf16 %v712
      %v745 = vunpack.c.l.bf16 %v713
      %v746 = vadd.f32 %v650, %v714
      %v747 = vadd.f32 %v651, %v715
      %v748 = vadd.f32 %v652, %v716
      %v749 = vadd.f32 %v653, %v717
      %v750 = vadd.f32 %v654, %v718
      %v751 = vadd.f32 %v655, %v719
      %v752 = vadd.f32 %v656, %v720
      %v753 = vadd.f32 %v657, %v721
      %v754 = vadd.f32 %v658, %v722
      %v755 = vadd.f32 %v659, %v723
      %v756 = vadd.f32 %v660, %v724
      %v757 = vadd.f32 %v661, %v725
      %v758 = vadd.f32 %v662, %v726
      %v759 = vadd.f32 %v663, %v727
      %v760 = vadd.f32 %v664, %v728
      %v761 = vadd.f32 %v665, %v729
      %v762 = vadd.f32 %v666, %v730
      %v763 = vadd.f32 %v667, %v731
      %v764 = vadd.f32 %v668, %v732
      %v765 = vadd.f32 %v669, %v733
      %v766 = vadd.f32 %v670, %v734
      %v767 = vadd.f32 %v671, %v735
      %v768 = vadd.f32 %v672, %v736
      %v769 = vadd.f32 %v673, %v737
      %v770 = vadd.f32 %v674, %v738
      %v771 = vadd.f32 %v675, %v739
      %v772 = vadd.f32 %v676, %v740
      %v773 = vadd.f32 %v677, %v741
      %v774 = vadd.f32 %v678, %v742
      %v775 = vadd.f32 %v679, %v743
      %v776 = vadd.f32 %v680, %v744
      %v777 = vadd.f32 %v681, %v745
      %v778 = vmax.f32 %v746, 0.0
      %v779 = vmax.f32 %v747, 0.0
      %v780 = vmax.f32 %v748, 0.0
      %v781 = vmax.f32 %v749, 0.0
      %v782 = vmax.f32 %v750, 0.0
      %v783 = vmax.f32 %v751, 0.0
      %v784 = vmax.f32 %v752, 0.0
      %v785 = vmax.f32 %v753, 0.0
      %v786 = vmax.f32 %v754, 0.0
      %v787 = vmax.f32 %v755, 0.0
      %v788 = vmax.f32 %v756, 0.0
      %v789 = vmax.f32 %v757, 0.0
      %v790 = vmax.f32 %v758, 0.0
      %v791 = vmax.f32 %v759, 0.0
      %v792 = vmax.f32 %v760, 0.0
      %v793 = vmax.f32 %v761, 0.0
      %v794 = vmax.f32 %v762, 0.0
      %v795 = vmax.f32 %v763, 0.0
      %v796 = vmax.f32 %v764, 0.0
      %v797 = vmax.f32 %v765, 0.0
      %v798 = vmax.f32 %v766, 0.0
      %v799 = vmax.f32 %v767, 0.0
      %v800 = vmax.f32 %v768, 0.0
      %v801 = vmax.f32 %v769, 0.0
      %v802 = vmax.f32 %v770, 0.0
      %v803 = vmax.f32 %v771, 0.0
      %v804 = vmax.f32 %v772, 0.0
      %v805 = vmax.f32 %v773, 0.0
      %v806 = vmax.f32 %v774, 0.0
      %v807 = vmax.f32 %v775, 0.0
      %v808 = vmax.f32 %v776, 0.0
      %v809 = vmax.f32 %v777, 0.0
      %810 = vst [vmem:[%s248] sm:$0xff] %v778
      %811 = vst [vmem:[%s248 + $0x8] sm:$0xff] %v779
      %812 = vst [vmem:[%s248 + $0x10] sm:$0xff] %v780
      %813 = vst [vmem:[%s248 + $0x18] sm:$0xff] %v781
      %814 = vst [vmem:[%s248 + $0x20] sm:$0xff] %v782
      %815 = vst [vmem:[%s248 + $0x28] sm:$0xff] %v783
      %816 = vst [vmem:[%s248 + $0x30] sm:$0xff] %v784
      %817 = vst [vmem:[%s248 + $0x38] sm:$0xff] %v785
      %818 = vst [vmem:[%s248 + $0x40] sm:$0xff] %v786
      %819 = vst [vmem:[%s248 + $0x48] sm:$0xff] %v787
      %820 = vst [vmem:[%s248 + $0x50] sm:$0xff] %v788
      %821 = vst [vmem:[%s248 + $0x58] sm:$0xff] %v789
      %822 = vst [vmem:[%s248 + $0x60] sm:$0xff] %v790
      %823 = vst [vmem:[%s248 + $0x68] sm:$0xff] %v791
      %824 = vst [vmem:[%s248 + $0x70] sm:$0xff] %v792
      %825 = vst [vmem:[%s248 + $0x78] sm:$0xff] %v793
      %826 = vst [vmem:[%s248 + $0x80] sm:$0xff] %v794
      %827 = vst [vmem:[%s248 + $0x88] sm:$0xff] %v795
      %828 = vst [vmem:[%s248 + $0x90] sm:$0xff] %v796
      %829 = vst [vmem:[%s248 + $0x98] sm:$0xff] %v797
      %830 = vst [vmem:[%s248 + $0xa0] sm:$0xff] %v798
      %831 = vst [vmem:[%s248 + $0xa8] sm:$0xff] %v799
      %832 = vst [vmem:[%s248 + $0xb0] sm:$0xff] %v800
      %833 = vst [vmem:[%s248 + $0xb8] sm:$0xff] %v801
      %834 = vst [vmem:[%s248 + $0xc0] sm:$0xff] %v802
      %835 = vst [vmem:[%s248 + $0xc8] sm:$0xff] %v803
      %836 = vst [vmem:[%s248 + $0xd0] sm:$0xff] %v804
      %837 = vst [vmem:[%s248 + $0xd8] sm:$0xff] %v805
      %838 = vst [vmem:[%s248 + $0xe0] sm:$0xff] %v806
      %839 = vst [vmem:[%s248 + $0xe8] sm:$0xff] %v807
      %840 = vst [vmem:[%s248 + $0xf0] sm:$0xff] %v808
      %841 = vst [vmem:[%s248 + $0xf8] sm:$0xff] %v809
      %s842 = smul.u32 32, %s16
      %p843 = scmp.lt.s32.totalorder %s842, 63
      %s844 = scalar_select %p843, %s842, 63
      %s845 = smul.addr %s844, 8
      %s846 = scalar_lea.vmem %s5, %s845
      // Predicated region
      $region41: #{bottleneck_pallas.5} parent=39 // pred_check
        %p847 = pneg %p149
      $region42: #{bottleneck_pallas.5} parent=39 // pred_check_branch
        %849 = sbr.rel (%p847) target = $region44
      $region43: #{bottleneck_pallas.5} parent=39 // pred_region
        %s850 = smul.u32 32, %s16
      $region44: #{bottleneck_pallas.5} parent=39 // pred_fallthru
        _
    $region40: #{bottleneck_pallas.5} parent=5 // pred_fallthru
      _
    %p851 = scmp.le.s32.totalorder 2, %s11
    // Predicated region
    $region45: #{bottleneck_pallas.5} parent=5 // pred_check
      %p852 = pneg %p851
    $region46: #{bottleneck_pallas.5} parent=5 // pred_check_branch
      %854 = sbr.rel (%p852) target = $region48
    $region47: #{bottleneck_pallas.5} parent=5 // pred_region
      %s855 = ssub.s32 %s11, 2
      // Predicated region
      $region49: #{bottleneck_pallas.5} parent=47 // pred_check
        %p856 = pneg %p155
      $region50: #{bottleneck_pallas.5} parent=47 // pred_check_branch
        %858 = sbr.rel (%p856) target = $region52
      $region51: #{bottleneck_pallas.5} parent=47 // pred_region
        %s859 = smul.u32 32, %s17
        %p860 = scmp.lt.s32.totalorder %s859, 63
        %s861 = scalar_select %p860, %s859, 63
        %s862 = smul.addr %s861, 8
        %s863 = scalar_lea.vmem %s5, %s862
      $region52: #{bottleneck_pallas.5} parent=47 // pred_fallthru
        _
    $region48: #{bottleneck_pallas.5} parent=5 // pred_fallthru
      _
  $region6: #{bottleneck_pallas.5} parent=0 // loop_footer
    %s15 = sadd.s32 1, %s11
  $region7: #{bottleneck_pallas.5} parent=0 // loop_footer_branch
    %10 = sbr.rel target = $region3
  $region8: #{bottleneck_pallas.5} parent=0 // loop_exit
    _

// kernel: bottleneck_pallas.3
$region0: #{bottleneck_pallas.3}
  #allocation0 [shape = 'u32[]', space=smem, size = 0x4, offset = 0x4, fixed_abs, tag = 'smem constant byte address 0x4 - core index']
  #allocation1 [shape = 'u32[144,128]{1,0:T(1,128)}', space=vmem, size = 0x12000, scoped, tag = 'internal scratch']
  %s0 = inlined_call_operand.vmem [shape: bf16[512,128], index: 0, kind: input, shape index: {}]
  %s1 = inlined_call_operand.vmem [shape: bf16[128,128], index: 1, kind: input, shape index: {}]
  %s2 = inlined_call_operand.vmem [shape: f32[1,128], index: 2, kind: input, shape index: {}]
  %s3 = inlined_call_operand.vmem [shape: f32[1,128], index: 3, kind: input, shape index: {}]
  %s4 = inlined_call_operand.vmem [shape: bf16[512,128], index: 4, kind: output, shape index: {}]
  %s5 = sld [smem:[#allocation0]]
  $region49: #{bottleneck_pallas.3} parent=0
    _
  %s7 = ssub.s32 1, %s5
  %s8 = scalar_select 0, %s7, %s5
  loop: start=0, step=1, limit=4
  $region2: #{bottleneck_pallas.3} parent=0 // loop_pre_header
    _
  $region3: #{bottleneck_pallas.3} parent=0 // loop_header
    %s10 = sphi 0, %s14
    %p11 = scmp.ge.s32.totalorder %s10, 4
    %s20 = sphi 0, %s22
    %s23 = sphi 0, %s20
    %s24 = sphi 0, %s23
    %s40 = sphi 0, %s24
    %s44 = sphi 0, %s44
    %s46 = sphi 0, %s44
    %s47 = sphi 0, %s46
    %s61 = sphi 0, %s47
    %s65 = sphi 0, %s65
    %s67 = sphi 0, %s65
    %s68 = sphi 0, %s67
    %s82 = sphi 0, %s68
    %s86 = sphi 0, %s86
    %s88 = sphi 0, %s86
    %s89 = sphi 0, %s88
    %s103 = sphi 0, %s89
    %s109 = sphi 0, %s111
    %s112 = sphi 0, %s109
    %s113 = sphi 0, %s112
    %s129 = sphi 0, %s113
  $region4: #{bottleneck_pallas.3} parent=0 // loop_header_branch
    %13 = sbr.rel (%p11) target = $region8
  $region5: #{bottleneck_pallas.3} parent=0 // loop_body
    %s15 = ssub.s32 %s10, 1
    %s16 = ssub.s32 %s10, 2
    %s17 = sadd.s32 %s10, 1
    %s18 = ssub.s32 %s10, %s17
    %p19 = scmp.eq.s32.totalorder %s18, 0
    %s21 = sadd.s32 %s20, 1
    %s22 = scalar_select %p19, %s20, %s21
    %p25 = pneg %p19
    %p26 = scmp.eq.s32.totalorder %s10, 1
    %p27 = por %p25, %p26
    %p28 = scmp.ne.s32.totalorder %s20, %s23
    %p29 = scmp.eq.s32.totalorder %s10, 0
    %p30 = por %p28, %p29
    %p31 = scmp.ne.s32.totalorder %s20, %s23
    %p32 = scmp.eq.s32.totalorder %s15, 1
    %p33 = por %p31, %p32
    %p34 = scmp.ne.s32.totalorder %s23, %s24
    %p35 = scmp.eq.s32.totalorder %s15, 0
    %p36 = por %p34, %p35
    %p37 = scmp.ne.s32.totalorder %s23, %s24
    %p38 = scmp.eq.s32.totalorder %s16, 1
    %p39 = por %p37, %p38
    %p41 = scmp.ne.s32.totalorder %s24, %s40
    %p42 = scmp.eq.s32.totalorder %s16, 0
    %p43 = por %p41, %p42
    %s45 = sadd.s32 %s44, 1
    %p48 = scmp.eq.s32.totalorder %s10, 1
    %p49 = scmp.ne.s32.totalorder %s44, %s46
    %p50 = scmp.eq.s32.totalorder %s10, 0
    %p51 = por %p49, %p50
    %p52 = scmp.ne.s32.totalorder %s44, %s46
    %p53 = scmp.eq.s32.totalorder %s15, 1
    %p54 = por %p52, %p53
    %p55 = scmp.ne.s32.totalorder %s46, %s47
    %p56 = scmp.eq.s32.totalorder %s15, 0
    %p57 = por %p55, %p56
    %p58 = scmp.ne.s32.totalorder %s46, %s47
    %p59 = scmp.eq.s32.totalorder %s16, 1
    %p60 = por %p58, %p59
    %p62 = scmp.ne.s32.totalorder %s47, %s61
    %p63 = scmp.eq.s32.totalorder %s16, 0
    %p64 = por %p62, %p63
    %s66 = sadd.s32 %s65, 1
    %p69 = scmp.eq.s32.totalorder %s10, 1
    %p70 = scmp.ne.s32.totalorder %s65, %s67
    %p71 = scmp.eq.s32.totalorder %s10, 0
    %p72 = por %p70, %p71
    %p73 = scmp.ne.s32.totalorder %s65, %s67
    %p74 = scmp.eq.s32.totalorder %s15, 1
    %p75 = por %p73, %p74
    %p76 = scmp.ne.s32.totalorder %s67, %s68
    %p77 = scmp.eq.s32.totalorder %s15, 0
    %p78 = por %p76, %p77
    %p79 = scmp.ne.s32.totalorder %s67, %s68
    %p80 = scmp.eq.s32.totalorder %s16, 1
    %p81 = por %p79, %p80
    %p83 = scmp.ne.s32.totalorder %s68, %s82
    %p84 = scmp.eq.s32.totalorder %s16, 0
    %p85 = por %p83, %p84
    %s87 = sadd.s32 %s86, 1
    %p90 = scmp.eq.s32.totalorder %s10, 1
    %p91 = scmp.ne.s32.totalorder %s86, %s88
    %p92 = scmp.eq.s32.totalorder %s10, 0
    %p93 = por %p91, %p92
    %p94 = scmp.ne.s32.totalorder %s86, %s88
    %p95 = scmp.eq.s32.totalorder %s15, 1
    %p96 = por %p94, %p95
    %p97 = scmp.ne.s32.totalorder %s88, %s89
    %p98 = scmp.eq.s32.totalorder %s15, 0
    %p99 = por %p97, %p98
    %p100 = scmp.ne.s32.totalorder %s88, %s89
    %p101 = scmp.eq.s32.totalorder %s16, 1
    %p102 = por %p100, %p101
    %p104 = scmp.ne.s32.totalorder %s89, %s103
    %p105 = scmp.eq.s32.totalorder %s16, 0
    %p106 = por %p104, %p105
    %s107 = ssub.s32 %s10, %s17
    %p108 = scmp.eq.s32.totalorder %s107, 0
    %s110 = sadd.s32 %s109, 1
    %s111 = scalar_select %p108, %s109, %s110
    %p114 = pneg %p108
    %p115 = scmp.eq.s32.totalorder %s10, 1
    %p116 = por %p114, %p115
    %p117 = scmp.ne.s32.totalorder %s109, %s112
    %p118 = scmp.eq.s32.totalorder %s10, 0
    %p119 = por %p117, %p118
    %p120 = scmp.ne.s32.totalorder %s109, %s112
    %p121 = scmp.eq.s32.totalorder %s15, 1
    %p122 = por %p120, %p121
    %p123 = scmp.ne.s32.totalorder %s112, %s113
    %p124 = scmp.eq.s32.totalorder %s15, 0
    %p125 = por %p123, %p124
    %p126 = scmp.ne.s32.totalorder %s112, %s113
    %p127 = scmp.eq.s32.totalorder %s16, 1
    %p128 = por %p126, %p127
    %p130 = scmp.ne.s32.totalorder %s113, %s129
    %p131 = scmp.eq.s32.totalorder %s16, 0
    %p132 = por %p130, %p131
    %p133 = scmp.le.s32.totalorder 1, %s10
    %p134 = scmp.lt.s32.totalorder %s10, 3
    %p135 = pnand %p133, %p134
    %p136 = pneg %p135
    // Predicated region
    $region9: #{bottleneck_pallas.3} parent=5 // pred_check
      _
    $region10: #{bottleneck_pallas.3} parent=5 // pred_check_branch
      %138 = sbr.rel (%p135) target = $region12
    $region11: #{bottleneck_pallas.3} parent=5 // pred_region
      %s139 = ssub.s32 %s10, 1
      // Predicated region
      $region13: #{bottleneck_pallas.3} parent=11 // pred_check
        %p140 = pneg %p57
      $region14: #{bottleneck_pallas.3} parent=11 // pred_check_branch
        %142 = sbr.rel (%p140) target = $region16
      $region15: #{bottleneck_pallas.3} parent=11 // pred_region
        _
      $region16: #{bottleneck_pallas.3} parent=11 // pred_fallthru
        _
      // Predicated region
      $region17: #{bottleneck_pallas.3} parent=11 // pred_check
        %p143 = pneg %p78
      $region18: #{bottleneck_pallas.3} parent=11 // pred_check_branch
        %145 = sbr.rel (%p143) target = $region20
      $region19: #{bottleneck_pallas.3} parent=11 // pred_region
        _
      $region20: #{bottleneck_pallas.3} parent=11 // pred_fallthru
        _
      // Predicated region
      $region21: #{bottleneck_pallas.3} parent=11 // pred_check
        %p146 = pneg %p99
      $region22: #{bottleneck_pallas.3} parent=11 // pred_check_branch
        %148 = sbr.rel (%p146) target = $region24
      $region23: #{bottleneck_pallas.3} parent=11 // pred_region
        _
      $region24: #{bottleneck_pallas.3} parent=11 // pred_fallthru
        _
    $region12: #{bottleneck_pallas.3} parent=5 // pred_fallthru
      _
    %p149 = scmp.lt.s32.totalorder %s10, 2
    // Predicated region
    $region25: #{bottleneck_pallas.3} parent=5 // pred_check
      %p150 = pneg %p149
    $region26: #{bottleneck_pallas.3} parent=5 // pred_check_branch
      %152 = sbr.rel (%p150) target = $region28
    $region27: #{bottleneck_pallas.3} parent=5 // pred_region
      // Predicated region
      $region29: #{bottleneck_pallas.3} parent=27 // pred_check
        %p153 = pneg %p30
      $region30: #{bottleneck_pallas.3} parent=27 // pred_check_branch
        %155 = sbr.rel (%p153) target = $region32
      $region31: #{bottleneck_pallas.3} parent=27 // pred_region
        %s156 = smul.u32 32, %s10
        %p157 = scmp.lt.s32.totalorder %s156, 63
        %s158 = scalar_select %p157, %s156, 63
        %s159 = smul.addr %s158, 4
        %s160 = scalar_lea.vmem %s0, %s159
        %s161 = smul.u32 32, %s10
      $region32: #{bottleneck_pallas.3} parent=27 // pred_fallthru
        _
    $region28: #{bottleneck_pallas.3} parent=5 // pred_fallthru
      _
    %p162 = scmp.le.s32.totalorder 1, %s10
    %p163 = scmp.lt.s32.totalorder %s10, 3
    %p164 = pnand %p162, %p163
    %p165 = pneg %p164
    // Predicated region
    $region33: #{bottleneck_pallas.3} parent=5 // pred_check
      _
    $region34: #{bottleneck_pallas.3} parent=5 // pred_check_branch
      %167 = sbr.rel (%p164) target = $region36
    $region35: #{bottleneck_pallas.3} parent=5 // pred_region
      %s168 = ssub.s32 %s10, 1
      %s169 = smul.u32 32, %s15
      %p170 = scmp.lt.s32.totalorder %s169, 63
      %s171 = scalar_select %p170, %s169, 63
      %s172 = smul.addr %s171, 4
      %s173 = scalar_lea.vmem %s0, %s172
      %p174 = pneg %p36
      %p175 = pneg %p33
      %p176 = pneg %p57
      %p177 = pneg %p54
      %p178 = pneg %p78
      %p179 = pneg %p75
      %p180 = pneg %p99
      %p181 = pneg %p96
      %p182 = pneg %p125
      %p183 = pneg %p122
      %s184 = smul.u32 32, %s15
      %p185 = scmp.lt.s32.totalorder %s184, 63
      %s186 = scalar_select %p185, %s184, 63
      %s187 = smul.addr %s186, 4
      %s188 = scalar_lea.vmem %s4, %s187
      %s189 = smul.u32 32, %s15
      %p190 = scmp.lt.s32.totalorder %s189, 63
      %s191 = scalar_select %p190, %s189, 63
      %s192 = smul.addr %s191, 4
      %s193 = scalar_lea.vmem %s0, %s192
      %s194 = smul.u32 32, %s15
      %s195 = smul.u32 32, %s15
      %p196 = scmp.lt.s32.totalorder %s195, 63
      %s197 = scalar_select %p196, %s195, 63
      %s198 = smul.addr %s197, 4
      %s199 = scalar_lea.vmem %s4, %s198
      %s200 = smul.u32 32, %s15
      %v202 = vld [vmem:[%s193] sm:$0xf]
      %v203 = vld [vmem:[%s193 + $0x4] sm:$0xf]
      %v204 = vld [vmem:[%s193 + $0x8] sm:$0xf]
      %v205 = vld [vmem:[%s193 + $0xc] sm:$0xf]
      %v206 = vld [vmem:[%s193 + $0x10] sm:$0xf]
      %v207 = vld [vmem:[%s193 + $0x14] sm:$0xf]
      %v208 = vld [vmem:[%s193 + $0x18] sm:$0xf]
      %v209 = vld [vmem:[%s193 + $0x1c] sm:$0xf]
      %v210 = vld [vmem:[%s193 + $0x20] sm:$0xf]
      %v211 = vld [vmem:[%s193 + $0x24] sm:$0xf]
      %v212 = vld [vmem:[%s193 + $0x28] sm:$0xf]
      %v213 = vld [vmem:[%s193 + $0x2c] sm:$0xf]
      %v214 = vld [vmem:[%s193 + $0x30] sm:$0xf]
      %v215 = vld [vmem:[%s193 + $0x34] sm:$0xf]
      %v216 = vld [vmem:[%s193 + $0x38] sm:$0xf]
      %v217 = vld [vmem:[%s193 + $0x3c] sm:$0xf]
      %v218 = vld [vmem:[%s193 + $0x40] sm:$0xf]
      %v219 = vld [vmem:[%s193 + $0x44] sm:$0xf]
      %v220 = vld [vmem:[%s193 + $0x48] sm:$0xf]
      %v221 = vld [vmem:[%s193 + $0x4c] sm:$0xf]
      %v222 = vld [vmem:[%s193 + $0x50] sm:$0xf]
      %v223 = vld [vmem:[%s193 + $0x54] sm:$0xf]
      %v224 = vld [vmem:[%s193 + $0x58] sm:$0xf]
      %v225 = vld [vmem:[%s193 + $0x5c] sm:$0xf]
      %v226 = vld [vmem:[%s193 + $0x60] sm:$0xf]
      %v227 = vld [vmem:[%s193 + $0x64] sm:$0xf]
      %v228 = vld [vmem:[%s193 + $0x68] sm:$0xf]
      %v229 = vld [vmem:[%s193 + $0x6c] sm:$0xf]
      %v230 = vld [vmem:[%s193 + $0x70] sm:$0xf]
      %v231 = vld [vmem:[%s193 + $0x74] sm:$0xf]
      %v232 = vld [vmem:[%s193 + $0x78] sm:$0xf]
      %v233 = vld [vmem:[%s193 + $0x7c] sm:$0xf]
      %v234 = vld [vmem:[%s1] sm:$0xf]
      %v235 = vld [vmem:[%s1 + $0x4] sm:$0xf]
      %v236 = vld [vmem:[%s1 + $0x8] sm:$0xf]
      %v237 = vld [vmem:[%s1 + $0xc] sm:$0xf]
      %v238 = vld [vmem:[%s1 + $0x10] sm:$0xf]
      %v239 = vld [vmem:[%s1 + $0x14] sm:$0xf]
      %v240 = vld [vmem:[%s1 + $0x18] sm:$0xf]
      %v241 = vld [vmem:[%s1 + $0x1c] sm:$0xf]
      %v242 = vld [vmem:[%s1 + $0x20] sm:$0xf]
      %v243 = vld [vmem:[%s1 + $0x24] sm:$0xf]
      %v244 = vld [vmem:[%s1 + $0x28] sm:$0xf]
      %v245 = vld [vmem:[%s1 + $0x2c] sm:$0xf]
      %v246 = vld [vmem:[%s1 + $0x30] sm:$0xf]
      %v247 = vld [vmem:[%s1 + $0x34] sm:$0xf]
      %v248 = vld [vmem:[%s1 + $0x38] sm:$0xf]
      %v249 = vld [vmem:[%s1 + $0x3c] sm:$0xf]
      %v282 = vunpack.c.l.b16 %v202
      %v283 = vunpack.c.l.b16 %v203
      %v284 = vunpack.c.l.b16 %v204
      %v285 = vunpack.c.l.b16 %v205
      %v286 = vunpack.c.l.b16 %v206
      %v287 = vunpack.c.l.b16 %v207
      %v288 = vunpack.c.l.b16 %v208
      %v289 = vunpack.c.l.b16 %v209
      %v290 = vunpack.c.l.b16 %v210
      %v291 = vunpack.c.l.b16 %v211
      %v292 = vunpack.c.l.b16 %v212
      %v293 = vunpack.c.l.b16 %v213
      %v294 = vunpack.c.l.b16 %v214
      %v295 = vunpack.c.l.b16 %v215
      %v296 = vunpack.c.l.b16 %v216
      %v297 = vunpack.c.l.b16 %v217
      %v298 = vunpack.c.l.b16 %v218
      %v299 = vunpack.c.l.b16 %v219
      %v300 = vunpack.c.l.b16 %v220
      %v301 = vunpack.c.l.b16 %v221
      %v302 = vunpack.c.l.b16 %v222
      %v303 = vunpack.c.l.b16 %v223
      %v304 = vunpack.c.l.b16 %v224
      %v305 = vunpack.c.l.b16 %v225
      %v306 = vunpack.c.l.b16 %v226
      %v307 = vunpack.c.l.b16 %v227
      %v308 = vunpack.c.l.b16 %v228
      %v309 = vunpack.c.l.b16 %v229
      %v310 = vunpack.c.l.b16 %v230
      %v311 = vunpack.c.l.b16 %v231
      %v312 = vunpack.c.l.b16 %v232
      %v313 = vunpack.c.l.b16 %v233
      %v314 = vpack.c.b16 %v283, %v282
      %v315 = vpack.c.b16 %v285, %v284
      %v316 = vpack.c.b16 %v287, %v286
      %v317 = vpack.c.b16 %v289, %v288
      %v318 = vpack.c.b16 %v291, %v290
      %v319 = vpack.c.b16 %v293, %v292
      %v320 = vpack.c.b16 %v295, %v294
      %v321 = vpack.c.b16 %v297, %v296
      %v322 = vpack.c.b16 %v299, %v298
      %v323 = vpack.c.b16 %v301, %v300
      %v324 = vpack.c.b16 %v303, %v302
      %v325 = vpack.c.b16 %v305, %v304
      %v326 = vpack.c.b16 %v307, %v306
      %v327 = vpack.c.b16 %v309, %v308
      %v328 = vpack.c.b16 %v311, %v310
      %v329 = vpack.c.b16 %v313, %v312
      %v362 = vunpack.c.l.b16 %v234
      %v363 = vunpack.c.l.b16 %v235
      %v364 = vunpack.c.l.b16 %v236
      %v365 = vunpack.c.l.b16 %v237
      %v366 = vunpack.c.l.b16 %v238
      %v367 = vunpack.c.l.b16 %v239
      %v368 = vunpack.c.l.b16 %v240
      %v369 = vunpack.c.l.b16 %v241
      %v370 = vunpack.c.l.b16 %v242
      %v371 = vunpack.c.l.b16 %v243
      %v372 = vunpack.c.l.b16 %v244
      %v373 = vunpack.c.l.b16 %v245
      %v374 = vunpack.c.l.b16 %v246
      %v375 = vunpack.c.l.b16 %v247
      %v376 = vunpack.c.l.b16 %v248
      %v377 = vunpack.c.l.b16 %v249
      %v378 = vpack.c.b16 %v363, %v362
      %v379 = vpack.c.b16 %v365, %v364
      %v380 = vpack.c.b16 %v367, %v366
      %v381 = vpack.c.b16 %v369, %v368
      %v382 = vpack.c.b16 %v371, %v370
      %v383 = vpack.c.b16 %v373, %v372
      %v384 = vpack.c.b16 %v375, %v374
      %v385 = vpack.c.b16 %v377, %v376
      %394 = vmatprep.subr.bf16.mxu0 0
      %395 = vmatpush1.bf16.msra.mxu0 %v378
      %396 = vmatprep.subr.bf16.mxu0 0
      %397 = vmatpush1.bf16.msra.mxu0 %v379
      %398 = vmatprep.subr.bf16.mxu0 0
      %399 = vmatpush1.bf16.msra.mxu0 %v380
      %400 = vmatprep.subr.bf16.mxu0 0
      %401 = vmatpush1.bf16.msra.mxu0 %v381
      %402 = vmatprep.subr.bf16.mxu0 0
      %403 = vmatpush1.bf16.msra.mxu0 %v382
      %404 = vmatprep.subr.bf16.mxu0 0
      %405 = vmatpush1.bf16.msra.mxu0 %v383
      %406 = vmatprep.subr.bf16.mxu0 0
      %407 = vmatpush1.bf16.msra.mxu0 %v384
      %408 = vmatprep.subr.bf16.mxu0 0
      %409 = vmatpush1.bf16.msra.mxu0 %v385
      %410 = vmatprep.subr.bf16.mxu0 0
      %411 = vmatpush1.bf16.msra.mxu0 0
      %412 = vmatprep.subr.bf16.mxu0 0
      %413 = vmatpush1.bf16.msra.mxu0 0
      %414 = vmatprep.subr.bf16.mxu0 0
      %415 = vmatpush1.bf16.msra.mxu0 0
      %416 = vmatprep.subr.bf16.mxu0 0
      %417 = vmatpush1.bf16.msra.mxu0 0
      %418 = vmatprep.subr.bf16.mxu0 0
      %419 = vmatpush1.bf16.msra.mxu0 0
      %420 = vmatprep.subr.bf16.mxu0 0
      %421 = vmatpush1.bf16.msra.mxu0 0
      %422 = vmatprep.subr.bf16.mxu0 0
      %423 = vmatpush1.bf16.msra.mxu0 0
      %424 = vmatprep.subr.bf16.mxu0 0
      %425 = vmatpush1.bf16.msra.mxu0 0
      %426 = vmatprep.mubr.bf16.mxu0 0
      %427 = vmatmul.mubr.bf16.gmra.mrb[0].mxu0 %v314
      %v428 = vpop.f32.mrb[0].mxu0
      %v429 = vadd.f32 0.0, %v428
      %v430 = vpop.f32.mrb[0].mxu0
      %v431 = vpop.f32.mrb[0].mxu0
      %v432 = vadd.f32 0.0, %v431
      %v433 = vpop.f32.mrb[0].mxu0
      %434 = vmatprep.mubr.bf16.mxu0 0
      %435 = vmatmul.mubr.bf16.gmra.mrb[0].mxu0 %v315
      %v436 = vpop.f32.mrb[0].mxu0
      %v437 = vadd.f32 0.0, %v436
      %v438 = vpop.f32.mrb[0].mxu0
      %v439 = vpop.f32.mrb[0].mxu0
      %v440 = vadd.f32 0.0, %v439
      %v441 = vpop.f32.mrb[0].mxu0
      %442 = vmatprep.mubr.bf16.mxu0 0
      %443 = vmatmul.mubr.bf16.gmra.mrb[0].mxu0 %v316
      %v444 = vpop.f32.mrb[0].mxu0
      %v445 = vadd.f32 0.0, %v444
      %v446 = vpop.f32.mrb[0].mxu0
      %v447 = vpop.f32.mrb[0].mxu0
      %v448 = vadd.f32 0.0, %v447
      %v449 = vpop.f32.mrb[0].mxu0
      %450 = vmatprep.mubr.bf16.mxu0 0
      %451 = vmatmul.mubr.bf16.gmra.mrb[0].mxu0 %v317
      %v452 = vpop.f32.mrb[0].mxu0
      %v453 = vadd.f32 0.0, %v452
      %v454 = vpop.f32.mrb[0].mxu0
      %v455 = vpop.f32.mrb[0].mxu0
      %v456 = vadd.f32 0.0, %v455
      %v457 = vpop.f32.mrb[0].mxu0
      %458 = vmatprep.mubr.bf16.mxu0 0
      %459 = vmatmul.mubr.bf16.gmra.mrb[0].mxu0 %v318
      %v460 = vpop.f32.mrb[0].mxu0
      %v461 = vadd.f32 0.0, %v460
      %v462 = vpop.f32.mrb[0].mxu0
      %v463 = vpop.f32.mrb[0].mxu0
      %v464 = vadd.f32 0.0, %v463
      %v465 = vpop.f32.mrb[0].mxu0
      %466 = vmatprep.mubr.bf16.mxu0 0
      %467 = vmatmul.mubr.bf16.gmra.mrb[0].mxu0 %v319
      %v468 = vpop.f32.mrb[0].mxu0
      %v469 = vadd.f32 0.0, %v468
      %v470 = vpop.f32.mrb[0].mxu0
      %v471 = vpop.f32.mrb[0].mxu0
      %v472 = vadd.f32 0.0, %v471
      %v473 = vpop.f32.mrb[0].mxu0
      %474 = vmatprep.mubr.bf16.mxu0 0
      %475 = vmatmul.mubr.bf16.gmra.mrb[0].mxu0 %v320
      %v476 = vpop.f32.mrb[0].mxu0
      %v477 = vadd.f32 0.0, %v476
      %v478 = vpop.f32.mrb[0].mxu0
      %v479 = vpop.f32.mrb[0].mxu0
      %v480 = vadd.f32 0.0, %v479
      %v481 = vpop.f32.mrb[0].mxu0
      %482 = vmatprep.mubr.bf16.mxu0 0
      %483 = vmatmul.mubr.bf16.gmra.mrb[0].mxu0 %v321
      %v484 = vpop.f32.mrb[0].mxu0
      %v485 = vadd.f32 0.0, %v484
      %v486 = vpop.f32.mrb[0].mxu0
      %v487 = vpop.f32.mrb[0].mxu0
      %v488 = vadd.f32 0.0, %v487
      %v489 = vpop.f32.mrb[0].mxu0
      %490 = vmatprep.mubr.bf16.mxu0 0
      %491 = vmatmul.mubr.bf16.gmra.mrb[0].mxu0 %v322
      %v492 = vpop.f32.mrb[0].mxu0
      %v493 = vadd.f32 0.0, %v492
      %v494 = vpop.f32.mrb[0].mxu0
      %v495 = vpop.f32.mrb[0].mxu0
      %v496 = vadd.f32 0.0, %v495
      %v497 = vpop.f32.mrb[0].mxu0
      %498 = vmatprep.mubr.bf16.mxu0 0
      %499 = vmatmul.mubr.bf16.gmra.mrb[0].mxu0 %v323
      %v500 = vpop.f32.mrb[0].mxu0
      %v501 = vadd.f32 0.0, %v500
      %v502 = vpop.f32.mrb[0].mxu0
      %v503 = vpop.f32.mrb[0].mxu0
      %v504 = vadd.f32 0.0, %v503
      %v505 = vpop.f32.mrb[0].mxu0
      %506 = vmatprep.mubr.bf16.mxu0 0
      %507 = vmatmul.mubr.bf16.gmra.mrb[0].mxu0 %v324
      %v508 = vpop.f32.mrb[0].mxu0
      %v509 = vadd.f32 0.0, %v508
      %v510 = vpop.f32.mrb[0].mxu0
      %v511 = vpop.f32.mrb[0].mxu0
      %v512 = vadd.f32 0.0, %v511
      %v513 = vpop.f32.mrb[0].mxu0
      %514 = vmatprep.mubr.bf16.mxu0 0
      %515 = vmatmul.mubr.bf16.gmra.mrb[0].mxu0 %v325
      %v516 = vpop.f32.mrb[0].mxu0
      %v517 = vadd.f32 0.0, %v516
      %v518 = vpop.f32.mrb[0].mxu0
      %v519 = vpop.f32.mrb[0].mxu0
      %v520 = vadd.f32 0.0, %v519
      %v521 = vpop.f32.mrb[0].mxu0
      %522 = vmatprep.mubr.bf16.mxu0 0
      %523 = vmatmul.mubr.bf16.gmra.mrb[0].mxu0 %v326
      %v524 = vpop.f32.mrb[0].mxu0
      %v525 = vadd.f32 0.0, %v524
      %v526 = vpop.f32.mrb[0].mxu0
      %v527 = vpop.f32.mrb[0].mxu0
      %v528 = vadd.f32 0.0, %v527
      %v529 = vpop.f32.mrb[0].mxu0
      %530 = vmatprep.mubr.bf16.mxu0 0
      %531 = vmatmul.mubr.bf16.gmra.mrb[0].mxu0 %v327
      %v532 = vpop.f32.mrb[0].mxu0
      %v533 = vadd.f32 0.0, %v532
      %v534 = vpop.f32.mrb[0].mxu0
      %v535 = vpop.f32.mrb[0].mxu0
      %v536 = vadd.f32 0.0, %v535
      %v537 = vpop.f32.mrb[0].mxu0
      %538 = vmatprep.mubr.bf16.mxu0 0
      %539 = vmatmul.mubr.bf16.gmra.mrb[0].mxu0 %v328
      %v540 = vpop.f32.mrb[0].mxu0
      %v541 = vadd.f32 0.0, %v540
      %v542 = vpop.f32.mrb[0].mxu0
      %v543 = vpop.f32.mrb[0].mxu0
      %v544 = vadd.f32 0.0, %v543
      %v545 = vpop.f32.mrb[0].mxu0
      %546 = vmatprep.mubr.bf16.mxu0 0
      %547 = vmatmul.mubr.bf16.gmra.mrb[0].mxu0 %v329
      %v548 = vpop.f32.mrb[0].mxu0
      %v549 = vadd.f32 0.0, %v548
      %v550 = vpop.f32.mrb[0].mxu0
      %v551 = vpop.f32.mrb[0].mxu0
      %v552 = vadd.f32 0.0, %v551
      %v553 = vpop.f32.mrb[0].mxu0
      %554 = vdwg.mxu0
      %v555 = vld [vmem:[%s2] sm:$0x1]
      %v557 = vlaneseq
      %v558 = vshrl.u32 %v557, 7
      %v559 = vsub.s32 0, %v558
      %v560 = vrot.slane %v555, %v559
      %v562 = vmul.f32 %v429, %v560
      %v563 = vmul.f32 %v432, %v560
      %v564 = vmul.f32 %v437, %v560
      %v565 = vmul.f32 %v440, %v560
      %v566 = vmul.f32 %v445, %v560
      %v567 = vmul.f32 %v448, %v560
      %v568 = vmul.f32 %v453, %v560
      %v569 = vmul.f32 %v456, %v560
      %v570 = vmul.f32 %v461, %v560
      %v571 = vmul.f32 %v464, %v560
      %v572 = vmul.f32 %v469, %v560
      %v573 = vmul.f32 %v472, %v560
      %v574 = vmul.f32 %v477, %v560
      %v575 = vmul.f32 %v480, %v560
      %v576 = vmul.f32 %v485, %v560
      %v577 = vmul.f32 %v488, %v560
      %v578 = vmul.f32 %v493, %v560
      %v579 = vmul.f32 %v496, %v560
      %v580 = vmul.f32 %v501, %v560
      %v581 = vmul.f32 %v504, %v560
      %v582 = vmul.f32 %v509, %v560
      %v583 = vmul.f32 %v512, %v560
      %v584 = vmul.f32 %v517, %v560
      %v585 = vmul.f32 %v520, %v560
      %v586 = vmul.f32 %v525, %v560
      %v587 = vmul.f32 %v528, %v560
      %v588 = vmul.f32 %v533, %v560
      %v589 = vmul.f32 %v536, %v560
      %v590 = vmul.f32 %v541, %v560
      %v591 = vmul.f32 %v544, %v560
      %v592 = vmul.f32 %v549, %v560
      %v593 = vmul.f32 %v552, %v560
      %v594 = vld [vmem:[%s3] sm:$0x1]
      %v596 = vlaneseq
      %v597 = vshrl.u32 %v596, 7
      %v598 = vsub.s32 0, %v597
      %v599 = vrot.slane %v594, %v598
      %v601 = vadd.f32 %v562, %v599
      %v602 = vadd.f32 %v563, %v599
      %v603 = vadd.f32 %v564, %v599
      %v604 = vadd.f32 %v565, %v599
      %v605 = vadd.f32 %v566, %v599
      %v606 = vadd.f32 %v567, %v599
      %v607 = vadd.f32 %v568, %v599
      %v608 = vadd.f32 %v569, %v599
      %v609 = vadd.f32 %v570, %v599
      %v610 = vadd.f32 %v571, %v599
      %v611 = vadd.f32 %v572, %v599
      %v612 = vadd.f32 %v573, %v599
      %v613 = vadd.f32 %v574, %v599
      %v614 = vadd.f32 %v575, %v599
      %v615 = vadd.f32 %v576, %v599
      %v616 = vadd.f32 %v577, %v599
      %v617 = vadd.f32 %v578, %v599
      %v618 = vadd.f32 %v579, %v599
      %v619 = vadd.f32 %v580, %v599
      %v620 = vadd.f32 %v581, %v599
      %v621 = vadd.f32 %v582, %v599
      %v622 = vadd.f32 %v583, %v599
      %v623 = vadd.f32 %v584, %v599
      %v624 = vadd.f32 %v585, %v599
      %v625 = vadd.f32 %v586, %v599
      %v626 = vadd.f32 %v587, %v599
      %v627 = vadd.f32 %v588, %v599
      %v628 = vadd.f32 %v589, %v599
      %v629 = vadd.f32 %v590, %v599
      %v630 = vadd.f32 %v591, %v599
      %v631 = vadd.f32 %v592, %v599
      %v632 = vadd.f32 %v593, %v599
      %v633 = vmax.f32 %v601, 0.0
      %v634 = vmax.f32 %v602, 0.0
      %v635 = vmax.f32 %v603, 0.0
      %v636 = vmax.f32 %v604, 0.0
      %v637 = vmax.f32 %v605, 0.0
      %v638 = vmax.f32 %v606, 0.0
      %v639 = vmax.f32 %v607, 0.0
      %v640 = vmax.f32 %v608, 0.0
      %v641 = vmax.f32 %v609, 0.0
      %v642 = vmax.f32 %v610, 0.0
      %v643 = vmax.f32 %v611, 0.0
      %v644 = vmax.f32 %v612, 0.0
      %v645 = vmax.f32 %v613, 0.0
      %v646 = vmax.f32 %v614, 0.0
      %v647 = vmax.f32 %v615, 0.0
      %v648 = vmax.f32 %v616, 0.0
      %v649 = vmax.f32 %v617, 0.0
      %v650 = vmax.f32 %v618, 0.0
      %v651 = vmax.f32 %v619, 0.0
      %v652 = vmax.f32 %v620, 0.0
      %v653 = vmax.f32 %v621, 0.0
      %v654 = vmax.f32 %v622, 0.0
      %v655 = vmax.f32 %v623, 0.0
      %v656 = vmax.f32 %v624, 0.0
      %v657 = vmax.f32 %v625, 0.0
      %v658 = vmax.f32 %v626, 0.0
      %v659 = vmax.f32 %v627, 0.0
      %v660 = vmax.f32 %v628, 0.0
      %v661 = vmax.f32 %v629, 0.0
      %v662 = vmax.f32 %v630, 0.0
      %v663 = vmax.f32 %v631, 0.0
      %v664 = vmax.f32 %v632, 0.0
      %v665 = vpack.c.bf16 %v634, %v633
      %v666 = vpack.c.bf16 %v636, %v635
      %v667 = vpack.c.bf16 %v638, %v637
      %v668 = vpack.c.bf16 %v640, %v639
      %v669 = vpack.c.bf16 %v642, %v641
      %v670 = vpack.c.bf16 %v644, %v643
      %v671 = vpack.c.bf16 %v646, %v645
      %v672 = vpack.c.bf16 %v648, %v647
      %v673 = vpack.c.bf16 %v650, %v649
      %v674 = vpack.c.bf16 %v652, %v651
      %v675 = vpack.c.bf16 %v654, %v653
      %v676 = vpack.c.bf16 %v656, %v655
      %v677 = vpack.c.bf16 %v658, %v657
      %v678 = vpack.c.bf16 %v660, %v659
      %v679 = vpack.c.bf16 %v662, %v661
      %v680 = vpack.c.bf16 %v664, %v663
      %v697 = vunpack.c.l.b16 %v665
      %v698 = vunpack.c.h.b16 %v665
      %v699 = vunpack.c.l.b16 %v666
      %v700 = vunpack.c.h.b16 %v666
      %v701 = vunpack.c.l.b16 %v667
      %v702 = vunpack.c.h.b16 %v667
      %v703 = vunpack.c.l.b16 %v668
      %v704 = vunpack.c.h.b16 %v668
      %v705 = vunpack.c.l.b16 %v669
      %v706 = vunpack.c.h.b16 %v669
      %v707 = vunpack.c.l.b16 %v670
      %v708 = vunpack.c.h.b16 %v670
      %v709 = vunpack.c.l.b16 %v671
      %v710 = vunpack.c.h.b16 %v671
      %v711 = vunpack.c.l.b16 %v672
      %v712 = vunpack.c.h.b16 %v672
      %v713 = vunpack.c.l.b16 %v673
      %v714 = vunpack.c.h.b16 %v673
      %v715 = vunpack.c.l.b16 %v674
      %v716 = vunpack.c.h.b16 %v674
      %v717 = vunpack.c.l.b16 %v675
      %v718 = vunpack.c.h.b16 %v675
      %v719 = vunpack.c.l.b16 %v676
      %v720 = vunpack.c.h.b16 %v676
      %v721 = vunpack.c.l.b16 %v677
      %v722 = vunpack.c.h.b16 %v677
      %v723 = vunpack.c.l.b16 %v678
      %v724 = vunpack.c.h.b16 %v678
      %v725 = vunpack.c.l.b16 %v679
      %v726 = vunpack.c.h.b16 %v679
      %v727 = vunpack.c.l.b16 %v680
      %v728 = vunpack.c.h.b16 %v680
      %v729 = vpack.c.b16 %v697, %v697
      %v730 = vpack.c.b16 %v698, %v698
      %v731 = vpack.c.b16 %v699, %v699
      %v732 = vpack.c.b16 %v700, %v700
      %v733 = vpack.c.b16 %v701, %v701
      %v734 = vpack.c.b16 %v702, %v702
      %v735 = vpack.c.b16 %v703, %v703
      %v736 = vpack.c.b16 %v704, %v704
      %v737 = vpack.c.b16 %v705, %v705
      %v738 = vpack.c.b16 %v706, %v706
      %v739 = vpack.c.b16 %v707, %v707
      %v740 = vpack.c.b16 %v708, %v708
      %v741 = vpack.c.b16 %v709, %v709
      %v742 = vpack.c.b16 %v710, %v710
      %v743 = vpack.c.b16 %v711, %v711
      %v744 = vpack.c.b16 %v712, %v712
      %v745 = vpack.c.b16 %v713, %v713
      %v746 = vpack.c.b16 %v714, %v714
      %v747 = vpack.c.b16 %v715, %v715
      %v748 = vpack.c.b16 %v716, %v716
      %v749 = vpack.c.b16 %v717, %v717
      %v750 = vpack.c.b16 %v718, %v718
      %v751 = vpack.c.b16 %v719, %v719
      %v752 = vpack.c.b16 %v720, %v720
      %v753 = vpack.c.b16 %v721, %v721
      %v754 = vpack.c.b16 %v722, %v722
      %v755 = vpack.c.b16 %v723, %v723
      %v756 = vpack.c.b16 %v724, %v724
      %v757 = vpack.c.b16 %v725, %v725
      %v758 = vpack.c.b16 %v726, %v726
      %v759 = vpack.c.b16 %v727, %v727
      %v760 = vpack.c.b16 %v728, %v728
      %793 = vst [vmem:[%s199] sm:$0xf] %v729
      %794 = vst [vmem:[%s199 + $0x4] sm:$0xf] %v730
      %795 = vst [vmem:[%s199 + $0x8] sm:$0xf] %v731
      %796 = vst [vmem:[%s199 + $0xc] sm:$0xf] %v732
      %797 = vst [vmem:[%s199 + $0x10] sm:$0xf] %v733
      %798 = vst [vmem:[%s199 + $0x14] sm:$0xf] %v734
      %799 = vst [vmem:[%s199 + $0x18] sm:$0xf] %v735
      %800 = vst [vmem:[%s199 + $0x1c] sm:$0xf] %v736
      %801 = vst [vmem:[%s199 + $0x20] sm:$0xf] %v737
      %802 = vst [vmem:[%s199 + $0x24] sm:$0xf] %v738
      %803 = vst [vmem:[%s199 + $0x28] sm:$0xf] %v739
      %804 = vst [vmem:[%s199 + $0x2c] sm:$0xf] %v740
      %805 = vst [vmem:[%s199 + $0x30] sm:$0xf] %v741
      %806 = vst [vmem:[%s199 + $0x34] sm:$0xf] %v742
      %807 = vst [vmem:[%s199 + $0x38] sm:$0xf] %v743
      %808 = vst [vmem:[%s199 + $0x3c] sm:$0xf] %v744
      %809 = vst [vmem:[%s199 + $0x40] sm:$0xf] %v745
      %810 = vst [vmem:[%s199 + $0x44] sm:$0xf] %v746
      %811 = vst [vmem:[%s199 + $0x48] sm:$0xf] %v747
      %812 = vst [vmem:[%s199 + $0x4c] sm:$0xf] %v748
      %813 = vst [vmem:[%s199 + $0x50] sm:$0xf] %v749
      %814 = vst [vmem:[%s199 + $0x54] sm:$0xf] %v750
      %815 = vst [vmem:[%s199 + $0x58] sm:$0xf] %v751
      %816 = vst [vmem:[%s199 + $0x5c] sm:$0xf] %v752
      %817 = vst [vmem:[%s199 + $0x60] sm:$0xf] %v753
      %818 = vst [vmem:[%s199 + $0x64] sm:$0xf] %v754
      %819 = vst [vmem:[%s199 + $0x68] sm:$0xf] %v755
      %820 = vst [vmem:[%s199 + $0x6c] sm:$0xf] %v756
      %821 = vst [vmem:[%s199 + $0x70] sm:$0xf] %v757
      %822 = vst [vmem:[%s199 + $0x74] sm:$0xf] %v758
      %823 = vst [vmem:[%s199 + $0x78] sm:$0xf] %v759
      %824 = vst [vmem:[%s199 + $0x7c] sm:$0xf] %v760
      %s825 = smul.u32 32, %s15
      %p826 = scmp.lt.s32.totalorder %s825, 63
      %s827 = scalar_select %p826, %s825, 63
      %s828 = smul.addr %s827, 4
      %s829 = scalar_lea.vmem %s4, %s828
      // Predicated region
      $region37: #{bottleneck_pallas.3} parent=35 // pred_check
        %p830 = pneg %p122
      $region38: #{bottleneck_pallas.3} parent=35 // pred_check_branch
        %832 = sbr.rel (%p830) target = $region40
      $region39: #{bottleneck_pallas.3} parent=35 // pred_region
        %s833 = smul.u32 32, %s15
      $region40: #{bottleneck_pallas.3} parent=35 // pred_fallthru
        _
    $region36: #{bottleneck_pallas.3} parent=5 // pred_fallthru
      _
    %p834 = scmp.le.s32.totalorder 2, %s10
    // Predicated region
    $region41: #{bottleneck_pallas.3} parent=5 // pred_check
      %p835 = pneg %p834
    $region42: #{bottleneck_pallas.3} parent=5 // pred_check_branch
      %837 = sbr.rel (%p835) target = $region44
    $region43: #{bottleneck_pallas.3} parent=5 // pred_region
      %s838 = ssub.s32 %s10, 2
      // Predicated region
      $region45: #{bottleneck_pallas.3} parent=43 // pred_check
        %p839 = pneg %p128
      $region46: #{bottleneck_pallas.3} parent=43 // pred_check_branch
        %841 = sbr.rel (%p839) target = $region48
      $region47: #{bottleneck_pallas.3} parent=43 // pred_region
        %s842 = smul.u32 32, %s16
        %p843 = scmp.lt.s32.totalorder %s842, 63
        %s844 = scalar_select %p843, %s842, 63
        %s845 = smul.addr %s844, 4
        %s846 = scalar_lea.vmem %s4, %s845
      $region48: #{bottleneck_pallas.3} parent=43 // pred_fallthru
        _
    $region44: #{bottleneck_pallas.3} parent=5 // pred_fallthru
      _
  $region6: #{bottleneck_pallas.3} parent=0 // loop_footer
    %s14 = sadd.s32 1, %s10
  $region7: #{bottleneck_pallas.3} parent=0 // loop_footer_branch
    %9 = sbr.rel target = $region3
  $region8: #{bottleneck_pallas.3} parent=0 // loop_exit
    _

// kernel: bottleneck_pallas.4
$region0: #{bottleneck_pallas.4}
  #allocation0 [shape = 'u32[]', space=smem, size = 0x4, offset = 0x4, fixed_abs, tag = 'smem constant byte address 0x4 - core index']
  #allocation1 [shape = 'u32[144,128]{1,0:T(1,128)}', space=vmem, size = 0x12000, scoped, tag = 'internal scratch']
  #allocation2 [shape = 'f32[10,10,128]{2,1,0:T(8,128)}', space=vmem, size = 0x14000, scoped, tag = 'scratch operand']
  %s0 = inlined_call_operand.vmem [shape: bf16[2,4,8,8,128], index: 0, kind: input, shape index: {}]
  %s1 = inlined_call_operand.vmem [shape: f32[3,3,3,128], index: 1, kind: input, shape index: {}]
  %s2 = inlined_call_operand.vmem [shape: f32[1,128], index: 2, kind: input, shape index: {}]
  %s3 = inlined_call_operand.vmem [shape: f32[1,128], index: 3, kind: input, shape index: {}]
  %s4 = inlined_call_operand.vmem [shape: bf16[2,4,8,8,128], index: 4, kind: output, shape index: {}]
  %s5 = sld [smem:[#allocation0]]
  $region49: #{bottleneck_pallas.4} parent=0
    _
  %s7 = ssub.s32 1, %s5
  %s8 = scalar_select 0, %s7, %s5
  loop: start=0, step=1, limit=10
  $region2: #{bottleneck_pallas.4} parent=0 // loop_pre_header
    _
  $region3: #{bottleneck_pallas.4} parent=0 // loop_header
    %s10 = sphi 0, %s14
    %p11 = scmp.ge.s32.totalorder %s10, 10
    %s17 = sphi 0, %s29
    %s18 = sphi 0, %s25
    %s19 = sphi 0, %s17
    %s20 = sphi 0, %s18
    %s21 = sphi 0, %s19
    %s22 = sphi 0, %s20
    %s32 = sphi 0, %s34
    %s35 = sphi 0, %s32
    %s36 = sphi 0, %s35
    %s52 = sphi 0, %s36
    %s56 = sphi 0, %s56
    %s58 = sphi 0, %s56
    %s59 = sphi 0, %s58
    %s73 = sphi 0, %s59
    %s77 = sphi 0, %s77
    %s79 = sphi 0, %s77
    %s80 = sphi 0, %s79
    %s94 = sphi 0, %s80
    %s98 = sphi 0, %s98
    %s100 = sphi 0, %s98
    %s101 = sphi 0, %s100
    %s115 = sphi 0, %s101
    %s123 = sphi 0, %s125
    %s126 = sphi 0, %s123
    %s127 = sphi 0, %s126
    %s143 = sphi 0, %s127
  $region4: #{bottleneck_pallas.4} parent=0 // loop_header_branch
    %13 = sbr.rel (%p11) target = $region8
  $region5: #{bottleneck_pallas.4} parent=0 // loop_body
    %s15 = ssub.s32 %s10, 1
    %s16 = ssub.s32 %s10, 2
    %s23 = sadd.s32 1, %s18
    %p24 = scmp.ge.s32.totalorder %s23, 4
    %s25 = scalar_select %p24, 0, %s23
    %s26 = sadd.s32 1, %s17
    %s27 = scalar_select %p24, %s26, %s17
    %p28 = scmp.ge.s32.totalorder %s27, 2
    %s29 = scalar_select %p28, 0, %s27
    %s30 = ssub.s32 %s17, %s29
    %p31 = scmp.eq.s32.totalorder %s30, 0
    %s33 = sadd.s32 %s32, 1
    %s34 = scalar_select %p31, %s32, %s33
    %p37 = pneg %p31
    %p38 = scmp.eq.s32.totalorder %s10, 7
    %p39 = por %p37, %p38
    %p40 = scmp.ne.s32.totalorder %s32, %s35
    %p41 = scmp.eq.s32.totalorder %s10, 0
    %p42 = por %p40, %p41
    %p43 = scmp.ne.s32.totalorder %s32, %s35
    %p44 = scmp.eq.s32.totalorder %s15, 7
    %p45 = por %p43, %p44
    %p46 = scmp.ne.s32.totalorder %s35, %s36
    %p47 = scmp.eq.s32.totalorder %s15, 0
    %p48 = por %p46, %p47
    %p49 = scmp.ne.s32.totalorder %s35, %s36
    %p50 = scmp.eq.s32.totalorder %s16, 7
    %p51 = por %p49, %p50
    %p53 = scmp.ne.s32.totalorder %s36, %s52
    %p54 = scmp.eq.s32.totalorder %s16, 0
    %p55 = por %p53, %p54
    %s57 = sadd.s32 %s56, 1
    %p60 = scmp.eq.s32.totalorder %s10, 7
    %p61 = scmp.ne.s32.totalorder %s56, %s58
    %p62 = scmp.eq.s32.totalorder %s10, 0
    %p63 = por %p61, %p62
    %p64 = scmp.ne.s32.totalorder %s56, %s58
    %p65 = scmp.eq.s32.totalorder %s15, 7
    %p66 = por %p64, %p65
    %p67 = scmp.ne.s32.totalorder %s58, %s59
    %p68 = scmp.eq.s32.totalorder %s15, 0
    %p69 = por %p67, %p68
    %p70 = scmp.ne.s32.totalorder %s58, %s59
    %p71 = scmp.eq.s32.totalorder %s16, 7
    %p72 = por %p70, %p71
    %p74 = scmp.ne.s32.totalorder %s59, %s73
    %p75 = scmp.eq.s32.totalorder %s16, 0
    %p76 = por %p74, %p75
    %s78 = sadd.s32 %s77, 1
    %p81 = scmp.eq.s32.totalorder %s10, 7
    %p82 = scmp.ne.s32.totalorder %s77, %s79
    %p83 = scmp.eq.s32.totalorder %s10, 0
    %p84 = por %p82, %p83
    %p85 = scmp.ne.s32.totalorder %s77, %s79
    %p86 = scmp.eq.s32.totalorder %s15, 7
    %p87 = por %p85, %p86
    %p88 = scmp.ne.s32.totalorder %s79, %s80
    %p89 = scmp.eq.s32.totalorder %s15, 0
    %p90 = por %p88, %p89
    %p91 = scmp.ne.s32.totalorder %s79, %s80
    %p92 = scmp.eq.s32.totalorder %s16, 7
    %p93 = por %p91, %p92
    %p95 = scmp.ne.s32.totalorder %s80, %s94
    %p96 = scmp.eq.s32.totalorder %s16, 0
    %p97 = por %p95, %p96
    %s99 = sadd.s32 %s98, 1
    %p102 = scmp.eq.s32.totalorder %s10, 7
    %p103 = scmp.ne.s32.totalorder %s98, %s100
    %p104 = scmp.eq.s32.totalorder %s10, 0
    %p105 = por %p103, %p104
    %p106 = scmp.ne.s32.totalorder %s98, %s100
    %p107 = scmp.eq.s32.totalorder %s15, 7
    %p108 = por %p106, %p107
    %p109 = scmp.ne.s32.totalorder %s100, %s101
    %p110 = scmp.eq.s32.totalorder %s15, 0
    %p111 = por %p109, %p110
    %p112 = scmp.ne.s32.totalorder %s100, %s101
    %p113 = scmp.eq.s32.totalorder %s16, 7
    %p114 = por %p112, %p113
    %p116 = scmp.ne.s32.totalorder %s101, %s115
    %p117 = scmp.eq.s32.totalorder %s16, 0
    %p118 = por %p116, %p117
    %s119 = ssub.s32 %s17, %s29
    %s120 = ssub.s32 %s18, %s25
    %s121 = sor.u32 %s119, %s120
    %p122 = scmp.eq.s32.totalorder %s121, 0
    %s124 = sadd.s32 %s123, 1
    %s125 = scalar_select %p122, %s123, %s124
    %p128 = pneg %p122
    %p129 = scmp.eq.s32.totalorder %s10, 7
    %p130 = por %p128, %p129
    %p131 = scmp.ne.s32.totalorder %s123, %s126
    %p132 = scmp.eq.s32.totalorder %s10, 0
    %p133 = por %p131, %p132
    %p134 = scmp.ne.s32.totalorder %s123, %s126
    %p135 = scmp.eq.s32.totalorder %s15, 7
    %p136 = por %p134, %p135
    %p137 = scmp.ne.s32.totalorder %s126, %s127
    %p138 = scmp.eq.s32.totalorder %s15, 0
    %p139 = por %p137, %p138
    %p140 = scmp.ne.s32.totalorder %s126, %s127
    %p141 = scmp.eq.s32.totalorder %s16, 7
    %p142 = por %p140, %p141
    %p144 = scmp.ne.s32.totalorder %s127, %s143
    %p145 = scmp.eq.s32.totalorder %s16, 0
    %p146 = por %p144, %p145
    %p147 = scmp.le.s32.totalorder 1, %s10
    %p148 = scmp.lt.s32.totalorder %s10, 9
    %p149 = pnand %p147, %p148
    %p150 = pneg %p149
    // Predicated region
    $region9: #{bottleneck_pallas.4} parent=5 // pred_check
      _
    $region10: #{bottleneck_pallas.4} parent=5 // pred_check_branch
      %152 = sbr.rel (%p149) target = $region12
    $region11: #{bottleneck_pallas.4} parent=5 // pred_region
      %s153 = ssub.s32 %s10, 1
      // Predicated region
      $region13: #{bottleneck_pallas.4} parent=11 // pred_check
        %p154 = pneg %p69
      $region14: #{bottleneck_pallas.4} parent=11 // pred_check_branch
        %156 = sbr.rel (%p154) target = $region16
      $region15: #{bottleneck_pallas.4} parent=11 // pred_region
        _
      $region16: #{bottleneck_pallas.4} parent=11 // pred_fallthru
        _
      // Predicated region
      $region17: #{bottleneck_pallas.4} parent=11 // pred_check
        %p157 = pneg %p90
      $region18: #{bottleneck_pallas.4} parent=11 // pred_check_branch
        %159 = sbr.rel (%p157) target = $region20
      $region19: #{bottleneck_pallas.4} parent=11 // pred_region
        _
      $region20: #{bottleneck_pallas.4} parent=11 // pred_fallthru
        _
      // Predicated region
      $region21: #{bottleneck_pallas.4} parent=11 // pred_check
        %p160 = pneg %p111
      $region22: #{bottleneck_pallas.4} parent=11 // pred_check_branch
        %162 = sbr.rel (%p160) target = $region24
      $region23: #{bottleneck_pallas.4} parent=11 // pred_region
        _
      $region24: #{bottleneck_pallas.4} parent=11 // pred_fallthru
        _
    $region12: #{bottleneck_pallas.4} parent=5 // pred_fallthru
      _
    %p163 = scmp.lt.s32.totalorder %s10, 8
    // Predicated region
    $region25: #{bottleneck_pallas.4} parent=5 // pred_check
      %p164 = pneg %p163
    $region26: #{bottleneck_pallas.4} parent=5 // pred_check_branch
      %166 = sbr.rel (%p164) target = $region28
    $region27: #{bottleneck_pallas.4} parent=5 // pred_region
      // Predicated region
      $region29: #{bottleneck_pallas.4} parent=27 // pred_check
        %p167 = pneg %p42
      $region30: #{bottleneck_pallas.4} parent=27 // pred_check_branch
        %169 = sbr.rel (%p167) target = $region32
      $region31: #{bottleneck_pallas.4} parent=27 // pred_region
        %p170 = scmp.lt.s32.totalorder %s17, 1
        %s171 = scalar_select %p170, %s17, 1
        %s172 = smul.addr %s171, 32
        %s173 = smul.addr %s172, 4
        %s174 = scalar_lea.vmem %s0, %s173
      $region32: #{bottleneck_pallas.4} parent=27 // pred_fallthru
        _
    $region28: #{bottleneck_pallas.4} parent=5 // pred_fallthru
      _
    %p175 = scmp.le.s32.totalorder 1, %s10
    %p176 = scmp.lt.s32.totalorder %s10, 9
    %p177 = pnand %p175, %p176
    %p178 = pneg %p177
    // Predicated region
    $region33: #{bottleneck_pallas.4} parent=5 // pred_check
      _
    $region34: #{bottleneck_pallas.4} parent=5 // pred_check_branch
      %180 = sbr.rel (%p177) target = $region36
    $region35: #{bottleneck_pallas.4} parent=5 // pred_region
      %s181 = ssub.s32 %s10, 1
      %p182 = scmp.lt.s32.totalorder %s19, 1
      %s183 = scalar_select %p182, %s19, 1
      %s184 = smul.addr %s183, 32
      %s185 = smul.addr %s184, 4
      %s186 = scalar_lea.vmem %s0, %s185
      %p187 = pneg %p48
      %p188 = pneg %p45
      %p189 = pneg %p69
      %p190 = pneg %p66
      %p191 = pneg %p90
      %p192 = pneg %p87
      %p193 = pneg %p111
      %p194 = pneg %p108
      %p195 = pneg %p139
      %p196 = pneg %p136
      %p197 = scmp.lt.s32.totalorder %s19, 1
      %s198 = scalar_select %p197, %s19, 1
      %p199 = scmp.lt.s32.totalorder %s20, 3
      %s200 = scalar_select %p199, %s20, 3
      %s201 = smul.addr %s200, 8
      %s202 = smul.addr %s198, 32
      %s203 = sadd.s32 %s201, %s202
      %s204 = smul.addr %s203, 4
      %s205 = scalar_lea.vmem %s4, %s204
      %p206 = scmp.lt.s32.totalorder %s19, 1
      %s207 = scalar_select %p206, %s19, 1
      %s208 = smul.addr %s207, 32
      %s209 = smul.addr %s208, 4
      %s210 = scalar_lea.vmem %s0, %s209
      %p211 = scmp.lt.s32.totalorder %s19, 1
      %s212 = scalar_select %p211, %s19, 1
      %p213 = scmp.lt.s32.totalorder %s20, 3
      %s214 = scalar_select %p213, %s20, 3
      %s215 = smul.addr %s214, 8
      %s216 = smul.addr %s212, 32
      %s217 = sadd.s32 %s215, %s216
      %s218 = smul.addr %s217, 4
      %s219 = scalar_lea.vmem %s4, %s218
      %220 = vst [vmem:[#allocation2] sm:$0xff] 0.0
      %221 = vst [vmem:[#allocation2 + $0x8] sm:$0x3] 0.0
      %222 = vst [vmem:[#allocation2 + $0x10] sm:$0xff] 0.0
      %223 = vst [vmem:[#allocation2 + $0x18] sm:$0x3] 0.0
      %224 = vst [vmem:[#allocation2 + $0x20] sm:$0xff] 0.0
      %225 = vst [vmem:[#allocation2 + $0x28] sm:$0x3] 0.0
      %226 = vst [vmem:[#allocation2 + $0x30] sm:$0xff] 0.0
      %227 = vst [vmem:[#allocation2 + $0x38] sm:$0x3] 0.0
      %228 = vst [vmem:[#allocation2 + $0x40] sm:$0xff] 0.0
      %229 = vst [vmem:[#allocation2 + $0x48] sm:$0x3] 0.0
      %230 = vst [vmem:[#allocation2 + $0x50] sm:$0xff] 0.0
      %231 = vst [vmem:[#allocation2 + $0x58] sm:$0x3] 0.0
      %232 = vst [vmem:[#allocation2 + $0x60] sm:$0xff] 0.0
      %233 = vst [vmem:[#allocation2 + $0x68] sm:$0x3] 0.0
      %234 = vst [vmem:[#allocation2 + $0x70] sm:$0xff] 0.0
      %235 = vst [vmem:[#allocation2 + $0x78] sm:$0x3] 0.0
      %236 = vst [vmem:[#allocation2 + $0x80] sm:$0xff] 0.0
      %237 = vst [vmem:[#allocation2 + $0x88] sm:$0x3] 0.0
      %238 = vst [vmem:[#allocation2 + $0x90] sm:$0xff] 0.0
      %239 = vst [vmem:[#allocation2 + $0x98] sm:$0x3] 0.0
      %s240 = sadd.s32 %s20, 4294967295
      %p241 = scmp.gt.s32.totalorder %s240, 0
      %s242 = scalar_select %p241, %s240, 0
      %p243 = scmp.lt.s32.totalorder %s242, 3
      %s244 = scalar_select %p243, %s242, 3
      %p245 = scmp.ge.s32.totalorder %s240, 0
      %p246 = scmp.lt.s32.totalorder %s240, 4
      %p247 = pnand %p245, %p246
      %p248 = pneg %p247
      %s249 = scalar_select %p248, 1, 0
      %s250 = scvt.s32.f32 %s249
      %s251 = smul.u32 %s244, 8
      %s252 = smul.addr %s251, 4
      %s253 = scalar_lea.vmem %s210, %s252
      %v254 = vld [vmem:[%s253] sm:$0xf]
      %v255 = vld [vmem:[%s253 + $0x4] sm:$0xf]
      %v256 = vld [vmem:[%s253 + $0x8] sm:$0xf]
      %v257 = vld [vmem:[%s253 + $0xc] sm:$0xf]
      %v258 = vld [vmem:[%s253 + $0x10] sm:$0xf]
      %v259 = vld [vmem:[%s253 + $0x14] sm:$0xf]
      %v260 = vld [vmem:[%s253 + $0x18] sm:$0xf]
      %v261 = vld [vmem:[%s253 + $0x1c] sm:$0xf]
      %v262 = vunpack.c.l.bf16 %v254
      %v263 = vunpack.c.l.bf16 %v255
      %v264 = vunpack.c.l.bf16 %v256
      %v265 = vunpack.c.l.bf16 %v257
      %v266 = vunpack.c.l.bf16 %v258
      %v267 = vunpack.c.l.bf16 %v259
      %v268 = vunpack.c.l.bf16 %v260
      %v269 = vunpack.c.l.bf16 %v261
      %v270 = vstv %s250
      %v271 = vmul.f32 %v262, %v270
      %v272 = vmul.f32 %v263, %v270
      %v273 = vmul.f32 %v264, %v270
      %v274 = vmul.f32 %v265, %v270
      %v275 = vmul.f32 %v266, %v270
      %v276 = vmul.f32 %v267, %v270
      %v277 = vmul.f32 %v268, %v270
      %v278 = vmul.f32 %v269, %v270
      %s279 = scalar_lea.vmem [#allocation2], 16
      %280 = vst [vmem:[%s279 + $0x1] sm:$0xff] %v271
      %281 = vst [vmem:[%s279 + $0x11] sm:$0xff] %v272
      %282 = vst [vmem:[%s279 + $0x21] sm:$0xff] %v273
      %283 = vst [vmem:[%s279 + $0x31] sm:$0xff] %v274
      %284 = vst [vmem:[%s279 + $0x41] sm:$0xff] %v275
      %285 = vst [vmem:[%s279 + $0x51] sm:$0xff] %v276
      %286 = vst [vmem:[%s279 + $0x61] sm:$0xff] %v277
      %287 = vst [vmem:[%s279 + $0x71] sm:$0xff] %v278
      %v288 = vld [vmem:[#allocation2] sm:$0xff]
      %v289 = vld [vmem:[#allocation2 + $0x8] sm:$0x3]
      %v290 = vld [vmem:[#allocation2 + $0x10] sm:$0xff]
      %v291 = vld [vmem:[#allocation2 + $0x18] sm:$0x3]
      %v292 = vld [vmem:[#allocation2 + $0x20] sm:$0xff]
      %v293 = vld [vmem:[#allocation2 + $0x28] sm:$0x3]
      %v294 = vld [vmem:[#allocation2 + $0x30] sm:$0xff]
      %v295 = vld [vmem:[#allocation2 + $0x38] sm:$0x3]
      %v296 = vld [vmem:[#allocation2 + $0x40] sm:$0xff]
      %v297 = vld [vmem:[#allocation2 + $0x48] sm:$0x3]
      %v298 = vld [vmem:[#allocation2 + $0x50] sm:$0xff]
      %v299 = vld [vmem:[#allocation2 + $0x58] sm:$0x3]
      %v300 = vld [vmem:[#allocation2 + $0x60] sm:$0xff]
      %v301 = vld [vmem:[#allocation2 + $0x68] sm:$0x3]
      %v302 = vld [vmem:[#allocation2 + $0x70] sm:$0xff]
      %v303 = vld [vmem:[#allocation2 + $0x78] sm:$0x3]
      %v304 = vld [vmem:[#allocation2 + $0x80] sm:$0xff]
      %v305 = vld [vmem:[#allocation2 + $0x88] sm:$0x3]
      %v306 = vld [vmem:[#allocation2 + $0x90] sm:$0xff]
      %v307 = vld [vmem:[#allocation2 + $0x98] sm:$0x3]
      %v308 = vld [vmem:[%s1] sm:$0x1]
      %v309 = vlaneseq
      %v310 = vshrl.u32 %v309, 7
      %v311 = vsub.s32 0, %v310
      %v312 = vrot.slane %v308, %v311
      %v313 = vmul.f32 %v288, %v312
      %v314 = vmul.f32 %v290, %v312
      %v315 = vmul.f32 %v292, %v312
      %v316 = vmul.f32 %v294, %v312
      %v317 = vmul.f32 %v296, %v312
      %v318 = vmul.f32 %v298, %v312
      %v319 = vmul.f32 %v300, %v312
      %v320 = vmul.f32 %v302, %v312
      %v321 = vadd.f32 %v313, 0.0
      %v322 = vadd.f32 %v314, 0.0
      %v323 = vadd.f32 %v315, 0.0
      %v324 = vadd.f32 %v316, 0.0
      %v325 = vadd.f32 %v317, 0.0
      %v326 = vadd.f32 %v318, 0.0
      %v327 = vadd.f32 %v319, 0.0
      %v328 = vadd.f32 %v320, 0.0
      %v329 = vld [vmem:[%s1 + $0x1] sm:$0x1]
      %v330 = vlaneseq
      %v331 = vshrl.u32 %v330, 7
      %v332 = vsub.s32 0, %v331
      %v333 = vrot.slane %v329, %v332
      %v334 = vmul.f32 %v288, %v333
      %v335 = vmul.f32 %v289, %v333
      %v336 = vmul.f32 %v290, %v333
      %v337 = vmul.f32 %v291, %v333
      %v338 = vmul.f32 %v292, %v333
      %v339 = vmul.f32 %v293, %v333
      %v340 = vmul.f32 %v294, %v333
      %v341 = vmul.f32 %v295, %v333
      %v342 = vmul.f32 %v296, %v333
      %v343 = vmul.f32 %v297, %v333
      %v344 = vmul.f32 %v298, %v333
      %v345 = vmul.f32 %v299, %v333
      %v346 = vmul.f32 %v300, %v333
      %v347 = vmul.f32 %v301, %v333
      %v348 = vmul.f32 %v302, %v333
      %v349 = vmul.f32 %v303, %v333
      %vm366 = vcmask 1046528
      %v367 = vrot.slane %v334, 1
      %v368 = vrot.slane %v335, 1
      %v369 = vsel %vm366, %v367, %v368
      %v370 = vrot.slane %v336, 1
      %v371 = vrot.slane %v337, 1
      %v372 = vsel %vm366, %v370, %v371
      %v373 = vrot.slane %v338, 1
      %v374 = vrot.slane %v339, 1
      %v375 = vsel %vm366, %v373, %v374
      %v376 = vrot.slane %v340, 1
      %v377 = vrot.slane %v341, 1
      %v378 = vsel %vm366, %v376, %v377
      %v379 = vrot.slane %v342, 1
      %v380 = vrot.slane %v343, 1
      %v381 = vsel %vm366, %v379, %v380
      %v382 = vrot.slane %v344, 1
      %v383 = vrot.slane %v345, 1
      %v384 = vsel %vm366, %v382, %v383
      %v385 = vrot.slane %v346, 1
      %v386 = vrot.slane %v347, 1
      %v387 = vsel %vm366, %v385, %v386
      %v388 = vrot.slane %v348, 1
      %v389 = vrot.slane %v349, 1
      %v390 = vsel %vm366, %v388, %v389
      %v399 = vadd.f32 %v321, %v369
      %v400 = vadd.f32 %v322, %v372
      %v401 = vadd.f32 %v323, %v375
      %v402 = vadd.f32 %v324, %v378
      %v403 = vadd.f32 %v325, %v381
      %v404 = vadd.f32 %v326, %v384
      %v405 = vadd.f32 %v327, %v387
      %v406 = vadd.f32 %v328, %v390
      %v407 = vld [vmem:[%s1 + $0x2] sm:$0x1]
      %v408 = vlaneseq
      %v409 = vshrl.u32 %v408, 7
      %v410 = vsub.s32 0, %v409
      %v411 = vrot.slane %v407, %v410
      %v412 = vmul.f32 %v288, %v411
      %v413 = vmul.f32 %v289, %v411
      %v414 = vmul.f32 %v290, %v411
      %v415 = vmul.f32 %v291, %v411
      %v416 = vmul.f32 %v292, %v411
      %v417 = vmul.f32 %v293, %v411
      %v418 = vmul.f32 %v294, %v411
      %v419 = vmul.f32 %v295, %v411
      %v420 = vmul.f32 %v296, %v411
      %v421 = vmul.f32 %v297, %v411
      %v422 = vmul.f32 %v298, %v411
      %v423 = vmul.f32 %v299, %v411
      %v424 = vmul.f32 %v300, %v411
      %v425 = vmul.f32 %v301, %v411
      %v426 = vmul.f32 %v302, %v411
      %v427 = vmul.f32 %v303, %v411
      %vm444 = vcmask 1045504
      %v445 = vrot.slane %v412, 2
      %v446 = vrot.slane %v413, 2
      %v447 = vsel %vm444, %v445, %v446
      %v448 = vrot.slane %v414, 2
      %v449 = vrot.slane %v415, 2
      %v450 = vsel %vm444, %v448, %v449
      %v451 = vrot.slane %v416, 2
      %v452 = vrot.slane %v417, 2
      %v453 = vsel %vm444, %v451, %v452
      %v454 = vrot.slane %v418, 2
      %v455 = vrot.slane %v419, 2
      %v456 = vsel %vm444, %v454, %v455
      %v457 = vrot.slane %v420, 2
      %v458 = vrot.slane %v421, 2
      %v459 = vsel %vm444, %v457, %v458
      %v460 = vrot.slane %v422, 2
      %v461 = vrot.slane %v423, 2
      %v462 = vsel %vm444, %v460, %v461
      %v463 = vrot.slane %v424, 2
      %v464 = vrot.slane %v425, 2
      %v465 = vsel %vm444, %v463, %v464
      %v466 = vrot.slane %v426, 2
      %v467 = vrot.slane %v427, 2
      %v468 = vsel %vm444, %v466, %v467
      %v477 = vadd.f32 %v399, %v447
      %v478 = vadd.f32 %v400, %v450
      %v479 = vadd.f32 %v401, %v453
      %v480 = vadd.f32 %v402, %v456
      %v481 = vadd.f32 %v403, %v459
      %v482 = vadd.f32 %v404, %v462
      %v483 = vadd.f32 %v405, %v465
      %v484 = vadd.f32 %v406, %v468
      %s485 = scalar_lea.vmem %s1, 4
      %v486 = vld [vmem:[%s485] sm:$0x1]
      %v487 = vlaneseq
      %v488 = vshrl.u32 %v487, 7
      %v489 = vsub.s32 0, %v488
      %v490 = vrot.slane %v486, %v489
      %v491 = vmul.f32 %v290, %v490
      %v492 = vmul.f32 %v292, %v490
      %v493 = vmul.f32 %v294, %v490
      %v494 = vmul.f32 %v296, %v490
      %v495 = vmul.f32 %v298, %v490
      %v496 = vmul.f32 %v300, %v490
      %v497 = vmul.f32 %v302, %v490
      %v498 = vmul.f32 %v304, %v490
      %v499 = vadd.f32 %v477, %v491
      %v500 = vadd.f32 %v478, %v492
      %v501 = vadd.f32 %v479, %v493
      %v502 = vadd.f32 %v480, %v494
      %v503 = vadd.f32 %v481, %v495
      %v504 = vadd.f32 %v482, %v496
      %v505 = vadd.f32 %v483, %v497
      %v506 = vadd.f32 %v484, %v498
      %v507 = vld [vmem:[%s485 + $0x1] sm:$0x1]
      %v508 = vlaneseq
      %v509 = vshrl.u32 %v508, 7
      %v510 = vsub.s32 0, %v509
      %v511 = vrot.slane %v507, %v510
      %v512 = vmul.f32 %v290, %v511
      %v513 = vmul.f32 %v291, %v511
      %v514 = vmul.f32 %v292, %v511
      %v515 = vmul.f32 %v293, %v511
      %v516 = vmul.f32 %v294, %v511
      %v517 = vmul.f32 %v295, %v511
      %v518 = vmul.f32 %v296, %v511
      %v519 = vmul.f32 %v297, %v511
      %v520 = vmul.f32 %v298, %v511
      %v521 = vmul.f32 %v299, %v511
      %v522 = vmul.f32 %v300, %v511
      %v523 = vmul.f32 %v301, %v511
      %v524 = vmul.f32 %v302, %v511
      %v525 = vmul.f32 %v303, %v511
      %v526 = vmul.f32 %v304, %v511
      %v527 = vmul.f32 %v305, %v511
      %v544 = vrot.slane %v512, 1
      %v545 = vrot.slane %v513, 1
      %v546 = vsel %vm366, %v544, %v545
      %v547 = vrot.slane %v514, 1
      %v548 = vrot.slane %v515, 1
      %v549 = vsel %vm366, %v547, %v548
      %v550 = vrot.slane %v516, 1
      %v551 = vrot.slane %v517, 1
      %v552 = vsel %vm366, %v550, %v551
      %v553 = vrot.slane %v518, 1
      %v554 = vrot.slane %v519, 1
      %v555 = vsel %vm366, %v553, %v554
      %v556 = vrot.slane %v520, 1
      %v557 = vrot.slane %v521, 1
      %v558 = vsel %vm366, %v556, %v557
      %v559 = vrot.slane %v522, 1
      %v560 = vrot.slane %v523, 1
      %v561 = vsel %vm366, %v559, %v560
      %v562 = vrot.slane %v524, 1
      %v563 = vrot.slane %v525, 1
      %v564 = vsel %vm366, %v562, %v563
      %v565 = vrot.slane %v526, 1
      %v566 = vrot.slane %v527, 1
      %v567 = vsel %vm366, %v565, %v566
      %v576 = vadd.f32 %v499, %v546
      %v577 = vadd.f32 %v500, %v549
      %v578 = vadd.f32 %v501, %v552
      %v579 = vadd.f32 %v502, %v555
      %v580 = vadd.f32 %v503, %v558
      %v581 = vadd.f32 %v504, %v561
      %v582 = vadd.f32 %v505, %v564
      %v583 = vadd.f32 %v506, %v567
      %v584 = vld [vmem:[%s485 + $0x2] sm:$0x1]
      %v585 = vlaneseq
      %v586 = vshrl.u32 %v585, 7
      %v587 = vsub.s32 0, %v586
      %v588 = vrot.slane %v584, %v587
      %v589 = vmul.f32 %v290, %v588
      %v590 = vmul.f32 %v291, %v588
      %v591 = vmul.f32 %v292, %v588
      %v592 = vmul.f32 %v293, %v588
      %v593 = vmul.f32 %v294, %v588
      %v594 = vmul.f32 %v295, %v588
      %v595 = vmul.f32 %v296, %v588
      %v596 = vmul.f32 %v297, %v588
      %v597 = vmul.f32 %v298, %v588
      %v598 = vmul.f32 %v299, %v588
      %v599 = vmul.f32 %v300, %v588
      %v600 = vmul.f32 %v301, %v588
      %v601 = vmul.f32 %v302, %v588
      %v602 = vmul.f32 %v303, %v588
      %v603 = vmul.f32 %v304, %v588
      %v604 = vmul.f32 %v305, %v588
      %v621 = vrot.slane %v589, 2
      %v622 = vrot.slane %v590, 2
      %v623 = vsel %vm444, %v621, %v622
      %v624 = vrot.slane %v591, 2
      %v625 = vrot.slane %v592, 2
      %v626 = vsel %vm444, %v624, %v625
      %v627 = vrot.slane %v593, 2
      %v628 = vrot.slane %v594, 2
      %v629 = vsel %vm444, %v627, %v628
      %v630 = vrot.slane %v595, 2
      %v631 = vrot.slane %v596, 2
      %v632 = vsel %vm444, %v630, %v631
      %v633 = vrot.slane %v597, 2
      %v634 = vrot.slane %v598, 2
      %v635 = vsel %vm444, %v633, %v634
      %v636 = vrot.slane %v599, 2
      %v637 = vrot.slane %v600, 2
      %v638 = vsel %vm444, %v636, %v637
      %v639 = vrot.slane %v601, 2
      %v640 = vrot.slane %v602, 2
      %v641 = vsel %vm444, %v639, %v640
      %v642 = vrot.slane %v603, 2
      %v643 = vrot.slane %v604, 2
      %v644 = vsel %vm444, %v642, %v643
      %v653 = vadd.f32 %v576, %v623
      %v654 = vadd.f32 %v577, %v626
      %v655 = vadd.f32 %v578, %v629
      %v656 = vadd.f32 %v579, %v632
      %v657 = vadd.f32 %v580, %v635
      %v658 = vadd.f32 %v581, %v638
      %v659 = vadd.f32 %v582, %v641
      %v660 = vadd.f32 %v583, %v644
      %s661 = scalar_lea.vmem %s1, 8
      %v662 = vld [vmem:[%s661] sm:$0x1]
      %v663 = vlaneseq
      %v664 = vshrl.u32 %v663, 7
      %v665 = vsub.s32 0, %v664
      %v666 = vrot.slane %v662, %v665
      %v667 = vmul.f32 %v292, %v666
      %v668 = vmul.f32 %v294, %v666
      %v669 = vmul.f32 %v296, %v666
      %v670 = vmul.f32 %v298, %v666
      %v671 = vmul.f32 %v300, %v666
      %v672 = vmul.f32 %v302, %v666
      %v673 = vmul.f32 %v304, %v666
      %v674 = vmul.f32 %v306, %v666
      %v675 = vadd.f32 %v653, %v667
      %v676 = vadd.f32 %v654, %v668
      %v677 = vadd.f32 %v655, %v669
      %v678 = vadd.f32 %v656, %v670
      %v679 = vadd.f32 %v657, %v671
      %v680 = vadd.f32 %v658, %v672
      %v681 = vadd.f32 %v659, %v673
      %v682 = vadd.f32 %v660, %v674
      %v683 = vld [vmem:[%s661 + $0x1] sm:$0x1]
      %v684 = vlaneseq
      %v685 = vshrl.u32 %v684, 7
      %v686 = vsub.s32 0, %v685
      %v687 = vrot.slane %v683, %v686
      %v688 = vmul.f32 %v292, %v687
      %v689 = vmul.f32 %v293, %v687
      %v690 = vmul.f32 %v294, %v687
      %v691 = vmul.f32 %v295, %v687
      %v692 = vmul.f32 %v296, %v687
      %v693 = vmul.f32 %v297, %v687
      %v694 = vmul.f32 %v298, %v687
      %v695 = vmul.f32 %v299, %v687
      %v696 = vmul.f32 %v300, %v687
      %v697 = vmul.f32 %v301, %v687
      %v698 = vmul.f32 %v302, %v687
      %v699 = vmul.f32 %v303, %v687
      %v700 = vmul.f32 %v304, %v687
      %v701 = vmul.f32 %v305, %v687
      %v702 = vmul.f32 %v306, %v687
      %v703 = vmul.f32 %v307, %v687
      %v720 = vrot.slane %v688, 1
      %v721 = vrot.slane %v689, 1
      %v722 = vsel %vm366, %v720, %v721
      %v723 = vrot.slane %v690, 1
      %v724 = vrot.slane %v691, 1
      %v725 = vsel %vm366, %v723, %v724
      %v726 = vrot.slane %v692, 1
      %v727 = vrot.slane %v693, 1
      %v728 = vsel %vm366, %v726, %v727
      %v729 = vrot.slane %v694, 1
      %v730 = vrot.slane %v695, 1
      %v731 = vsel %vm366, %v729, %v730
      %v732 = vrot.slane %v696, 1
      %v733 = vrot.slane %v697, 1
      %v734 = vsel %vm366, %v732, %v733
      %v735 = vrot.slane %v698, 1
      %v736 = vrot.slane %v699, 1
      %v737 = vsel %vm366, %v735, %v736
      %v738 = vrot.slane %v700, 1
      %v739 = vrot.slane %v701, 1
      %v740 = vsel %vm366, %v738, %v739
      %v741 = vrot.slane %v702, 1
      %v742 = vrot.slane %v703, 1
      %v743 = vsel %vm366, %v741, %v742
      %v752 = vadd.f32 %v675, %v722
      %v753 = vadd.f32 %v676, %v725
      %v754 = vadd.f32 %v677, %v728
      %v755 = vadd.f32 %v678, %v731
      %v756 = vadd.f32 %v679, %v734
      %v757 = vadd.f32 %v680, %v737
      %v758 = vadd.f32 %v681, %v740
      %v759 = vadd.f32 %v682, %v743
      %v760 = vld [vmem:[%s661 + $0x2] sm:$0x1]
      %v761 = vlaneseq
      %v762 = vshrl.u32 %v761, 7
      %v763 = vsub.s32 0, %v762
      %v764 = vrot.slane %v760, %v763
      %v765 = vmul.f32 %v292, %v764
      %v766 = vmul.f32 %v293, %v764
      %v767 = vmul.f32 %v294, %v764
      %v768 = vmul.f32 %v295, %v764
      %v769 = vmul.f32 %v296, %v764
      %v770 = vmul.f32 %v297, %v764
      %v771 = vmul.f32 %v298, %v764
      %v772 = vmul.f32 %v299, %v764
      %v773 = vmul.f32 %v300, %v764
      %v774 = vmul.f32 %v301, %v764
      %v775 = vmul.f32 %v302, %v764
      %v776 = vmul.f32 %v303, %v764
      %v777 = vmul.f32 %v304, %v764
      %v778 = vmul.f32 %v305, %v764
      %v779 = vmul.f32 %v306, %v764
      %v780 = vmul.f32 %v307, %v764
      %v797 = vrot.slane %v765, 2
      %v798 = vrot.slane %v766, 2
      %v799 = vsel %vm444, %v797, %v798
      %v800 = vrot.slane %v767, 2
      %v801 = vrot.slane %v768, 2
      %v802 = vsel %vm444, %v800, %v801
      %v803 = vrot.slane %v769, 2
      %v804 = vrot.slane %v770, 2
      %v805 = vsel %vm444, %v803, %v804
      %v806 = vrot.slane %v771, 2
      %v807 = vrot.slane %v772, 2
      %v808 = vsel %vm444, %v806, %v807
      %v809 = vrot.slane %v773, 2
      %v810 = vrot.slane %v774, 2
      %v811 = vsel %vm444, %v809, %v810
      %v812 = vrot.slane %v775, 2
      %v813 = vrot.slane %v776, 2
      %v814 = vsel %vm444, %v812, %v813
      %v815 = vrot.slane %v777, 2
      %v816 = vrot.slane %v778, 2
      %v817 = vsel %vm444, %v815, %v816
      %v818 = vrot.slane %v779, 2
      %v819 = vrot.slane %v780, 2
      %v820 = vsel %vm444, %v818, %v819
      %v829 = vadd.f32 %v752, %v799
      %v830 = vadd.f32 %v753, %v802
      %v831 = vadd.f32 %v754, %v805
      %v832 = vadd.f32 %v755, %v808
      %v833 = vadd.f32 %v756, %v811
      %v834 = vadd.f32 %v757, %v814
      %v835 = vadd.f32 %v758, %v817
      %v836 = vadd.f32 %v759, %v820
      %p837 = scmp.gt.s32.totalorder %s20, 0
      %s838 = scalar_select %p837, %s20, 0
      %p839 = scmp.lt.s32.totalorder %s838, 3
      %s840 = scalar_select %p839, %s838, 3
      %p841 = scmp.ge.s32.totalorder %s20, 0
      %p842 = scmp.lt.s32.totalorder %s20, 4
      %p843 = pnand %p841, %p842
      %p844 = pneg %p843
      %s845 = scalar_select %p844, 1, 0
      %s846 = scvt.s32.f32 %s845
      %s847 = smul.u32 %s840, 8
      %s848 = smul.addr %s847, 4
      %s849 = scalar_lea.vmem %s210, %s848
      %v850 = vld [vmem:[%s849] sm:$0xf]
      %v851 = vld [vmem:[%s849 + $0x4] sm:$0xf]
      %v852 = vld [vmem:[%s849 + $0x8] sm:$0xf]
      %v853 = vld [vmem:[%s849 + $0xc] sm:$0xf]
      %v854 = vld [vmem:[%s849 + $0x10] sm:$0xf]
      %v855 = vld [vmem:[%s849 + $0x14] sm:$0xf]
      %v856 = vld [vmem:[%s849 + $0x18] sm:$0xf]
      %v857 = vld [vmem:[%s849 + $0x1c] sm:$0xf]
      %v858 = vunpack.c.l.bf16 %v850
      %v859 = vunpack.c.l.bf16 %v851
      %v860 = vunpack.c.l.bf16 %v852
      %v861 = vunpack.c.l.bf16 %v853
      %v862 = vunpack.c.l.bf16 %v854
      %v863 = vunpack.c.l.bf16 %v855
      %v864 = vunpack.c.l.bf16 %v856
      %v865 = vunpack.c.l.bf16 %v857
      %v866 = vstv %s846
      %v867 = vmul.f32 %v858, %v866
      %v868 = vmul.f32 %v859, %v866
      %v869 = vmul.f32 %v860, %v866
      %v870 = vmul.f32 %v861, %v866
      %v871 = vmul.f32 %v862, %v866
      %v872 = vmul.f32 %v863, %v866
      %v873 = vmul.f32 %v864, %v866
      %v874 = vmul.f32 %v865, %v866
      %875 = vst [vmem:[%s279 + $0x1] sm:$0xff] %v867
      %876 = vst [vmem:[%s279 + $0x11] sm:$0xff] %v868
      %877 = vst [vmem:[%s279 + $0x21] sm:$0xff] %v869
      %878 = vst [vmem:[%s279 + $0x31] sm:$0xff] %v870
      %879 = vst [vmem:[%s279 + $0x41] sm:$0xff] %v871
      %880 = vst [vmem:[%s279 + $0x51] sm:$0xff] %v872
      %881 = vst [vmem:[%s279 + $0x61] sm:$0xff] %v873
      %882 = vst [vmem:[%s279 + $0x71] sm:$0xff] %v874
      %v883 = vld [vmem:[#allocation2] sm:$0xff]
      %v884 = vld [vmem:[#allocation2 + $0x8] sm:$0x3]
      %v885 = vld [vmem:[#allocation2 + $0x10] sm:$0xff]
      %v886 = vld [vmem:[#allocation2 + $0x18] sm:$0x3]
      %v887 = vld [vmem:[#allocation2 + $0x20] sm:$0xff]
      %v888 = vld [vmem:[#allocation2 + $0x28] sm:$0x3]
      %v889 = vld [vmem:[#allocation2 + $0x30] sm:$0xff]
      %v890 = vld [vmem:[#allocation2 + $0x38] sm:$0x3]
      %v891 = vld [vmem:[#allocation2 + $0x40] sm:$0xff]
      %v892 = vld [vmem:[#allocation2 + $0x48] sm:$0x3]
      %v893 = vld [vmem:[#allocation2 + $0x50] sm:$0xff]
      %v894 = vld [vmem:[#allocation2 + $0x58] sm:$0x3]
      %v895 = vld [vmem:[#allocation2 + $0x60] sm:$0xff]
      %v896 = vld [vmem:[#allocation2 + $0x68] sm:$0x3]
      %v897 = vld [vmem:[#allocation2 + $0x70] sm:$0xff]
      %v898 = vld [vmem:[#allocation2 + $0x78] sm:$0x3]
      %v899 = vld [vmem:[#allocation2 + $0x80] sm:$0xff]
      %v900 = vld [vmem:[#allocation2 + $0x88] sm:$0x3]
      %v901 = vld [vmem:[#allocation2 + $0x90] sm:$0xff]
      %v902 = vld [vmem:[#allocation2 + $0x98] sm:$0x3]
      %s903 = scalar_lea.vmem %s1, 12
      %v904 = vld [vmem:[%s903] sm:$0x1]
      %v905 = vlaneseq
      %v906 = vshrl.u32 %v905, 7
      %v907 = vsub.s32 0, %v906
      %v908 = vrot.slane %v904, %v907
      %v909 = vmul.f32 %v883, %v908
      %v910 = vmul.f32 %v885, %v908
      %v911 = vmul.f32 %v887, %v908
      %v912 = vmul.f32 %v889, %v908
      %v913 = vmul.f32 %v891, %v908
      %v914 = vmul.f32 %v893, %v908
      %v915 = vmul.f32 %v895, %v908
      %v916 = vmul.f32 %v897, %v908
      %v917 = vadd.f32 %v829, %v909
      %v918 = vadd.f32 %v830, %v910
      %v919 = vadd.f32 %v831, %v911
      %v920 = vadd.f32 %v832, %v912
      %v921 = vadd.f32 %v833, %v913
      %v922 = vadd.f32 %v834, %v914
      %v923 = vadd.f32 %v835, %v915
      %v924 = vadd.f32 %v836, %v916
      %v925 = vld [vmem:[%s903 + $0x1] sm:$0x1]
      %v926 = vlaneseq
      %v927 = vshrl.u32 %v926, 7
      %v928 = vsub.s32 0, %v927
      %v929 = vrot.slane %v925, %v928
      %v930 = vmul.f32 %v883, %v929
      %v931 = vmul.f32 %v884, %v929
      %v932 = vmul.f32 %v885, %v929
      %v933 = vmul.f32 %v886, %v929
      %v934 = vmul.f32 %v887, %v929
      %v935 = vmul.f32 %v888, %v929
      %v936 = vmul.f32 %v889, %v929
      %v937 = vmul.f32 %v890, %v929
      %v938 = vmul.f32 %v891, %v929
      %v939 = vmul.f32 %v892, %v929
      %v940 = vmul.f32 %v893, %v929
      %v941 = vmul.f32 %v894, %v929
      %v942 = vmul.f32 %v895, %v929
      %v943 = vmul.f32 %v896, %v929
      %v944 = vmul.f32 %v897, %v929
      %v945 = vmul.f32 %v898, %v929
      %v962 = vrot.slane %v930, 1
      %v963 = vrot.slane %v931, 1
      %v964 = vsel %vm366, %v962, %v963
      %v965 = vrot.slane %v932, 1
      %v966 = vrot.slane %v933, 1
      %v967 = vsel %vm366, %v965, %v966
      %v968 = vrot.slane %v934, 1
      %v969 = vrot.slane %v935, 1
      %v970 = vsel %vm366, %v968, %v969
      %v971 = vrot.slane %v936, 1
      %v972 = vrot.slane %v937, 1
      %v973 = vsel %vm366, %v971, %v972
      %v974 = vrot.slane %v938, 1
      %v975 = vrot.slane %v939, 1
      %v976 = vsel %vm366, %v974, %v975
      %v977 = vrot.slane %v940, 1
      %v978 = vrot.slane %v941, 1
      %v979 = vsel %vm366, %v977, %v978
      %v980 = vrot.slane %v942, 1
      %v981 = vrot.slane %v943, 1
      %v982 = vsel %vm366, %v980, %v981
      %v983 = vrot.slane %v944, 1
      %v984 = vrot.slane %v945, 1
      %v985 = vsel %vm366, %v983, %v984
      %v994 = vadd.f32 %v917, %v964
      %v995 = vadd.f32 %v918, %v967
      %v996 = vadd.f32 %v919, %v970
      %v997 = vadd.f32 %v920, %v973
      %v998 = vadd.f32 %v921, %v976
      %v999 = vadd.f32 %v922, %v979
      %v1000 = vadd.f32 %v923, %v982
      %v1001 = vadd.f32 %v924, %v985
      %v1002 = vld [vmem:[%s903 + $0x2] sm:$0x1]
      %v1003 = vlaneseq
      %v1004 = vshrl.u32 %v1003, 7
      %v1005 = vsub.s32 0, %v1004
      %v1006 = vrot.slane %v1002, %v1005
      %v1007 = vmul.f32 %v883, %v1006
      %v1008 = vmul.f32 %v884, %v1006
      %v1009 = vmul.f32 %v885, %v1006
      %v1010 = vmul.f32 %v886, %v1006
      %v1011 = vmul.f32 %v887, %v1006
      %v1012 = vmul.f32 %v888, %v1006
      %v1013 = vmul.f32 %v889, %v1006
      %v1014 = vmul.f32 %v890, %v1006
      %v1015 = vmul.f32 %v891, %v1006
      %v1016 = vmul.f32 %v892, %v1006
      %v1017 = vmul.f32 %v893, %v1006
      %v1018 = vmul.f32 %v894, %v1006
      %v1019 = vmul.f32 %v895, %v1006
      %v1020 = vmul.f32 %v896, %v1006
      %v1021 = vmul.f32 %v897, %v1006
      %v1022 = vmul.f32 %v898, %v1006
      %v1039 = vrot.slane %v1007, 2
      %v1040 = vrot.slane %v1008, 2
      %v1041 = vsel %vm444, %v1039, %v1040
      %v1042 = vrot.slane %v1009, 2
      %v1043 = vrot.slane %v1010, 2
      %v1044 = vsel %vm444, %v1042, %v1043
      %v1045 = vrot.slane %v1011, 2
      %v1046 = vrot.slane %v1012, 2
      %v1047 = vsel %vm444, %v1045, %v1046
      %v1048 = vrot.slane %v1013, 2
      %v1049 = vrot.slane %v1014, 2
      %v1050 = vsel %vm444, %v1048, %v1049
      %v1051 = vrot.slane %v1015, 2
      %v1052 = vrot.slane %v1016, 2
      %v1053 = vsel %vm444, %v1051, %v1052
      %v1054 = vrot.slane %v1017, 2
      %v1055 = vrot.slane %v1018, 2
      %v1056 = vsel %vm444, %v1054, %v1055
      %v1057 = vrot.slane %v1019, 2
      %v1058 = vrot.slane %v1020, 2
      %v1059 = vsel %vm444, %v1057, %v1058
      %v1060 = vrot.slane %v1021, 2
      %v1061 = vrot.slane %v1022, 2
      %v1062 = vsel %vm444, %v1060, %v1061
      %v1071 = vadd.f32 %v994, %v1041
      %v1072 = vadd.f32 %v995, %v1044
      %v1073 = vadd.f32 %v996, %v1047
      %v1074 = vadd.f32 %v997, %v1050
      %v1075 = vadd.f32 %v998, %v1053
      %v1076 = vadd.f32 %v999, %v1056
      %v1077 = vadd.f32 %v1000, %v1059
      %v1078 = vadd.f32 %v1001, %v1062
      %s1079 = scalar_lea.vmem %s1, 16
      %v1080 = vld [vmem:[%s1079] sm:$0x1]
      %v1081 = vlaneseq
      %v1082 = vshrl.u32 %v1081, 7
      %v1083 = vsub.s32 0, %v1082
      %v1084 = vrot.slane %v1080, %v1083
      %v1085 = vmul.f32 %v885, %v1084
      %v1086 = vmul.f32 %v887, %v1084
      %v1087 = vmul.f32 %v889, %v1084
      %v1088 = vmul.f32 %v891, %v1084
      %v1089 = vmul.f32 %v893, %v1084
      %v1090 = vmul.f32 %v895, %v1084
      %v1091 = vmul.f32 %v897, %v1084
      %v1092 = vmul.f32 %v899, %v1084
      %v1093 = vadd.f32 %v1071, %v1085
      %v1094 = vadd.f32 %v1072, %v1086
      %v1095 = vadd.f32 %v1073, %v1087
      %v1096 = vadd.f32 %v1074, %v1088
      %v1097 = vadd.f32 %v1075, %v1089
      %v1098 = vadd.f32 %v1076, %v1090
      %v1099 = vadd.f32 %v1077, %v1091
      %v1100 = vadd.f32 %v1078, %v1092
      %v1101 = vld [vmem:[%s1079 + $0x1] sm:$0x1]
      %v1102 = vlaneseq
      %v1103 = vshrl.u32 %v1102, 7
      %v1104 = vsub.s32 0, %v1103
      %v1105 = vrot.slane %v1101, %v1104
      %v1106 = vmul.f32 %v885, %v1105
      %v1107 = vmul.f32 %v886, %v1105
      %v1108 = vmul.f32 %v887, %v1105
      %v1109 = vmul.f32 %v888, %v1105
      %v1110 = vmul.f32 %v889, %v1105
      %v1111 = vmul.f32 %v890, %v1105
      %v1112 = vmul.f32 %v891, %v1105
      %v1113 = vmul.f32 %v892, %v1105
      %v1114 = vmul.f32 %v893, %v1105
      %v1115 = vmul.f32 %v894, %v1105
      %v1116 = vmul.f32 %v895, %v1105
      %v1117 = vmul.f32 %v896, %v1105
      %v1118 = vmul.f32 %v897, %v1105
      %v1119 = vmul.f32 %v898, %v1105
      %v1120 = vmul.f32 %v899, %v1105
      %v1121 = vmul.f32 %v900, %v1105
      %v1138 = vrot.slane %v1106, 1
      %v1139 = vrot.slane %v1107, 1
      %v1140 = vsel %vm366, %v1138, %v1139
      %v1141 = vrot.slane %v1108, 1
      %v1142 = vrot.slane %v1109, 1
      %v1143 = vsel %vm366, %v1141, %v1142
      %v1144 = vrot.slane %v1110, 1
      %v1145 = vrot.slane %v1111, 1
      %v1146 = vsel %vm366, %v1144, %v1145
      %v1147 = vrot.slane %v1112, 1
      %v1148 = vrot.slane %v1113, 1
      %v1149 = vsel %vm366, %v1147, %v1148
      %v1150 = vrot.slane %v1114, 1
      %v1151 = vrot.slane %v1115, 1
      %v1152 = vsel %vm366, %v1150, %v1151
      %v1153 = vrot.slane %v1116, 1
      %v1154 = vrot.slane %v1117, 1
      %v1155 = vsel %vm366, %v1153, %v1154
      %v1156 = vrot.slane %v1118, 1
      %v1157 = vrot.slane %v1119, 1
      %v1158 = vsel %vm366, %v1156, %v1157
      %v1159 = vrot.slane %v1120, 1
      %v1160 = vrot.slane %v1121, 1
      %v1161 = vsel %vm366, %v1159, %v1160
      %v1170 = vadd.f32 %v1093, %v1140
      %v1171 = vadd.f32 %v1094, %v1143
      %v1172 = vadd.f32 %v1095, %v1146
      %v1173 = vadd.f32 %v1096, %v1149
      %v1174 = vadd.f32 %v1097, %v1152
      %v1175 = vadd.f32 %v1098, %v1155
      %v1176 = vadd.f32 %v1099, %v1158
      %v1177 = vadd.f32 %v1100, %v1161
      %v1178 = vld [vmem:[%s1079 + $0x2] sm:$0x1]
      %v1179 = vlaneseq
      %v1180 = vshrl.u32 %v1179, 7
      %v1181 = vsub.s32 0, %v1180
      %v1182 = vrot.slane %v1178, %v1181
      %v1183 = vmul.f32 %v885, %v1182
      %v1184 = vmul.f32 %v886, %v1182
      %v1185 = vmul.f32 %v887, %v1182
      %v1186 = vmul.f32 %v888, %v1182
      %v1187 = vmul.f32 %v889, %v1182
      %v1188 = vmul.f32 %v890, %v1182
      %v1189 = vmul.f32 %v891, %v1182
      %v1190 = vmul.f32 %v892, %v1182
      %v1191 = vmul.f32 %v893, %v1182
      %v1192 = vmul.f32 %v894, %v1182
      %v1193 = vmul.f32 %v895, %v1182
      %v1194 = vmul.f32 %v896, %v1182
      %v1195 = vmul.f32 %v897, %v1182
      %v1196 = vmul.f32 %v898, %v1182
      %v1197 = vmul.f32 %v899, %v1182
      %v1198 = vmul.f32 %v900, %v1182
      %v1215 = vrot.slane %v1183, 2
      %v1216 = vrot.slane %v1184, 2
      %v1217 = vsel %vm444, %v1215, %v1216
      %v1218 = vrot.slane %v1185, 2
      %v1219 = vrot.slane %v1186, 2
      %v1220 = vsel %vm444, %v1218, %v1219
      %v1221 = vrot.slane %v1187, 2
      %v1222 = vrot.slane %v1188, 2
      %v1223 = vsel %vm444, %v1221, %v1222
      %v1224 = vrot.slane %v1189, 2
      %v1225 = vrot.slane %v1190, 2
      %v1226 = vsel %vm444, %v1224, %v1225
      %v1227 = vrot.slane %v1191, 2
      %v1228 = vrot.slane %v1192, 2
      %v1229 = vsel %vm444, %v1227, %v1228
      %v1230 = vrot.slane %v1193, 2
      %v1231 = vrot.slane %v1194, 2
      %v1232 = vsel %vm444, %v1230, %v1231
      %v1233 = vrot.slane %v1195, 2
      %v1234 = vrot.slane %v1196, 2
      %v1235 = vsel %vm444, %v1233, %v1234
      %v1236 = vrot.slane %v1197, 2
      %v1237 = vrot.slane %v1198, 2
      %v1238 = vsel %vm444, %v1236, %v1237
      %v1247 = vadd.f32 %v1170, %v1217
      %v1248 = vadd.f32 %v1171, %v1220
      %v1249 = vadd.f32 %v1172, %v1223
      %v1250 = vadd.f32 %v1173, %v1226
      %v1251 = vadd.f32 %v1174, %v1229
      %v1252 = vadd.f32 %v1175, %v1232
      %v1253 = vadd.f32 %v1176, %v1235
      %v1254 = vadd.f32 %v1177, %v1238
      %s1255 = scalar_lea.vmem %s1, 20
      %v1256 = vld [vmem:[%s1255] sm:$0x1]
      %v1257 = vlaneseq
      %v1258 = vshrl.u32 %v1257, 7
      %v1259 = vsub.s32 0, %v1258
      %v1260 = vrot.slane %v1256, %v1259
      %v1261 = vmul.f32 %v887, %v1260
      %v1262 = vmul.f32 %v889, %v1260
      %v1263 = vmul.f32 %v891, %v1260
      %v1264 = vmul.f32 %v893, %v1260
      %v1265 = vmul.f32 %v895, %v1260
      %v1266 = vmul.f32 %v897, %v1260
      %v1267 = vmul.f32 %v899, %v1260
      %v1268 = vmul.f32 %v901, %v1260
      %v1269 = vadd.f32 %v1247, %v1261
      %v1270 = vadd.f32 %v1248, %v1262
      %v1271 = vadd.f32 %v1249, %v1263
      %v1272 = vadd.f32 %v1250, %v1264
      %v1273 = vadd.f32 %v1251, %v1265
      %v1274 = vadd.f32 %v1252, %v1266
      %v1275 = vadd.f32 %v1253, %v1267
      %v1276 = vadd.f32 %v1254, %v1268
      %v1277 = vld [vmem:[%s1255 + $0x1] sm:$0x1]
      %v1278 = vlaneseq
      %v1279 = vshrl.u32 %v1278, 7
      %v1280 = vsub.s32 0, %v1279
      %v1281 = vrot.slane %v1277, %v1280
      %v1282 = vmul.f32 %v887, %v1281
      %v1283 = vmul.f32 %v888, %v1281
      %v1284 = vmul.f32 %v889, %v1281
      %v1285 = vmul.f32 %v890, %v1281
      %v1286 = vmul.f32 %v891, %v1281
      %v1287 = vmul.f32 %v892, %v1281
      %v1288 = vmul.f32 %v893, %v1281
      %v1289 = vmul.f32 %v894, %v1281
      %v1290 = vmul.f32 %v895, %v1281
      %v1291 = vmul.f32 %v896, %v1281
      %v1292 = vmul.f32 %v897, %v1281
      %v1293 = vmul.f32 %v898, %v1281
      %v1294 = vmul.f32 %v899, %v1281
      %v1295 = vmul.f32 %v900, %v1281
      %v1296 = vmul.f32 %v901, %v1281
      %v1297 = vmul.f32 %v902, %v1281
      %v1314 = vrot.slane %v1282, 1
      %v1315 = vrot.slane %v1283, 1
      %v1316 = vsel %vm366, %v1314, %v1315
      %v1317 = vrot.slane %v1284, 1
      %v1318 = vrot.slane %v1285, 1
      %v1319 = vsel %vm366, %v1317, %v1318
      %v1320 = vrot.slane %v1286, 1
      %v1321 = vrot.slane %v1287, 1
      %v1322 = vsel %vm366, %v1320, %v1321
      %v1323 = vrot.slane %v1288, 1
      %v1324 = vrot.slane %v1289, 1
      %v1325 = vsel %vm366, %v1323, %v1324
      %v1326 = vrot.slane %v1290, 1
      %v1327 = vrot.slane %v1291, 1
      %v1328 = vsel %vm366, %v1326, %v1327
      %v1329 = vrot.slane %v1292, 1
      %v1330 = vrot.slane %v1293, 1
      %v1331 = vsel %vm366, %v1329, %v1330
      %v1332 = vrot.slane %v1294, 1
      %v1333 = vrot.slane %v1295, 1
      %v1334 = vsel %vm366, %v1332, %v1333
      %v1335 = vrot.slane %v1296, 1
      %v1336 = vrot.slane %v1297, 1
      %v1337 = vsel %vm366, %v1335, %v1336
      %v1346 = vadd.f32 %v1269, %v1316
      %v1347 = vadd.f32 %v1270, %v1319
      %v1348 = vadd.f32 %v1271, %v1322
      %v1349 = vadd.f32 %v1272, %v1325
      %v1350 = vadd.f32 %v1273, %v1328
      %v1351 = vadd.f32 %v1274, %v1331
      %v1352 = vadd.f32 %v1275, %v1334
      %v1353 = vadd.f32 %v1276, %v1337
      %v1354 = vld [vmem:[%s1255 + $0x2] sm:$0x1]
      %v1355 = vlaneseq
      %v1356 = vshrl.u32 %v1355, 7
      %v1357 = vsub.s32 0, %v1356
      %v1358 = vrot.slane %v1354, %v1357
      %v1359 = vmul.f32 %v887, %v1358
      %v1360 = vmul.f32 %v888, %v1358
      %v1361 = vmul.f32 %v889, %v1358
      %v1362 = vmul.f32 %v890, %v1358
      %v1363 = vmul.f32 %v891, %v1358
      %v1364 = vmul.f32 %v892, %v1358
      %v1365 = vmul.f32 %v893, %v1358
      %v1366 = vmul.f32 %v894, %v1358
      %v1367 = vmul.f32 %v895, %v1358
      %v1368 = vmul.f32 %v896, %v1358
      %v1369 = vmul.f32 %v897, %v1358
      %v1370 = vmul.f32 %v898, %v1358
      %v1371 = vmul.f32 %v899, %v1358
      %v1372 = vmul.f32 %v900, %v1358
      %v1373 = vmul.f32 %v901, %v1358
      %v1374 = vmul.f32 %v902, %v1358
      %v1391 = vrot.slane %v1359, 2
      %v1392 = vrot.slane %v1360, 2
      %v1393 = vsel %vm444, %v1391, %v1392
      %v1394 = vrot.slane %v1361, 2
      %v1395 = vrot.slane %v1362, 2
      %v1396 = vsel %vm444, %v1394, %v1395
      %v1397 = vrot.slane %v1363, 2
      %v1398 = vrot.slane %v1364, 2
      %v1399 = vsel %vm444, %v1397, %v1398
      %v1400 = vrot.slane %v1365, 2
      %v1401 = vrot.slane %v1366, 2
      %v1402 = vsel %vm444, %v1400, %v1401
      %v1403 = vrot.slane %v1367, 2
      %v1404 = vrot.slane %v1368, 2
      %v1405 = vsel %vm444, %v1403, %v1404
      %v1406 = vrot.slane %v1369, 2
      %v1407 = vrot.slane %v1370, 2
      %v1408 = vsel %vm444, %v1406, %v1407
      %v1409 = vrot.slane %v1371, 2
      %v1410 = vrot.slane %v1372, 2
      %v1411 = vsel %vm444, %v1409, %v1410
      %v1412 = vrot.slane %v1373, 2
      %v1413 = vrot.slane %v1374, 2
      %v1414 = vsel %vm444, %v1412, %v1413
      %v1423 = vadd.f32 %v1346, %v1393
      %v1424 = vadd.f32 %v1347, %v1396
      %v1425 = vadd.f32 %v1348, %v1399
      %v1426 = vadd.f32 %v1349, %v1402
      %v1427 = vadd.f32 %v1350, %v1405
      %v1428 = vadd.f32 %v1351, %v1408
      %v1429 = vadd.f32 %v1352, %v1411
      %v1430 = vadd.f32 %v1353, %v1414
      %s1431 = sadd.s32 %s20, 1
      %p1432 = scmp.gt.s32.totalorder %s1431, 0
      %s1433 = scalar_select %p1432, %s1431, 0
      %p1434 = scmp.lt.s32.totalorder %s1433, 3
      %s1435 = scalar_select %p1434, %s1433, 3
      %p1436 = scmp.ge.s32.totalorder %s1431, 0
      %p1437 = scmp.lt.s32.totalorder %s1431, 4
      %p1438 = pnand %p1436, %p1437
      %p1439 = pneg %p1438
      %s1440 = scalar_select %p1439, 1, 0
      %s1441 = scvt.s32.f32 %s1440
      %s1442 = smul.u32 %s1435, 8
      %s1443 = smul.addr %s1442, 4
      %s1444 = scalar_lea.vmem %s210, %s1443
      %v1445 = vld [vmem:[%s1444] sm:$0xf]
      %v1446 = vld [vmem:[%s1444 + $0x4] sm:$0xf]
      %v1447 = vld [vmem:[%s1444 + $0x8] sm:$0xf]
      %v1448 = vld [vmem:[%s1444 + $0xc] sm:$0xf]
      %v1449 = vld [vmem:[%s1444 + $0x10] sm:$0xf]
      %v1450 = vld [vmem:[%s1444 + $0x14] sm:$0xf]
      %v1451 = vld [vmem:[%s1444 + $0x18] sm:$0xf]
      %v1452 = vld [vmem:[%s1444 + $0x1c] sm:$0xf]
      %v1453 = vunpack.c.l.bf16 %v1445
      %v1454 = vunpack.c.l.bf16 %v1446
      %v1455 = vunpack.c.l.bf16 %v1447
      %v1456 = vunpack.c.l.bf16 %v1448
      %v1457 = vunpack.c.l.bf16 %v1449
      %v1458 = vunpack.c.l.bf16 %v1450
      %v1459 = vunpack.c.l.bf16 %v1451
      %v1460 = vunpack.c.l.bf16 %v1452
      %v1461 = vstv %s1441
      %v1462 = vmul.f32 %v1453, %v1461
      %v1463 = vmul.f32 %v1454, %v1461
      %v1464 = vmul.f32 %v1455, %v1461
      %v1465 = vmul.f32 %v1456, %v1461
      %v1466 = vmul.f32 %v1457, %v1461
      %v1467 = vmul.f32 %v1458, %v1461
      %v1468 = vmul.f32 %v1459, %v1461
      %v1469 = vmul.f32 %v1460, %v1461
      %1470 = vst [vmem:[%s279 + $0x1] sm:$0xff] %v1462
      %1471 = vst [vmem:[%s279 + $0x11] sm:$0xff] %v1463
      %1472 = vst [vmem:[%s279 + $0x21] sm:$0xff] %v1464
      %1473 = vst [vmem:[%s279 + $0x31] sm:$0xff] %v1465
      %1474 = vst [vmem:[%s279 + $0x41] sm:$0xff] %v1466
      %1475 = vst [vmem:[%s279 + $0x51] sm:$0xff] %v1467
      %1476 = vst [vmem:[%s279 + $0x61] sm:$0xff] %v1468
      %1477 = vst [vmem:[%s279 + $0x71] sm:$0xff] %v1469
      %v1478 = vld [vmem:[#allocation2] sm:$0xff]
      %v1479 = vld [vmem:[#allocation2 + $0x8] sm:$0x3]
      %v1480 = vld [vmem:[#allocation2 + $0x10] sm:$0xff]
      %v1481 = vld [vmem:[#allocation2 + $0x18] sm:$0x3]
      %v1482 = vld [vmem:[#allocation2 + $0x20] sm:$0xff]
      %v1483 = vld [vmem:[#allocation2 + $0x28] sm:$0x3]
      %v1484 = vld [vmem:[#allocation2 + $0x30] sm:$0xff]
      %v1485 = vld [vmem:[#allocation2 + $0x38] sm:$0x3]
      %v1486 = vld [vmem:[#allocation2 + $0x40] sm:$0xff]
      %v1487 = vld [vmem:[#allocation2 + $0x48] sm:$0x3]
      %v1488 = vld [vmem:[#allocation2 + $0x50] sm:$0xff]
      %v1489 = vld [vmem:[#allocation2 + $0x58] sm:$0x3]
      %v1490 = vld [vmem:[#allocation2 + $0x60] sm:$0xff]
      %v1491 = vld [vmem:[#allocation2 + $0x68] sm:$0x3]
      %v1492 = vld [vmem:[#allocation2 + $0x70] sm:$0xff]
      %v1493 = vld [vmem:[#allocation2 + $0x78] sm:$0x3]
      %v1494 = vld [vmem:[#allocation2 + $0x80] sm:$0xff]
      %v1495 = vld [vmem:[#allocation2 + $0x88] sm:$0x3]
      %v1496 = vld [vmem:[#allocation2 + $0x90] sm:$0xff]
      %v1497 = vld [vmem:[#allocation2 + $0x98] sm:$0x3]
      %s1498 = scalar_lea.vmem %s1, 24
      %v1499 = vld [vmem:[%s1498] sm:$0x1]
      %v1500 = vlaneseq
      %v1501 = vshrl.u32 %v1500, 7
      %v1502 = vsub.s32 0, %v1501
      %v1503 = vrot.slane %v1499, %v1502
      %v1504 = vmul.f32 %v1478, %v1503
      %v1505 = vmul.f32 %v1480, %v1503
      %v1506 = vmul.f32 %v1482, %v1503
      %v1507 = vmul.f32 %v1484, %v1503
      %v1508 = vmul.f32 %v1486, %v1503
      %v1509 = vmul.f32 %v1488, %v1503
      %v1510 = vmul.f32 %v1490, %v1503
      %v1511 = vmul.f32 %v1492, %v1503
      %v1512 = vadd.f32 %v1423, %v1504
      %v1513 = vadd.f32 %v1424, %v1505
      %v1514 = vadd.f32 %v1425, %v1506
      %v1515 = vadd.f32 %v1426, %v1507
      %v1516 = vadd.f32 %v1427, %v1508
      %v1517 = vadd.f32 %v1428, %v1509
      %v1518 = vadd.f32 %v1429, %v1510
      %v1519 = vadd.f32 %v1430, %v1511
      %v1520 = vld [vmem:[%s1498 + $0x1] sm:$0x1]
      %v1521 = vlaneseq
      %v1522 = vshrl.u32 %v1521, 7
      %v1523 = vsub.s32 0, %v1522
      %v1524 = vrot.slane %v1520, %v1523
      %v1525 = vmul.f32 %v1478, %v1524
      %v1526 = vmul.f32 %v1479, %v1524
      %v1527 = vmul.f32 %v1480, %v1524
      %v1528 = vmul.f32 %v1481, %v1524
      %v1529 = vmul.f32 %v1482, %v1524
      %v1530 = vmul.f32 %v1483, %v1524
      %v1531 = vmul.f32 %v1484, %v1524
      %v1532 = vmul.f32 %v1485, %v1524
      %v1533 = vmul.f32 %v1486, %v1524
      %v1534 = vmul.f32 %v1487, %v1524
      %v1535 = vmul.f32 %v1488, %v1524
      %v1536 = vmul.f32 %v1489, %v1524
      %v1537 = vmul.f32 %v1490, %v1524
      %v1538 = vmul.f32 %v1491, %v1524
      %v1539 = vmul.f32 %v1492, %v1524
      %v1540 = vmul.f32 %v1493, %v1524
      %v1557 = vrot.slane %v1525, 1
      %v1558 = vrot.slane %v1526, 1
      %v1559 = vsel %vm366, %v1557, %v1558
      %v1560 = vrot.slane %v1527, 1
      %v1561 = vrot.slane %v1528, 1
      %v1562 = vsel %vm366, %v1560, %v1561
      %v1563 = vrot.slane %v1529, 1
      %v1564 = vrot.slane %v1530, 1
      %v1565 = vsel %vm366, %v1563, %v1564
      %v1566 = vrot.slane %v1531, 1
      %v1567 = vrot.slane %v1532, 1
      %v1568 = vsel %vm366, %v1566, %v1567
      %v1569 = vrot.slane %v1533, 1
      %v1570 = vrot.slane %v1534, 1
      %v1571 = vsel %vm366, %v1569, %v1570
      %v1572 = vrot.slane %v1535, 1
      %v1573 = vrot.slane %v1536, 1
      %v1574 = vsel %vm366, %v1572, %v1573
      %v1575 = vrot.slane %v1537, 1
      %v1576 = vrot.slane %v1538, 1
      %v1577 = vsel %vm366, %v1575, %v1576
      %v1578 = vrot.slane %v1539, 1
      %v1579 = vrot.slane %v1540, 1
      %v1580 = vsel %vm366, %v1578, %v1579
      %v1589 = vadd.f32 %v1512, %v1559
      %v1590 = vadd.f32 %v1513, %v1562
      %v1591 = vadd.f32 %v1514, %v1565
      %v1592 = vadd.f32 %v1515, %v1568
      %v1593 = vadd.f32 %v1516, %v1571
      %v1594 = vadd.f32 %v1517, %v1574
      %v1595 = vadd.f32 %v1518, %v1577
      %v1596 = vadd.f32 %v1519, %v1580
      %v1597 = vld [vmem:[%s1498 + $0x2] sm:$0x1]
      %v1598 = vlaneseq
      %v1599 = vshrl.u32 %v1598, 7
      %v1600 = vsub.s32 0, %v1599
      %v1601 = vrot.slane %v1597, %v1600
      %v1602 = vmul.f32 %v1478, %v1601
      %v1603 = vmul.f32 %v1479, %v1601
      %v1604 = vmul.f32 %v1480, %v1601
      %v1605 = vmul.f32 %v1481, %v1601
      %v1606 = vmul.f32 %v1482, %v1601
      %v1607 = vmul.f32 %v1483, %v1601
      %v1608 = vmul.f32 %v1484, %v1601
      %v1609 = vmul.f32 %v1485, %v1601
      %v1610 = vmul.f32 %v1486, %v1601
      %v1611 = vmul.f32 %v1487, %v1601
      %v1612 = vmul.f32 %v1488, %v1601
      %v1613 = vmul.f32 %v1489, %v1601
      %v1614 = vmul.f32 %v1490, %v1601
      %v1615 = vmul.f32 %v1491, %v1601
      %v1616 = vmul.f32 %v1492, %v1601
      %v1617 = vmul.f32 %v1493, %v1601
      %v1634 = vrot.slane %v1602, 2
      %v1635 = vrot.slane %v1603, 2
      %v1636 = vsel %vm444, %v1634, %v1635
      %v1637 = vrot.slane %v1604, 2
      %v1638 = vrot.slane %v1605, 2
      %v1639 = vsel %vm444, %v1637, %v1638
      %v1640 = vrot.slane %v1606, 2
      %v1641 = vrot.slane %v1607, 2
      %v1642 = vsel %vm444, %v1640, %v1641
      %v1643 = vrot.slane %v1608, 2
      %v1644 = vrot.slane %v1609, 2
      %v1645 = vsel %vm444, %v1643, %v1644
      %v1646 = vrot.slane %v1610, 2
      %v1647 = vrot.slane %v1611, 2
      %v1648 = vsel %vm444, %v1646, %v1647
      %v1649 = vrot.slane %v1612, 2
      %v1650 = vrot.slane %v1613, 2
      %v1651 = vsel %vm444, %v1649, %v1650
      %v1652 = vrot.slane %v1614, 2
      %v1653 = vrot.slane %v1615, 2
      %v1654 = vsel %vm444, %v1652, %v1653
      %v1655 = vrot.slane %v1616, 2
      %v1656 = vrot.slane %v1617, 2
      %v1657 = vsel %vm444, %v1655, %v1656
      %v1666 = vadd.f32 %v1589, %v1636
      %v1667 = vadd.f32 %v1590, %v1639
      %v1668 = vadd.f32 %v1591, %v1642
      %v1669 = vadd.f32 %v1592, %v1645
      %v1670 = vadd.f32 %v1593, %v1648
      %v1671 = vadd.f32 %v1594, %v1651
      %v1672 = vadd.f32 %v1595, %v1654
      %v1673 = vadd.f32 %v1596, %v1657
      %s1674 = scalar_lea.vmem %s1, 28
      %v1675 = vld [vmem:[%s1674] sm:$0x1]
      %v1676 = vlaneseq
      %v1677 = vshrl.u32 %v1676, 7
      %v1678 = vsub.s32 0, %v1677
      %v1679 = vrot.slane %v1675, %v1678
      %v1680 = vmul.f32 %v1480, %v1679
      %v1681 = vmul.f32 %v1482, %v1679
      %v1682 = vmul.f32 %v1484, %v1679
      %v1683 = vmul.f32 %v1486, %v1679
      %v1684 = vmul.f32 %v1488, %v1679
      %v1685 = vmul.f32 %v1490, %v1679
      %v1686 = vmul.f32 %v1492, %v1679
      %v1687 = vmul.f32 %v1494, %v1679
      %v1688 = vadd.f32 %v1666, %v1680
      %v1689 = vadd.f32 %v1667, %v1681
      %v1690 = vadd.f32 %v1668, %v1682
      %v1691 = vadd.f32 %v1669, %v1683
      %v1692 = vadd.f32 %v1670, %v1684
      %v1693 = vadd.f32 %v1671, %v1685
      %v1694 = vadd.f32 %v1672, %v1686
      %v1695 = vadd.f32 %v1673, %v1687
      %v1696 = vld [vmem:[%s1674 + $0x1] sm:$0x1]
      %v1697 = vlaneseq
      %v1698 = vshrl.u32 %v1697, 7
      %v1699 = vsub.s32 0, %v1698
      %v1700 = vrot.slane %v1696, %v1699
      %v1701 = vmul.f32 %v1480, %v1700
      %v1702 = vmul.f32 %v1481, %v1700
      %v1703 = vmul.f32 %v1482, %v1700
      %v1704 = vmul.f32 %v1483, %v1700
      %v1705 = vmul.f32 %v1484, %v1700
      %v1706 = vmul.f32 %v1485, %v1700
      %v1707 = vmul.f32 %v1486, %v1700
      %v1708 = vmul.f32 %v1487, %v1700
      %v1709 = vmul.f32 %v1488, %v1700
      %v1710 = vmul.f32 %v1489, %v1700
      %v1711 = vmul.f32 %v1490, %v1700
      %v1712 = vmul.f32 %v1491, %v1700
      %v1713 = vmul.f32 %v1492, %v1700
      %v1714 = vmul.f32 %v1493, %v1700
      %v1715 = vmul.f32 %v1494, %v1700
      %v1716 = vmul.f32 %v1495, %v1700
      %v1733 = vrot.slane %v1701, 1
      %v1734 = vrot.slane %v1702, 1
      %v1735 = vsel %vm366, %v1733, %v1734
      %v1736 = vrot.slane %v1703, 1
      %v1737 = vrot.slane %v1704, 1
      %v1738 = vsel %vm366, %v1736, %v1737
      %v1739 = vrot.slane %v1705, 1
      %v1740 = vrot.slane %v1706, 1
      %v1741 = vsel %vm366, %v1739, %v1740
      %v1742 = vrot.slane %v1707, 1
      %v1743 = vrot.slane %v1708, 1
      %v1744 = vsel %vm366, %v1742, %v1743
      %v1745 = vrot.slane %v1709, 1
      %v1746 = vrot.slane %v1710, 1
      %v1747 = vsel %vm366, %v1745, %v1746
      %v1748 = vrot.slane %v1711, 1
      %v1749 = vrot.slane %v1712, 1
      %v1750 = vsel %vm366, %v1748, %v1749
      %v1751 = vrot.slane %v1713, 1
      %v1752 = vrot.slane %v1714, 1
      %v1753 = vsel %vm366, %v1751, %v1752
      %v1754 = vrot.slane %v1715, 1
      %v1755 = vrot.slane %v1716, 1
      %v1756 = vsel %vm366, %v1754, %v1755
      %v1765 = vadd.f32 %v1688, %v1735
      %v1766 = vadd.f32 %v1689, %v1738
      %v1767 = vadd.f32 %v1690, %v1741
      %v1768 = vadd.f32 %v1691, %v1744
      %v1769 = vadd.f32 %v1692, %v1747
      %v1770 = vadd.f32 %v1693, %v1750
      %v1771 = vadd.f32 %v1694, %v1753
      %v1772 = vadd.f32 %v1695, %v1756
      %v1773 = vld [vmem:[%s1674 + $0x2] sm:$0x1]
      %v1774 = vlaneseq
      %v1775 = vshrl.u32 %v1774, 7
      %v1776 = vsub.s32 0, %v1775
      %v1777 = vrot.slane %v1773, %v1776
      %v1778 = vmul.f32 %v1480, %v1777
      %v1779 = vmul.f32 %v1481, %v1777
      %v1780 = vmul.f32 %v1482, %v1777
      %v1781 = vmul.f32 %v1483, %v1777
      %v1782 = vmul.f32 %v1484, %v1777
      %v1783 = vmul.f32 %v1485, %v1777
      %v1784 = vmul.f32 %v1486, %v1777
      %v1785 = vmul.f32 %v1487, %v1777
      %v1786 = vmul.f32 %v1488, %v1777
      %v1787 = vmul.f32 %v1489, %v1777
      %v1788 = vmul.f32 %v1490, %v1777
      %v1789 = vmul.f32 %v1491, %v1777
      %v1790 = vmul.f32 %v1492, %v1777
      %v1791 = vmul.f32 %v1493, %v1777
      %v1792 = vmul.f32 %v1494, %v1777
      %v1793 = vmul.f32 %v1495, %v1777
      %v1810 = vrot.slane %v1778, 2
      %v1811 = vrot.slane %v1779, 2
      %v1812 = vsel %vm444, %v1810, %v1811
      %v1813 = vrot.slane %v1780, 2
      %v1814 = vrot.slane %v1781, 2
      %v1815 = vsel %vm444, %v1813, %v1814
      %v1816 = vrot.slane %v1782, 2
      %v1817 = vrot.slane %v1783, 2
      %v1818 = vsel %vm444, %v1816, %v1817
      %v1819 = vrot.slane %v1784, 2
      %v1820 = vrot.slane %v1785, 2
      %v1821 = vsel %vm444, %v1819, %v1820
      %v1822 = vrot.slane %v1786, 2
      %v1823 = vrot.slane %v1787, 2
      %v1824 = vsel %vm444, %v1822, %v1823
      %v1825 = vrot.slane %v1788, 2
      %v1826 = vrot.slane %v1789, 2
      %v1827 = vsel %vm444, %v1825, %v1826
      %v1828 = vrot.slane %v1790, 2
      %v1829 = vrot.slane %v1791, 2
      %v1830 = vsel %vm444, %v1828, %v1829
      %v1831 = vrot.slane %v1792, 2
      %v1832 = vrot.slane %v1793, 2
      %v1833 = vsel %vm444, %v1831, %v1832
      %v1842 = vadd.f32 %v1765, %v1812
      %v1843 = vadd.f32 %v1766, %v1815
      %v1844 = vadd.f32 %v1767, %v1818
      %v1845 = vadd.f32 %v1768, %v1821
      %v1846 = vadd.f32 %v1769, %v1824
      %v1847 = vadd.f32 %v1770, %v1827
      %v1848 = vadd.f32 %v1771, %v1830
      %v1849 = vadd.f32 %v1772, %v1833
      %s1850 = scalar_lea.vmem %s1, 32
      %v1851 = vld [vmem:[%s1850] sm:$0x1]
      %v1852 = vlaneseq
      %v1853 = vshrl.u32 %v1852, 7
      %v1854 = vsub.s32 0, %v1853
      %v1855 = vrot.slane %v1851, %v1854
      %v1856 = vmul.f32 %v1482, %v1855
      %v1857 = vmul.f32 %v1484, %v1855
      %v1858 = vmul.f32 %v1486, %v1855
      %v1859 = vmul.f32 %v1488, %v1855
      %v1860 = vmul.f32 %v1490, %v1855
      %v1861 = vmul.f32 %v1492, %v1855
      %v1862 = vmul.f32 %v1494, %v1855
      %v1863 = vmul.f32 %v1496, %v1855
      %v1864 = vadd.f32 %v1842, %v1856
      %v1865 = vadd.f32 %v1843, %v1857
      %v1866 = vadd.f32 %v1844, %v1858
      %v1867 = vadd.f32 %v1845, %v1859
      %v1868 = vadd.f32 %v1846, %v1860
      %v1869 = vadd.f32 %v1847, %v1861
      %v1870 = vadd.f32 %v1848, %v1862
      %v1871 = vadd.f32 %v1849, %v1863
      %v1872 = vld [vmem:[%s1850 + $0x1] sm:$0x1]
      %v1873 = vlaneseq
      %v1874 = vshrl.u32 %v1873, 7
      %v1875 = vsub.s32 0, %v1874
      %v1876 = vrot.slane %v1872, %v1875
      %v1877 = vmul.f32 %v1482, %v1876
      %v1878 = vmul.f32 %v1483, %v1876
      %v1879 = vmul.f32 %v1484, %v1876
      %v1880 = vmul.f32 %v1485, %v1876
      %v1881 = vmul.f32 %v1486, %v1876
      %v1882 = vmul.f32 %v1487, %v1876
      %v1883 = vmul.f32 %v1488, %v1876
      %v1884 = vmul.f32 %v1489, %v1876
      %v1885 = vmul.f32 %v1490, %v1876
      %v1886 = vmul.f32 %v1491, %v1876
      %v1887 = vmul.f32 %v1492, %v1876
      %v1888 = vmul.f32 %v1493, %v1876
      %v1889 = vmul.f32 %v1494, %v1876
      %v1890 = vmul.f32 %v1495, %v1876
      %v1891 = vmul.f32 %v1496, %v1876
      %v1892 = vmul.f32 %v1497, %v1876
      %v1909 = vrot.slane %v1877, 1
      %v1910 = vrot.slane %v1878, 1
      %v1911 = vsel %vm366, %v1909, %v1910
      %v1912 = vrot.slane %v1879, 1
      %v1913 = vrot.slane %v1880, 1
      %v1914 = vsel %vm366, %v1912, %v1913
      %v1915 = vrot.slane %v1881, 1
      %v1916 = vrot.slane %v1882, 1
      %v1917 = vsel %vm366, %v1915, %v1916
      %v1918 = vrot.slane %v1883, 1
      %v1919 = vrot.slane %v1884, 1
      %v1920 = vsel %vm366, %v1918, %v1919
      %v1921 = vrot.slane %v1885, 1
      %v1922 = vrot.slane %v1886, 1
      %v1923 = vsel %vm366, %v1921, %v1922
      %v1924 = vrot.slane %v1887, 1
      %v1925 = vrot.slane %v1888, 1
      %v1926 = vsel %vm366, %v1924, %v1925
      %v1927 = vrot.slane %v1889, 1
      %v1928 = vrot.slane %v1890, 1
      %v1929 = vsel %vm366, %v1927, %v1928
      %v1930 = vrot.slane %v1891, 1
      %v1931 = vrot.slane %v1892, 1
      %v1932 = vsel %vm366, %v1930, %v1931
      %v1941 = vadd.f32 %v1864, %v1911
      %v1942 = vadd.f32 %v1865, %v1914
      %v1943 = vadd.f32 %v1866, %v1917
      %v1944 = vadd.f32 %v1867, %v1920
      %v1945 = vadd.f32 %v1868, %v1923
      %v1946 = vadd.f32 %v1869, %v1926
      %v1947 = vadd.f32 %v1870, %v1929
      %v1948 = vadd.f32 %v1871, %v1932
      %v1949 = vld [vmem:[%s1850 + $0x2] sm:$0x1]
      %v1950 = vlaneseq
      %v1951 = vshrl.u32 %v1950, 7
      %v1952 = vsub.s32 0, %v1951
      %v1953 = vrot.slane %v1949, %v1952
      %v1954 = vmul.f32 %v1482, %v1953
      %v1955 = vmul.f32 %v1483, %v1953
      %v1956 = vmul.f32 %v1484, %v1953
      %v1957 = vmul.f32 %v1485, %v1953
      %v1958 = vmul.f32 %v1486, %v1953
      %v1959 = vmul.f32 %v1487, %v1953
      %v1960 = vmul.f32 %v1488, %v1953
      %v1961 = vmul.f32 %v1489, %v1953
      %v1962 = vmul.f32 %v1490, %v1953
      %v1963 = vmul.f32 %v1491, %v1953
      %v1964 = vmul.f32 %v1492, %v1953
      %v1965 = vmul.f32 %v1493, %v1953
      %v1966 = vmul.f32 %v1494, %v1953
      %v1967 = vmul.f32 %v1495, %v1953
      %v1968 = vmul.f32 %v1496, %v1953
      %v1969 = vmul.f32 %v1497, %v1953
      %v1986 = vrot.slane %v1954, 2
      %v1987 = vrot.slane %v1955, 2
      %v1988 = vsel %vm444, %v1986, %v1987
      %v1989 = vrot.slane %v1956, 2
      %v1990 = vrot.slane %v1957, 2
      %v1991 = vsel %vm444, %v1989, %v1990
      %v1992 = vrot.slane %v1958, 2
      %v1993 = vrot.slane %v1959, 2
      %v1994 = vsel %vm444, %v1992, %v1993
      %v1995 = vrot.slane %v1960, 2
      %v1996 = vrot.slane %v1961, 2
      %v1997 = vsel %vm444, %v1995, %v1996
      %v1998 = vrot.slane %v1962, 2
      %v1999 = vrot.slane %v1963, 2
      %v2000 = vsel %vm444, %v1998, %v1999
      %v2001 = vrot.slane %v1964, 2
      %v2002 = vrot.slane %v1965, 2
      %v2003 = vsel %vm444, %v2001, %v2002
      %v2004 = vrot.slane %v1966, 2
      %v2005 = vrot.slane %v1967, 2
      %v2006 = vsel %vm444, %v2004, %v2005
      %v2007 = vrot.slane %v1968, 2
      %v2008 = vrot.slane %v1969, 2
      %v2009 = vsel %vm444, %v2007, %v2008
      %v2018 = vadd.f32 %v1941, %v1988
      %v2019 = vadd.f32 %v1942, %v1991
      %v2020 = vadd.f32 %v1943, %v1994
      %v2021 = vadd.f32 %v1944, %v1997
      %v2022 = vadd.f32 %v1945, %v2000
      %v2023 = vadd.f32 %v1946, %v2003
      %v2024 = vadd.f32 %v1947, %v2006
      %v2025 = vadd.f32 %v1948, %v2009
      %v2026 = vld [vmem:[%s2] sm:$0x1]
      %v2028 = vlaneseq
      %v2029 = vshrl.u32 %v2028, 7
      %v2030 = vsub.s32 0, %v2029
      %v2031 = vrot.slane %v2026, %v2030
      %v2033 = vmul.f32 %v2018, %v2031
      %v2034 = vmul.f32 %v2019, %v2031
      %v2035 = vmul.f32 %v2020, %v2031
      %v2036 = vmul.f32 %v2021, %v2031
      %v2037 = vmul.f32 %v2022, %v2031
      %v2038 = vmul.f32 %v2023, %v2031
      %v2039 = vmul.f32 %v2024, %v2031
      %v2040 = vmul.f32 %v2025, %v2031
      %v2041 = vld [vmem:[%s3] sm:$0x1]
      %v2043 = vlaneseq
      %v2044 = vshrl.u32 %v2043, 7
      %v2045 = vsub.s32 0, %v2044
      %v2046 = vrot.slane %v2041, %v2045
      %v2048 = vadd.f32 %v2033, %v2046
      %v2049 = vadd.f32 %v2034, %v2046
      %v2050 = vadd.f32 %v2035, %v2046
      %v2051 = vadd.f32 %v2036, %v2046
      %v2052 = vadd.f32 %v2037, %v2046
      %v2053 = vadd.f32 %v2038, %v2046
      %v2054 = vadd.f32 %v2039, %v2046
      %v2055 = vadd.f32 %v2040, %v2046
      %v2056 = vpack.c.bf16 %v2048, %v2048
      %v2057 = vpack.c.bf16 %v2049, %v2049
      %v2058 = vpack.c.bf16 %v2050, %v2050
      %v2059 = vpack.c.bf16 %v2051, %v2051
      %v2060 = vpack.c.bf16 %v2052, %v2052
      %v2061 = vpack.c.bf16 %v2053, %v2053
      %v2062 = vpack.c.bf16 %v2054, %v2054
      %v2063 = vpack.c.bf16 %v2055, %v2055
      %2064 = vst [vmem:[%s219] sm:$0xf] %v2056
      %2065 = vst [vmem:[%s219 + $0x4] sm:$0xf] %v2057
      %2066 = vst [vmem:[%s219 + $0x8] sm:$0xf] %v2058
      %2067 = vst [vmem:[%s219 + $0xc] sm:$0xf] %v2059
      %2068 = vst [vmem:[%s219 + $0x10] sm:$0xf] %v2060
      %2069 = vst [vmem:[%s219 + $0x14] sm:$0xf] %v2061
      %2070 = vst [vmem:[%s219 + $0x18] sm:$0xf] %v2062
      %2071 = vst [vmem:[%s219 + $0x1c] sm:$0xf] %v2063
      %p2072 = scmp.lt.s32.totalorder %s19, 1
      %s2073 = scalar_select %p2072, %s19, 1
      %p2074 = scmp.lt.s32.totalorder %s20, 3
      %s2075 = scalar_select %p2074, %s20, 3
      %s2076 = smul.addr %s2075, 8
      %s2077 = smul.addr %s2073, 32
      %s2078 = sadd.s32 %s2076, %s2077
      %s2079 = smul.addr %s2078, 4
      %s2080 = scalar_lea.vmem %s4, %s2079
      // Predicated region
      $region37: #{bottleneck_pallas.4} parent=35 // pred_check
        %p2081 = pneg %p136
      $region38: #{bottleneck_pallas.4} parent=35 // pred_check_branch
        %2083 = sbr.rel (%p2081) target = $region40
      $region39: #{bottleneck_pallas.4} parent=35 // pred_region
        _
      $region40: #{bottleneck_pallas.4} parent=35 // pred_fallthru
        _
    $region36: #{bottleneck_pallas.4} parent=5 // pred_fallthru
      _
    %p2084 = scmp.le.s32.totalorder 2, %s10
    // Predicated region
    $region41: #{bottleneck_pallas.4} parent=5 // pred_check
      %p2085 = pneg %p2084
    $region42: #{bottleneck_pallas.4} parent=5 // pred_check_branch
      %2087 = sbr.rel (%p2085) target = $region44
    $region43: #{bottleneck_pallas.4} parent=5 // pred_region
      %s2088 = ssub.s32 %s10, 2
      // Predicated region
      $region45: #{bottleneck_pallas.4} parent=43 // pred_check
        %p2089 = pneg %p142
      $region46: #{bottleneck_pallas.4} parent=43 // pred_check_branch
        %2091 = sbr.rel (%p2089) target = $region48
      $region47: #{bottleneck_pallas.4} parent=43 // pred_region
        %p2092 = scmp.lt.s32.totalorder %s21, 1
        %s2093 = scalar_select %p2092, %s21, 1
        %p2094 = scmp.lt.s32.totalorder %s22, 3
        %s2095 = scalar_select %p2094, %s22, 3
        %s2096 = smul.addr %s2095, 8
        %s2097 = smul.addr %s2093, 32
        %s2098 = sadd.s32 %s2096, %s2097
        %s2099 = smul.addr %s2098, 4
        %s2100 = scalar_lea.vmem %s4, %s2099
      $region48: #{bottleneck_pallas.4} parent=43 // pred_fallthru
        _
    $region44: #{bottleneck_pallas.4} parent=5 // pred_fallthru
      _
  $region6: #{bottleneck_pallas.4} parent=0 // loop_footer
    %s14 = sadd.s32 1, %s10
  $region7: #{bottleneck_pallas.4} parent=0 // loop_footer_branch
    %9 = sbr.rel target = $region3
  $region8: #{bottleneck_pallas.4} parent=0 // loop_exit
    _

</llo_original>
